<compile_context>
chip_gen: v7x
topology: tpu7x:2x2x1
jax: 0.10.0
libtpu: 0.0.40
codegen_flags: <defaults>
</compile_context>

<pallas_src>
import functools

import jax
import jax.numpy as jnp
from jax.experimental import pallas as pl
from jax.experimental.pallas import tpu as pltpu


# ----------------------------------------------------------------------------
# Fused RecurrentBlock kernel.
# ----------------------------------------------------------------------------
def _make_rblock_kernel(H, W, Cin, Cout, t):
    WCout = W * Cout

    def kernel(x_ref, m1_ref, mb1_ref, mb2_ref, b_ref, o_ref, xin):
        # xin: (H+2, W*Cout) f32 padded activation scratch (zero halo rows).
        zero_row = jnp.zeros((1, WCout), xin.dtype)
        xin[pl.ds(0, 1), :] = zero_row
        xin[pl.ds(H + 1, 1), :] = zero_row

        b = b_ref[...]                         # (3, W*Cout) f32 folded biases
        b1, b_b1, b_b2 = b[0:1, :], b[1:2, :], b[2:3, :]

        # ---- conv1x1 + folded BN (no ReLU): (H, W*Cin) @ (W*Cin, W*Cout) ----
        # BN scale is already folded into m1; only the bias remains.
        out = jnp.dot(x_ref[0], m1_ref[...],
                      preferred_element_type=jnp.float32) + b1   # (H, W*Cout) f32

        def conv3x3_bn_relu(v, mb_ref, bias):
            # v: (H, W*Cout) f32 conv input (residual already added).
            # Write into the zero-halo scratch, then 3 row-shifted lane-dense
            # matmuls against the banded weights (dx taps + W padding folded
            # into the band).  bf16 operands, f32 accumulation.
            xin[pl.ds(1, H), :] = v
            acc = jnp.dot(xin[pl.ds(0, H), :].astype(jnp.bfloat16), mb_ref[0],
                          preferred_element_type=jnp.float32)
            for dy in range(1, 3):
                acc = acc + jnp.dot(
                    xin[pl.ds(dy, H), :].astype(jnp.bfloat16), mb_ref[dy],
                    preferred_element_type=jnp.float32)
            return jnp.maximum(acc + bias, 0.0)

        # ---- block1 recurrence (matches PyTorch control flow exactly) ----
        x0 = out
        for i in range(t):
            if i == 0:
                out = conv3x3_bn_relu(x0, mb1_ref, b_b1)
            out = conv3x3_bn_relu(out + x0, mb1_ref, b_b1)

        # ---- block2 recurrence ----
        x1 = out
        for i in range(t):
            if i == 0:
                out = conv3x3_bn_relu(x1, mb2_ref, b_b2)
            out = conv3x3_bn_relu(out + x1, mb2_ref, b_b2)

        o_ref[0] = out.astype(o_ref.dtype)

    return kernel


@functools.lru_cache(maxsize=None)
def _build_rblock_call(N, H, W, Cin, Cout, t):
    WCin, WCout = W * Cin, W * Cout
    kernel = _make_rblock_kernel(H, W, Cin, Cout, t)
    return pl.pallas_call(
        kernel,
        out_shape=jax.ShapeDtypeStruct((N, H, WCout), jnp.float32),
        grid=(N,),
        in_specs=[
            pl.BlockSpec((1, H, WCin), lambda n: (n, 0, 0)),       # x (bf16)
            pl.BlockSpec((WCin, WCout), lambda n: (0, 0)),         # banded 1x1 W (scale folded)
            pl.BlockSpec((3, WCout, WCout), lambda n: (0, 0, 0)),  # banded 3x3 W (block1)
            pl.BlockSpec((3, WCout, WCout), lambda n: (0, 0, 0)),  # banded 3x3 W (block2)
            pl.BlockSpec((3, WCout), lambda n: (0, 0)),            # folded BN biases
        ],
        out_specs=pl.BlockSpec((1, H, WCout), lambda n: (n, 0, 0)),
        scratch_shapes=[pltpu.VMEM((H + 2, WCout), jnp.float32)],
        compiler_params=pltpu.CompilerParams(dimension_semantics=("parallel",)),
    )


def recurrent_block_forward(x_nchw, packed, t=2):
    """x_nchw: (N, Cin, H, W) f32.  packed = (m1, mb1, mb2, bias).  Returns NCHW."""
    m1, mb1, mb2, bias = packed
    N, Cin, H, W = x_nchw.shape
    Cout = bias.shape[1] // W
    # NCHW -> lane-dense (N, H, W*Cin); bf16 operands for the MXU.
    x = jnp.transpose(x_nchw, (0, 2, 3, 1)).reshape(N, H, W * Cin)
    x = x.astype(jnp.bfloat16)
    call = _build_rblock_call(N, H, W, Cin, Cout, t)
    out = call(x, m1, mb1, mb2, bias)                    # (N, H, W*Cout) f32
    out = out.reshape(N, H, W, Cout)
    return jnp.transpose(out, (0, 3, 1, 2))              # back to NCHW


# ----------------------------------------------------------------------------
# Weight preparation: fold BN (scale into weights, bias kept separate), build
# lane-dense block-banded weight matrices.  Done ONCE outside the forward pass.
# ----------------------------------------------------------------------------
def _pack_banded_3x3(w, W_sp):
    """w: (3, 3, Cin, Cout) -> (3, W_sp*Cin, W_sp*Cout) banded matrices.

    M_dy[wp*Cin+ci, w*Cout+co] = w[dy, wp-w+1, ci, co] for wp-w+1 in {0,1,2},
    so the dx taps and the zero padding along W are folded into the band.
    """
    _, _, cin, cout = w.shape
    mats = []
    for dy in range(3):
        m = jnp.zeros((W_sp * cin, W_sp * cout), jnp.float32)
        for dx in range(3):
            sel = jnp.eye(W_sp, k=-(dx - 1), dtype=jnp.float32)  # ones at [w+dx-1, w]
            m = m + jnp.kron(sel, w[dy, dx])
        mats.append(m)
    return jnp.stack(mats, axis=0)


def init_conv_bn(key, K, cin, cout):
    kw, kb, kg, kbeta = jax.random.split(key, 4)
    fan_in = K * K * cin
    w = jax.random.normal(kw, (K, K, cin, cout), jnp.float32) / jnp.sqrt(float(fan_in))
    conv_bias = 0.1 * jax.random.normal(kb, (cout,), jnp.float32)
    gamma = 1.0 + 0.1 * jax.random.normal(kg, (cout,), jnp.float32)
    beta = 0.1 * jax.random.normal(kbeta, (cout,), jnp.float32)
    eps = 1e-5
    running_mean = jnp.zeros((cout,), jnp.float32)
    running_var = jnp.ones((cout,), jnp.float32)
    s = gamma / jnp.sqrt(running_var + eps)
    b = (conv_bias - running_mean) * s + beta            # fold conv bias + BN shift
    return dict(w=w, s=s, b=b)


def init_recurrent_block(key, cin, cout):
    k1, k2, k3 = jax.random.split(key, 3)
    return dict(c1=init_conv_bn(k1, 1, cin, cout),
                b1=init_conv_bn(k2, 3, cout, cout),
                b2=init_conv_bn(k3, 3, cout, cout))


def pack_recurrent_block(p, W_sp):
    # Fold the per-output-channel BN scale directly into the conv weights so
    # the in-kernel epilogue of every conv is just `+ bias`.
    w1 = p['c1']['w'][0, 0] * p['c1']['s'][None, :]                  # (Cin, Cout)
    m1 = jnp.kron(jnp.eye(W_sp, dtype=jnp.float32), w1).astype(jnp.bfloat16)
    wb1 = p['b1']['w'] * p['b1']['s']                                # (3,3,C,C)
    wb2 = p['b2']['w'] * p['b2']['s']
    mb1 = _pack_banded_3x3(wb1, W_sp).astype(jnp.bfloat16)           # (3, W*C, W*C)
    mb2 = _pack_banded_3x3(wb2, W_sp).astype(jnp.bfloat16)
    tile = lambda v: jnp.tile(v, W_sp)                               # per-channel -> per-lane
    bias = jnp.stack([tile(p['c1']['b']), tile(p['b1']['b']),
                      tile(p['b2']['b'])], axis=0).astype(jnp.float32)
    return m1, mb1, mb2, bias


# ----------------------------------------------------------------------------
# Pure-JAX NCHW reference (mirrors the kernel's bf16 quantization points) for
# an in-script correctness check of the banded-matrix construction.
# ----------------------------------------------------------------------------
def recurrent_block_reference(x_nchw, p, t=2):
    bf = lambda a: a.astype(jnp.bfloat16).astype(jnp.float32)

    def conv(v, w_hwio, bias, relu):
        y = jax.lax.conv_general_dilated(
            bf(v), w_hwio, window_strides=(1, 1), padding='SAME',
            dimension_numbers=('NCHW', 'HWIO', 'NCHW'),
            precision=jax.lax.Precision.HIGHEST)
        y = y + bias[None, :, None, None]
        return jnp.maximum(y, 0.0) if relu else y

    w1 = bf(p['c1']['w'] * p['c1']['s'])
    wb1 = bf(p['b1']['w'] * p['b1']['s'])
    wb2 = bf(p['b2']['w'] * p['b2']['s'])

    out = conv(x_nchw, w1, p['c1']['b'], relu=False)
    x0 = out
    for i in range(t):
        if i == 0:
            out = conv(x0, wb1, p['b1']['b'], relu=True)
        out = conv(out + x0, wb1, p['b1']['b'], relu=True)
    x1 = out
    for i in range(t):
        if i == 0:
            out = conv(x1, wb2, p['b2']['b'], relu=True)
        out = conv(out + x1, wb2, p['b2']['b'], relu=True)
    return out


# ----------------------------------------------------------------------------
# Demo / self-check.
# ----------------------------------------------------------------------------
if __name__ == "__main__":
    key = jax.random.PRNGKey(0)
    kx, kp = jax.random.split(key)

    N, in_channels, out_channels, H, W, t = 2, 4, 16, 16, 16, 2

    x = jax.random.normal(kx, (N, in_channels, H, W), jnp.float32)
    raw_params = init_recurrent_block(kp, in_channels, out_channels)
    packed = pack_recurrent_block(raw_params, W)

    fwd = jax.jit(functools.partial(recurrent_block_forward, t=t))
    out = fwd(x, packed)
    jax.block_until_ready(out)

    assert out.shape == (N, out_channels, H, W), out.shape
    assert bool(jnp.isfinite(out).all())

    # Correctness check against a pure-JAX conv reference that uses the same
    # bf16-rounded weights/activations (so the only difference is f32
    # summation order inside the MXU).
    ref = recurrent_block_reference(x, raw_params, t=t)
    max_err = float(jnp.max(jnp.abs(out - ref)))
    assert max_err < 1e-2, f"max abs error vs reference: {max_err}"

    print("KERNEL_OK")
</pallas_src>

<mosaic_0001>
module attributes {stable_mosaic.version = 11 : i64} {
  func.func @kernel(%arg0: i32, %arg1: memref<1x16x64xbf16, #tpu.memory_space<vmem>>, %arg2: memref<64x256xbf16, #tpu.memory_space<vmem>>, %arg3: memref<3x256x256xbf16, #tpu.memory_space<vmem>>, %arg4: memref<3x256x256xbf16, #tpu.memory_space<vmem>>, %arg5: memref<3x256xf32, #tpu.memory_space<vmem>>, %arg6: memref<1x16x256xf32, #tpu.memory_space<vmem>>, %arg7: memref<18x256xf32, #tpu.memory_space<vmem>>) attributes {dimension_semantics = [#tpu.dimension_semantics<parallel>], iteration_bounds = array<i64: 2>, scalar_prefetch = 0 : i64, scratch_operands = 1 : i64, tpu.core_type = #tpu.core_type<tc>, window_params = [{transform_indices = @transform_0, window_bounds = array<i64: 1, 16, 64>}, {pipeline_mode = #tpu.pipeline_mode<synchronous>, transform_indices = @transform_1, window_bounds = array<i64: 64, 256>}, {pipeline_mode = #tpu.pipeline_mode<synchronous>, transform_indices = @transform_2, window_bounds = array<i64: 3, 256, 256>}, {pipeline_mode = #tpu.pipeline_mode<synchronous>, transform_indices = @transform_3, window_bounds = array<i64: 3, 256, 256>}, {pipeline_mode = #tpu.pipeline_mode<synchronous>, transform_indices = @transform_4, window_bounds = array<i64: 3, 256>}, {transform_indices = @transform_5, window_bounds = array<i64: 1, 16, 256>}]} {
    %cst = arith.constant 0.000000e+00 : f32
    %0 = vector.broadcast %cst : f32 to vector<1x256xf32>
    %c0 = arith.constant 0 : index
    %c0_0 = arith.constant 0 : index
    %1 = vector.load %arg7[%c0, %c0_0] : memref<18x256xf32, #tpu.memory_space<vmem>>, vector<1x256xf32>
    tpu.vector_store %arg7[%c0, %c0_0], %0 {strides = array<i32>} : memref<18x256xf32, #tpu.memory_space<vmem>>, vector<1x256xf32>,
    %c17 = arith.constant 17 : index
    %c0_1 = arith.constant 0 : index
    %2 = vector.load %arg7[%c17, %c0_1] : memref<18x256xf32, #tpu.memory_space<vmem>>, vector<1x256xf32>
    tpu.vector_store %arg7[%c17, %c0_1], %0 {strides = array<i32>} : memref<18x256xf32, #tpu.memory_space<vmem>>, vector<1x256xf32>,
    %c0_2 = arith.constant 0 : index
    %c0_3 = arith.constant 0 : index
    %3 = vector.load %arg5[%c0_2, %c0_3] : memref<3x256xf32, #tpu.memory_space<vmem>>, vector<3x256xf32>
    %4 = vector.extract_strided_slice %3 {offsets = [0, 0], sizes = [1, 256], strides = [1, 1]} : vector<3x256xf32> to vector<1x256xf32>
    %5 = vector.extract_strided_slice %3 {offsets = [1, 0], sizes = [1, 256], strides = [1, 1]} : vector<3x256xf32> to vector<1x256xf32>
    %6 = vector.extract_strided_slice %3 {offsets = [2, 0], sizes = [1, 256], strides = [1, 1]} : vector<3x256xf32> to vector<1x256xf32>
    %c0_4 = arith.constant 0 : index
    %c0_5 = arith.constant 0 : index
    %c0_6 = arith.constant 0 : index
    %7 = vector.load %arg1[%c0_4, %c0_5, %c0_6] : memref<1x16x64xbf16, #tpu.memory_space<vmem>>, vector<1x16x64xbf16>
    %8 = vector.shape_cast %7 : vector<1x16x64xbf16> to vector<16x64xbf16>
    %c0_7 = arith.constant 0 : index
    %c0_8 = arith.constant 0 : index
    %9 = vector.load %arg2[%c0_7, %c0_8] : memref<64x256xbf16, #tpu.memory_space<vmem>>, vector<64x256xbf16>
    %cst_9 = arith.constant dense<0.000000e+00> : vector<16x256xf32>
    %10 = tpu.matmul %8, %9, %cst_9 {dimension_numbers = #tpu.dot_dimension_numbers<[1], [0], [0], [1], [0, 0, 1, 1], [], []>} : vector<16x64xbf16>, vector<64x256xbf16>, vector<16x256xf32> -> vector<16x256xf32>
    %11 = vector.broadcast %4 : vector<1x256xf32> to vector<16x256xf32>
    %12 = arith.addf %10, %11 : vector<16x256xf32>
    %c1 = arith.constant 1 : index
    %c0_10 = arith.constant 0 : index
    %13 = vector.load %arg7[%c1, %c0_10] : memref<18x256xf32, #tpu.memory_space<vmem>>, vector<16x256xf32>
    tpu.vector_store %arg7[%c1, %c0_10], %12 {strides = array<i32>} : memref<18x256xf32, #tpu.memory_space<vmem>>, vector<16x256xf32>,
    %c0_11 = arith.constant 0 : index
    %c0_12 = arith.constant 0 : index
    %14 = vector.load %arg7[%c0_11, %c0_12] : memref<18x256xf32, #tpu.memory_space<vmem>>, vector<16x256xf32>
    %15 = arith.truncf %14 : vector<16x256xf32> to vector<16x256xbf16>
    %c0_13 = arith.constant 0 : index
    %c0_14 = arith.constant 0 : index
    %c0_15 = arith.constant 0 : index
    %16 = vector.load %arg3[%c0_13, %c0_14, %c0_15] : memref<3x256x256xbf16, #tpu.memory_space<vmem>>, vector<1x256x256xbf16>
    %17 = vector.shape_cast %16 : vector<1x256x256xbf16> to vector<256x256xbf16>
    %cst_16 = arith.constant dense<0.000000e+00> : vector<16x256xf32>
    %18 = tpu.matmul %15, %17, %cst_16 {dimension_numbers = #tpu.dot_dimension_numbers<[1], [0], [0], [1], [0, 0, 1, 1], [], []>} : vector<16x256xbf16>, vector<256x256xbf16>, vector<16x256xf32> -> vector<16x256xf32>
    %c1_17 = arith.constant 1 : index
    %c0_18 = arith.constant 0 : index
    %19 = vector.load %arg7[%c1_17, %c0_18] : memref<18x256xf32, #tpu.memory_space<vmem>>, vector<16x256xf32>
    %20 = arith.truncf %19 : vector<16x256xf32> to vector<16x256xbf16>
    %c1_19 = arith.constant 1 : index
    %c0_20 = arith.constant 0 : index
    %c0_21 = arith.constant 0 : index
    %21 = vector.load %arg3[%c1_19, %c0_20, %c0_21] : memref<3x256x256xbf16, #tpu.memory_space<vmem>>, vector<1x256x256xbf16>
    %22 = vector.shape_cast %21 : vector<1x256x256xbf16> to vector<256x256xbf16>
    %cst_22 = arith.constant dense<0.000000e+00> : vector<16x256xf32>
    %23 = tpu.matmul %20, %22, %cst_22 {dimension_numbers = #tpu.dot_dimension_numbers<[1], [0], [0], [1], [0, 0, 1, 1], [], []>} : vector<16x256xbf16>, vector<256x256xbf16>, vector<16x256xf32> -> vector<16x256xf32>
    %24 = arith.addf %18, %23 : vector<16x256xf32>
    %c2 = arith.constant 2 : index
    %c0_23 = arith.constant 0 : index
    %25 = vector.load %arg7[%c2, %c0_23] : memref<18x256xf32, #tpu.memory_space<vmem>>, vector<16x256xf32>
    %26 = arith.truncf %25 : vector<16x256xf32> to vector<16x256xbf16>
    %c2_24 = arith.constant 2 : index
    %c0_25 = arith.constant 0 : index
    %c0_26 = arith.constant 0 : index
    %27 = vector.load %arg3[%c2_24, %c0_25, %c0_26] : memref<3x256x256xbf16, #tpu.memory_space<vmem>>, vector<1x256x256xbf16>
    %28 = vector.shape_cast %27 : vector<1x256x256xbf16> to vector<256x256xbf16>
    %cst_27 = arith.constant dense<0.000000e+00> : vector<16x256xf32>
    %29 = tpu.matmul %26, %28, %cst_27 {dimension_numbers = #tpu.dot_dimension_numbers<[1], [0], [0], [1], [0, 0, 1, 1], [], []>} : vector<16x256xbf16>, vector<256x256xbf16>, vector<16x256xf32> -> vector<16x256xf32>
    %30 = arith.addf %24, %29 : vector<16x256xf32>
    %31 = vector.broadcast %5 : vector<1x256xf32> to vector<16x256xf32>
    %32 = arith.addf %30, %31 : vector<16x256xf32>
    %cst_28 = arith.constant 0.000000e+00 : f32
    %33 = vector.broadcast %cst_28 : f32 to vector<16x256xf32>
    %34 = arith.maximumf %32, %33 : vector<16x256xf32>
    %35 = arith.addf %34, %12 : vector<16x256xf32>
    %c1_29 = arith.constant 1 : index
    %c0_30 = arith.constant 0 : index
    %36 = vector.load %arg7[%c1_29, %c0_30] : memref<18x256xf32, #tpu.memory_space<vmem>>, vector<16x256xf32>
    tpu.vector_store %arg7[%c1_29, %c0_30], %35 {strides = array<i32>} : memref<18x256xf32, #tpu.memory_space<vmem>>, vector<16x256xf32>,
    %c0_31 = arith.constant 0 : index
    %c0_32 = arith.constant 0 : index
    %37 = vector.load %arg7[%c0_31, %c0_32] : memref<18x256xf32, #tpu.memory_space<vmem>>, vector<16x256xf32>
    %38 = arith.truncf %37 : vector<16x256xf32> to vector<16x256xbf16>
    %c0_33 = arith.constant 0 : index
    %c0_34 = arith.constant 0 : index
    %c0_35 = arith.constant 0 : index
    %39 = vector.load %arg3[%c0_33, %c0_34, %c0_35] : memref<3x256x256xbf16, #tpu.memory_space<vmem>>, vector<1x256x256xbf16>
    %40 = vector.shape_cast %39 : vector<1x256x256xbf16> to vector<256x256xbf16>
    %cst_36 = arith.constant dense<0.000000e+00> : vector<16x256xf32>
    %41 = tpu.matmul %38, %40, %cst_36 {dimension_numbers = #tpu.dot_dimension_numbers<[1], [0], [0], [1], [0, 0, 1, 1], [], []>} : vector<16x256xbf16>, vector<256x256xbf16>, vector<16x256xf32> -> vector<16x256xf32>
    %c1_37 = arith.constant 1 : index
    %c0_38 = arith.constant 0 : index
    %42 = vector.load %arg7[%c1_37, %c0_38] : memref<18x256xf32, #tpu.memory_space<vmem>>, vector<16x256xf32>
    %43 = arith.truncf %42 : vector<16x256xf32> to vector<16x256xbf16>
    %c1_39 = arith.constant 1 : index
    %c0_40 = arith.constant 0 : index
    %c0_41 = arith.constant 0 : index
    %44 = vector.load %arg3[%c1_39, %c0_40, %c0_41] : memref<3x256x256xbf16, #tpu.memory_space<vmem>>, vector<1x256x256xbf16>
    %45 = vector.shape_cast %44 : vector<1x256x256xbf16> to vector<256x256xbf16>
    %cst_42 = arith.constant dense<0.000000e+00> : vector<16x256xf32>
    %46 = tpu.matmul %43, %45, %cst_42 {dimension_numbers = #tpu.dot_dimension_numbers<[1], [0], [0], [1], [0, 0, 1, 1], [], []>} : vector<16x256xbf16>, vector<256x256xbf16>, vector<16x256xf32> -> vector<16x256xf32>
    %47 = arith.addf %41, %46 : vector<16x256xf32>
    %c2_43 = arith.constant 2 : index
    %c0_44 = arith.constant 0 : index
    %48 = vector.load %arg7[%c2_43, %c0_44] : memref<18x256xf32, #tpu.memory_space<vmem>>, vector<16x256xf32>
    %49 = arith.truncf %48 : vector<16x256xf32> to vector<16x256xbf16>
    %c2_45 = arith.constant 2 : index
    %c0_46 = arith.constant 0 : index
    %c0_47 = arith.constant 0 : index
    %50 = vector.load %arg3[%c2_45, %c0_46, %c0_47] : memref<3x256x256xbf16, #tpu.memory_space<vmem>>, vector<1x256x256xbf16>
    %51 = vector.shape_cast %50 : vector<1x256x256xbf16> to vector<256x256xbf16>
    %cst_48 = arith.constant dense<0.000000e+00> : vector<16x256xf32>
    %52 = tpu.matmul %49, %51, %cst_48 {dimension_numbers = #tpu.dot_dimension_numbers<[1], [0], [0], [1], [0, 0, 1, 1], [], []>} : vector<16x256xbf16>, vector<256x256xbf16>, vector<16x256xf32> -> vector<16x256xf32>
    %53 = arith.addf %47, %52 : vector<16x256xf32>
    %54 = vector.broadcast %5 : vector<1x256xf32> to vector<16x256xf32>
    %55 = arith.addf %53, %54 : vector<16x256xf32>
    %cst_49 = arith.constant 0.000000e+00 : f32
    %56 = vector.broadcast %cst_49 : f32 to vector<16x256xf32>
    %57 = arith.maximumf %55, %56 : vector<16x256xf32>
    %58 = arith.addf %57, %12 : vector<16x256xf32>
    %c1_50 = arith.constant 1 : index
    %c0_51 = arith.constant 0 : index
    %59 = vector.load %arg7[%c1_50, %c0_51] : memref<18x256xf32, #tpu.memory_space<vmem>>, vector<16x256xf32>
    tpu.vector_store %arg7[%c1_50, %c0_51], %58 {strides = array<i32>} : memref<18x256xf32, #tpu.memory_space<vmem>>, vector<16x256xf32>,
    %c0_52 = arith.constant 0 : index
    %c0_53 = arith.constant 0 : index
    %60 = vector.load %arg7[%c0_52, %c0_53] : memref<18x256xf32, #tpu.memory_space<vmem>>, vector<16x256xf32>
    %61 = arith.truncf %60 : vector<16x256xf32> to vector<16x256xbf16>
    %c0_54 = arith.constant 0 : index
    %c0_55 = arith.constant 0 : index
    %c0_56 = arith.constant 0 : index
    %62 = vector.load %arg3[%c0_54, %c0_55, %c0_56] : memref<3x256x256xbf16, #tpu.memory_space<vmem>>, vector<1x256x256xbf16>
    %63 = vector.shape_cast %62 : vector<1x256x256xbf16> to vector<256x256xbf16>
    %cst_57 = arith.constant dense<0.000000e+00> : vector<16x256xf32>
    %64 = tpu.matmul %61, %63, %cst_57 {dimension_numbers = #tpu.dot_dimension_numbers<[1], [0], [0], [1], [0, 0, 1, 1], [], []>} : vector<16x256xbf16>, vector<256x256xbf16>, vector<16x256xf32> -> vector<16x256xf32>
    %c1_58 = arith.constant 1 : index
    %c0_59 = arith.constant 0 : index
    %65 = vector.load %arg7[%c1_58, %c0_59] : memref<18x256xf32, #tpu.memory_space<vmem>>, vector<16x256xf32>
    %66 = arith.truncf %65 : vector<16x256xf32> to vector<16x256xbf16>
    %c1_60 = arith.constant 1 : index
    %c0_61 = arith.constant 0 : index
    %c0_62 = arith.constant 0 : index
    %67 = vector.load %arg3[%c1_60, %c0_61, %c0_62] : memref<3x256x256xbf16, #tpu.memory_space<vmem>>, vector<1x256x256xbf16>
    %68 = vector.shape_cast %67 : vector<1x256x256xbf16> to vector<256x256xbf16>
    %cst_63 = arith.constant dense<0.000000e+00> : vector<16x256xf32>
    %69 = tpu.matmul %66, %68, %cst_63 {dimension_numbers = #tpu.dot_dimension_numbers<[1], [0], [0], [1], [0, 0, 1, 1], [], []>} : vector<16x256xbf16>, vector<256x256xbf16>, vector<16x256xf32> -> vector<16x256xf32>
    %70 = arith.addf %64, %69 : vector<16x256xf32>
    %c2_64 = arith.constant 2 : index
    %c0_65 = arith.constant 0 : index
    %71 = vector.load %arg7[%c2_64, %c0_65] : memref<18x256xf32, #tpu.memory_space<vmem>>, vector<16x256xf32>
    %72 = arith.truncf %71 : vector<16x256xf32> to vector<16x256xbf16>
    %c2_66 = arith.constant 2 : index
    %c0_67 = arith.constant 0 : index
    %c0_68 = arith.constant 0 : index
    %73 = vector.load %arg3[%c2_66, %c0_67, %c0_68] : memref<3x256x256xbf16, #tpu.memory_space<vmem>>, vector<1x256x256xbf16>
    %74 = vector.shape_cast %73 : vector<1x256x256xbf16> to vector<256x256xbf16>
    %cst_69 = arith.constant dense<0.000000e+00> : vector<16x256xf32>
    %75 = tpu.matmul %72, %74, %cst_69 {dimension_numbers = #tpu.dot_dimension_numbers<[1], [0], [0], [1], [0, 0, 1, 1], [], []>} : vector<16x256xbf16>, vector<256x256xbf16>, vector<16x256xf32> -> vector<16x256xf32>
    %76 = arith.addf %70, %75 : vector<16x256xf32>
    %77 = vector.broadcast %5 : vector<1x256xf32> to vector<16x256xf32>
    %78 = arith.addf %76, %77 : vector<16x256xf32>
    %cst_70 = arith.constant 0.000000e+00 : f32
    %79 = vector.broadcast %cst_70 : f32 to vector<16x256xf32>
    %80 = arith.maximumf %78, %79 : vector<16x256xf32>
    %c1_71 = arith.constant 1 : index
    %c0_72 = arith.constant 0 : index
    %81 = vector.load %arg7[%c1_71, %c0_72] : memref<18x256xf32, #tpu.memory_space<vmem>>, vector<16x256xf32>
    tpu.vector_store %arg7[%c1_71, %c0_72], %80 {strides = array<i32>} : memref<18x256xf32, #tpu.memory_space<vmem>>, vector<16x256xf32>,
    %c0_73 = arith.constant 0 : index
    %c0_74 = arith.constant 0 : index
    %82 = vector.load %arg7[%c0_73, %c0_74] : memref<18x256xf32, #tpu.memory_space<vmem>>, vector<16x256xf32>
    %83 = arith.truncf %82 : vector<16x256xf32> to vector<16x256xbf16>
    %c0_75 = arith.constant 0 : index
    %c0_76 = arith.constant 0 : index
    %c0_77 = arith.constant 0 : index
    %84 = vector.load %arg4[%c0_75, %c0_76, %c0_77] : memref<3x256x256xbf16, #tpu.memory_space<vmem>>, vector<1x256x256xbf16>
    %85 = vector.shape_cast %84 : vector<1x256x256xbf16> to vector<256x256xbf16>
    %cst_78 = arith.constant dense<0.000000e+00> : vector<16x256xf32>
    %86 = tpu.matmul %83, %85, %cst_78 {dimension_numbers = #tpu.dot_dimension_numbers<[1], [0], [0], [1], [0, 0, 1, 1], [], []>} : vector<16x256xbf16>, vector<256x256xbf16>, vector<16x256xf32> -> vector<16x256xf32>
    %c1_79 = arith.constant 1 : index
    %c0_80 = arith.constant 0 : index
    %87 = vector.load %arg7[%c1_79, %c0_80] : memref<18x256xf32, #tpu.memory_space<vmem>>, vector<16x256xf32>
    %88 = arith.truncf %87 : vector<16x256xf32> to vector<16x256xbf16>
    %c1_81 = arith.constant 1 : index
    %c0_82 = arith.constant 0 : index
    %c0_83 = arith.constant 0 : index
    %89 = vector.load %arg4[%c1_81, %c0_82, %c0_83] : memref<3x256x256xbf16, #tpu.memory_space<vmem>>, vector<1x256x256xbf16>
    %90 = vector.shape_cast %89 : vector<1x256x256xbf16> to vector<256x256xbf16>
    %cst_84 = arith.constant dense<0.000000e+00> : vector<16x256xf32>
    %91 = tpu.matmul %88, %90, %cst_84 {dimension_numbers = #tpu.dot_dimension_numbers<[1], [0], [0], [1], [0, 0, 1, 1], [], []>} : vector<16x256xbf16>, vector<256x256xbf16>, vector<16x256xf32> -> vector<16x256xf32>
    %92 = arith.addf %86, %91 : vector<16x256xf32>
    %c2_85 = arith.constant 2 : index
    %c0_86 = arith.constant 0 : index
    %93 = vector.load %arg7[%c2_85, %c0_86] : memref<18x256xf32, #tpu.memory_space<vmem>>, vector<16x256xf32>
    %94 = arith.truncf %93 : vector<16x256xf32> to vector<16x256xbf16>
    %c2_87 = arith.constant 2 : index
    %c0_88 = arith.constant 0 : index
    %c0_89 = arith.constant 0 : index
    %95 = vector.load %arg4[%c2_87, %c0_88, %c0_89] : memref<3x256x256xbf16, #tpu.memory_space<vmem>>, vector<1x256x256xbf16>
    %96 = vector.shape_cast %95 : vector<1x256x256xbf16> to vector<256x256xbf16>
    %cst_90 = arith.constant dense<0.000000e+00> : vector<16x256xf32>
    %97 = tpu.matmul %94, %96, %cst_90 {dimension_numbers = #tpu.dot_dimension_numbers<[1], [0], [0], [1], [0, 0, 1, 1], [], []>} : vector<16x256xbf16>, vector<256x256xbf16>, vector<16x256xf32> -> vector<16x256xf32>
    %98 = arith.addf %92, %97 : vector<16x256xf32>
    %99 = vector.broadcast %6 : vector<1x256xf32> to vector<16x256xf32>
    %100 = arith.addf %98, %99 : vector<16x256xf32>
    %cst_91 = arith.constant 0.000000e+00 : f32
    %101 = vector.broadcast %cst_91 : f32 to vector<16x256xf32>
    %102 = arith.maximumf %100, %101 : vector<16x256xf32>
    %103 = arith.addf %102, %80 : vector<16x256xf32>
    %c1_92 = arith.constant 1 : index
    %c0_93 = arith.constant 0 : index
    %104 = vector.load %arg7[%c1_92, %c0_93] : memref<18x256xf32, #tpu.memory_space<vmem>>, vector<16x256xf32>
    tpu.vector_store %arg7[%c1_92, %c0_93], %103 {strides = array<i32>} : memref<18x256xf32, #tpu.memory_space<vmem>>, vector<16x256xf32>,
    %c0_94 = arith.constant 0 : index
    %c0_95 = arith.constant 0 : index
    %105 = vector.load %arg7[%c0_94, %c0_95] : memref<18x256xf32, #tpu.memory_space<vmem>>, vector<16x256xf32>
    %106 = arith.truncf %105 : vector<16x256xf32> to vector<16x256xbf16>
    %c0_96 = arith.constant 0 : index
    %c0_97 = arith.constant 0 : index
    %c0_98 = arith.constant 0 : index
    %107 = vector.load %arg4[%c0_96, %c0_97, %c0_98] : memref<3x256x256xbf16, #tpu.memory_space<vmem>>, vector<1x256x256xbf16>
    %108 = vector.shape_cast %107 : vector<1x256x256xbf16> to vector<256x256xbf16>
    %cst_99 = arith.constant dense<0.000000e+00> : vector<16x256xf32>
    %109 = tpu.matmul %106, %108, %cst_99 {dimension_numbers = #tpu.dot_dimension_numbers<[1], [0], [0], [1], [0, 0, 1, 1], [], []>} : vector<16x256xbf16>, vector<256x256xbf16>, vector<16x256xf32> -> vector<16x256xf32>
    %c1_100 = arith.constant 1 : index
    %c0_101 = arith.constant 0 : index
    %110 = vector.load %arg7[%c1_100, %c0_101] : memref<18x256xf32, #tpu.memory_space<vmem>>, vector<16x256xf32>
    %111 = arith.truncf %110 : vector<16x256xf32> to vector<16x256xbf16>
    %c1_102 = arith.constant 1 : index
    %c0_103 = arith.constant 0 : index
    %c0_104 = arith.constant 0 : index
    %112 = vector.load %arg4[%c1_102, %c0_103, %c0_104] : memref<3x256x256xbf16, #tpu.memory_space<vmem>>, vector<1x256x256xbf16>
    %113 = vector.shape_cast %112 : vector<1x256x256xbf16> to vector<256x256xbf16>
    %cst_105 = arith.constant dense<0.000000e+00> : vector<16x256xf32>
    %114 = tpu.matmul %111, %113, %cst_105 {dimension_numbers = #tpu.dot_dimension_numbers<[1], [0], [0], [1], [0, 0, 1, 1], [], []>} : vector<16x256xbf16>, vector<256x256xbf16>, vector<16x256xf32> -> vector<16x256xf32>
    %115 = arith.addf %109, %114 : vector<16x256xf32>
    %c2_106 = arith.constant 2 : index
    %c0_107 = arith.constant 0 : index
    %116 = vector.load %arg7[%c2_106, %c0_107] : memref<18x256xf32, #tpu.memory_space<vmem>>, vector<16x256xf32>
    %117 = arith.truncf %116 : vector<16x256xf32> to vector<16x256xbf16>
    %c2_108 = arith.constant 2 : index
    %c0_109 = arith.constant 0 : index
    %c0_110 = arith.constant 0 : index
    %118 = vector.load %arg4[%c2_108, %c0_109, %c0_110] : memref<3x256x256xbf16, #tpu.memory_space<vmem>>, vector<1x256x256xbf16>
    %119 = vector.shape_cast %118 : vector<1x256x256xbf16> to vector<256x256xbf16>
    %cst_111 = arith.constant dense<0.000000e+00> : vector<16x256xf32>
    %120 = tpu.matmul %117, %119, %cst_111 {dimension_numbers = #tpu.dot_dimension_numbers<[1], [0], [0], [1], [0, 0, 1, 1], [], []>} : vector<16x256xbf16>, vector<256x256xbf16>, vector<16x256xf32> -> vector<16x256xf32>
    %121 = arith.addf %115, %120 : vector<16x256xf32>
    %122 = vector.broadcast %6 : vector<1x256xf32> to vector<16x256xf32>
    %123 = arith.addf %121, %122 : vector<16x256xf32>
    %cst_112 = arith.constant 0.000000e+00 : f32
    %124 = vector.broadcast %cst_112 : f32 to vector<16x256xf32>
    %125 = arith.maximumf %123, %124 : vector<16x256xf32>
    %126 = arith.addf %125, %80 : vector<16x256xf32>
    %c1_113 = arith.constant 1 : index
    %c0_114 = arith.constant 0 : index
    %127 = vector.load %arg7[%c1_113, %c0_114] : memref<18x256xf32, #tpu.memory_space<vmem>>, vector<16x256xf32>
    tpu.vector_store %arg7[%c1_113, %c0_114], %126 {strides = array<i32>} : memref<18x256xf32, #tpu.memory_space<vmem>>, vector<16x256xf32>,
    %c0_115 = arith.constant 0 : index
    %c0_116 = arith.constant 0 : index
    %128 = vector.load %arg7[%c0_115, %c0_116] : memref<18x256xf32, #tpu.memory_space<vmem>>, vector<16x256xf32>
    %129 = arith.truncf %128 : vector<16x256xf32> to vector<16x256xbf16>
    %c0_117 = arith.constant 0 : index
    %c0_118 = arith.constant 0 : index
    %c0_119 = arith.constant 0 : index
    %130 = vector.load %arg4[%c0_117, %c0_118, %c0_119] : memref<3x256x256xbf16, #tpu.memory_space<vmem>>, vector<1x256x256xbf16>
    %131 = vector.shape_cast %130 : vector<1x256x256xbf16> to vector<256x256xbf16>
    %cst_120 = arith.constant dense<0.000000e+00> : vector<16x256xf32>
    %132 = tpu.matmul %129, %131, %cst_120 {dimension_numbers = #tpu.dot_dimension_numbers<[1], [0], [0], [1], [0, 0, 1, 1], [], []>} : vector<16x256xbf16>, vector<256x256xbf16>, vector<16x256xf32> -> vector<16x256xf32>
    %c1_121 = arith.constant 1 : index
    %c0_122 = arith.constant 0 : index
    %133 = vector.load %arg7[%c1_121, %c0_122] : memref<18x256xf32, #tpu.memory_space<vmem>>, vector<16x256xf32>
    %134 = arith.truncf %133 : vector<16x256xf32> to vector<16x256xbf16>
    %c1_123 = arith.constant 1 : index
    %c0_124 = arith.constant 0 : index
    %c0_125 = arith.constant 0 : index
    %135 = vector.load %arg4[%c1_123, %c0_124, %c0_125] : memref<3x256x256xbf16, #tpu.memory_space<vmem>>, vector<1x256x256xbf16>
    %136 = vector.shape_cast %135 : vector<1x256x256xbf16> to vector<256x256xbf16>
    %cst_126 = arith.constant dense<0.000000e+00> : vector<16x256xf32>
    %137 = tpu.matmul %134, %136, %cst_126 {dimension_numbers = #tpu.dot_dimension_numbers<[1], [0], [0], [1], [0, 0, 1, 1], [], []>} : vector<16x256xbf16>, vector<256x256xbf16>, vector<16x256xf32> -> vector<16x256xf32>
    %138 = arith.addf %132, %137 : vector<16x256xf32>
    %c2_127 = arith.constant 2 : index
    %c0_128 = arith.constant 0 : index
    %139 = vector.load %arg7[%c2_127, %c0_128] : memref<18x256xf32, #tpu.memory_space<vmem>>, vector<16x256xf32>
    %140 = arith.truncf %139 : vector<16x256xf32> to vector<16x256xbf16>
    %c2_129 = arith.constant 2 : index
    %c0_130 = arith.constant 0 : index
    %c0_131 = arith.constant 0 : index
    %141 = vector.load %arg4[%c2_129, %c0_130, %c0_131] : memref<3x256x256xbf16, #tpu.memory_space<vmem>>, vector<1x256x256xbf16>
    %142 = vector.shape_cast %141 : vector<1x256x256xbf16> to vector<256x256xbf16>
    %cst_132 = arith.constant dense<0.000000e+00> : vector<16x256xf32>
    %143 = tpu.matmul %140, %142, %cst_132 {dimension_numbers = #tpu.dot_dimension_numbers<[1], [0], [0], [1], [0, 0, 1, 1], [], []>} : vector<16x256xbf16>, vector<256x256xbf16>, vector<16x256xf32> -> vector<16x256xf32>
    %144 = arith.addf %138, %143 : vector<16x256xf32>
    %145 = vector.broadcast %6 : vector<1x256xf32> to vector<16x256xf32>
    %146 = arith.addf %144, %145 : vector<16x256xf32>
    %cst_133 = arith.constant 0.000000e+00 : f32
    %147 = vector.broadcast %cst_133 : f32 to vector<16x256xf32>
    %148 = arith.maximumf %146, %147 : vector<16x256xf32>
    %c0_134 = arith.constant 0 : index
    %c0_135 = arith.constant 0 : index
    %c0_136 = arith.constant 0 : index
    %149 = vector.load %arg6[%c0_134, %c0_135, %c0_136] : memref<1x16x256xf32, #tpu.memory_space<vmem>>, vector<1x16x256xf32>
    %150 = vector.shape_cast %149 : vector<1x16x256xf32> to vector<16x256xf32>
    %151 = vector.shape_cast %148 : vector<16x256xf32> to vector<1x16x256xf32>
    tpu.vector_store %arg6[%c0_134, %c0_135, %c0_136], %151 {strides = array<i32>} : memref<1x16x256xf32, #tpu.memory_space<vmem>>, vector<1x16x256xf32>,
    return
  }
  func.func @transform_0(%arg0: i32) -> (i32, i32, i32) {
    %c0_i32 = arith.constant 0 : i32
    %c0_i32_0 = arith.constant 0 : i32
    %c0_i32_1 = arith.constant 0 : i32
    return %arg0, %c0_i32, %c0_i32_0 : i32, i32, i32
  }
  func.func @transform_1(%arg0: i32) -> (i32, i32) {
    %c0_i32 = arith.constant 0 : i32
    %c0_i32_0 = arith.constant 0 : i32
    %c0_i32_1 = arith.constant 0 : i32
    return %c0_i32, %c0_i32_0 : i32, i32
  }
  func.func @transform_2(%arg0: i32) -> (i32, i32, i32) {
    %c0_i32 = arith.constant 0 : i32
    %c0_i32_0 = arith.constant 0 : i32
    %c0_i32_1 = arith.constant 0 : i32
    %c0_i32_2 = arith.constant 0 : i32
    return %c0_i32, %c0_i32_0, %c0_i32_1 : i32, i32, i32
  }
  func.func @transform_3(%arg0: i32) -> (i32, i32, i32) {
    %c0_i32 = arith.constant 0 : i32
    %c0_i32_0 = arith.constant 0 : i32
    %c0_i32_1 = arith.constant 0 : i32
    %c0_i32_2 = arith.constant 0 : i32
    return %c0_i32, %c0_i32_0, %c0_i32_1 : i32, i32, i32
  }
  func.func @transform_4(%arg0: i32) -> (i32, i32) {
    %c0_i32 = arith.constant 0 : i32
    %c0_i32_0 = arith.constant 0 : i32
    %c0_i32_1 = arith.constant 0 : i32
    return %c0_i32, %c0_i32_0 : i32, i32
  }
  func.func @transform_5(%arg0: i32) -> (i32, i32, i32) {
    %c0_i32 = arith.constant 0 : i32
    %c0_i32_0 = arith.constant 0 : i32
    %c0_i32_1 = arith.constant 0 : i32
    return %arg0, %c0_i32, %c0_i32_0 : i32, i32, i32
  }
}

</mosaic_0001>

<llo_original>
// kernel: recurrent_block_forward.1
$region0: #{recurrent_block_forward.1}
  #allocation0 [shape = 'u32[]', space=smem, size = 0x4, offset = 0x4, fixed_abs, tag = 'smem constant byte address 0x4 - core index']
  #allocation1 [shape = 'u32[144,128]{1,0:T(1,128)}', space=vmem, size = 0x12000, scoped, tag = 'internal scratch']
  #allocation2 [shape = 'f32[18,256]{1,0:T(8,128)}', space=vmem, size = 0x6000, scoped, tag = 'scratch operand']
  %s0 = inlined_call_operand.vmem [shape: bf16[2,16,64], index: 0, kind: input, shape index: {}]
  %s1 = inlined_call_operand.vmem [shape: bf16[64,256], index: 1, kind: input, shape index: {}]
  %s2 = inlined_call_operand.hbm [shape: bf16[3,256,256], index: 2, kind: input, shape index: {}]
  %s3 = inlined_call_operand.hbm [shape: bf16[3,256,256], index: 3, kind: input, shape index: {}]
  %s4 = inlined_call_operand.vmem [shape: f32[3,256], index: 4, kind: input, shape index: {}]
  %s5 = inlined_call_operand.vmem [shape: f32[2,16,256], index: 5, kind: output, shape index: {}]
  %s6 = sld [smem:[#allocation0]]
  $region61: #{recurrent_block_forward.1} parent=0
    _
  %s8 = ssub.s32 1, %s6
  %s9 = scalar_select 0, %s8, %s6
  $region1: #{recurrent_block_forward.1} parent=0
    #allocation3 [shape = 'u8[393216]{0}', space=vmem, size = 0x60000, scoped, tag = 'input window, operand 2, single buffered']
    #allocation4 [shape = 's32[2]{0}', space=sflag, size = 0x8, scoped, tag = 'scoped memory for recurrent_block_forward.1']
    #allocation5 [shape = 'u8[393216]{0}', space=vmem, size = 0x60000, scoped, tag = 'input window, operand 3, single buffered']
    #allocation6 [shape = 's32[1]{0}', space=sflag, size = 0x4, scoped, tag = 'scoped memory for recurrent_block_forward.1']
    %10 = vsyncpa [#allocation4], 0
    %11 = vsyncpa [#allocation6], 0
    loop: start=0, step=1, limit=4
    $region2: #{recurrent_block_forward.1} parent=1 // loop_pre_header
      _
    $region3: #{recurrent_block_forward.1} parent=1 // loop_header
      %s13 = sphi 0, %s17
      %p14 = scmp.ge.s32.totalorder %s13, 4
      %s23 = sphi 0, %s25
      %s26 = sphi 0, %s23
      %s27 = sphi 0, %s26
      %s43 = sphi 0, %s27
      %s47 = sphi 0, %s47
      %s49 = sphi 0, %s47
      %s50 = sphi 0, %s49
      %s64 = sphi 0, %s50
      %s68 = sphi 0, %s68
      %s70 = sphi 0, %s68
      %s71 = sphi 0, %s70
      %s85 = sphi 0, %s71
      %s89 = sphi 0, %s89
      %s91 = sphi 0, %s89
      %s92 = sphi 0, %s91
      %s106 = sphi 0, %s92
      %s110 = sphi 0, %s110
      %s112 = sphi 0, %s110
      %s113 = sphi 0, %s112
      %s127 = sphi 0, %s113
      %s133 = sphi 0, %s135
      %s136 = sphi 0, %s133
      %s137 = sphi 0, %s136
      %s153 = sphi 0, %s137
    $region4: #{recurrent_block_forward.1} parent=1 // loop_header_branch
      %16 = sbr.rel (%p14) target = $region8
    $region5: #{recurrent_block_forward.1} parent=1 // loop_body
      %s18 = ssub.s32 %s13, 1
      %s19 = ssub.s32 %s13, 2
      %s20 = sadd.s32 %s13, 1
      %s21 = ssub.s32 %s13, %s20
      %p22 = scmp.eq.s32.totalorder %s21, 0
      %s24 = sadd.s32 %s23, 1
      %s25 = scalar_select %p22, %s23, %s24
      %p28 = pneg %p22
      %p29 = scmp.eq.s32.totalorder %s13, 1
      %p30 = por %p28, %p29
      %p31 = scmp.ne.s32.totalorder %s23, %s26
      %p32 = scmp.eq.s32.totalorder %s13, 0
      %p33 = por %p31, %p32
      %p34 = scmp.ne.s32.totalorder %s23, %s26
      %p35 = scmp.eq.s32.totalorder %s18, 1
      %p36 = por %p34, %p35
      %p37 = scmp.ne.s32.totalorder %s26, %s27
      %p38 = scmp.eq.s32.totalorder %s18, 0
      %p39 = por %p37, %p38
      %p40 = scmp.ne.s32.totalorder %s26, %s27
      %p41 = scmp.eq.s32.totalorder %s19, 1
      %p42 = por %p40, %p41
      %p44 = scmp.ne.s32.totalorder %s27, %s43
      %p45 = scmp.eq.s32.totalorder %s19, 0
      %p46 = por %p44, %p45
      %s48 = sadd.s32 %s47, 1
      %p51 = scmp.eq.s32.totalorder %s13, 1
      %p52 = scmp.ne.s32.totalorder %s47, %s49
      %p53 = scmp.eq.s32.totalorder %s13, 0
      %p54 = por %p52, %p53
      %p55 = scmp.ne.s32.totalorder %s47, %s49
      %p56 = scmp.eq.s32.totalorder %s18, 1
      %p57 = por %p55, %p56
      %p58 = scmp.ne.s32.totalorder %s49, %s50
      %p59 = scmp.eq.s32.totalorder %s18, 0
      %p60 = por %p58, %p59
      %p61 = scmp.ne.s32.totalorder %s49, %s50
      %p62 = scmp.eq.s32.totalorder %s19, 1
      %p63 = por %p61, %p62
      %p65 = scmp.ne.s32.totalorder %s50, %s64
      %p66 = scmp.eq.s32.totalorder %s19, 0
      %p67 = por %p65, %p66
      %s69 = sadd.s32 %s68, 1
      %p72 = scmp.eq.s32.totalorder %s13, 1
      %p73 = scmp.ne.s32.totalorder %s68, %s70
      %p74 = scmp.eq.s32.totalorder %s13, 0
      %p75 = por %p73, %p74
      %p76 = scmp.ne.s32.totalorder %s68, %s70
      %p77 = scmp.eq.s32.totalorder %s18, 1
      %p78 = por %p76, %p77
      %p79 = scmp.ne.s32.totalorder %s70, %s71
      %p80 = scmp.eq.s32.totalorder %s18, 0
      %p81 = por %p79, %p80
      %p82 = scmp.ne.s32.totalorder %s70, %s71
      %p83 = scmp.eq.s32.totalorder %s19, 1
      %p84 = por %p82, %p83
      %p86 = scmp.ne.s32.totalorder %s71, %s85
      %p87 = scmp.eq.s32.totalorder %s19, 0
      %p88 = por %p86, %p87
      %s90 = sadd.s32 %s89, 1
      %p93 = scmp.eq.s32.totalorder %s13, 1
      %p94 = scmp.ne.s32.totalorder %s89, %s91
      %p95 = scmp.eq.s32.totalorder %s13, 0
      %p96 = por %p94, %p95
      %p97 = scmp.ne.s32.totalorder %s89, %s91
      %p98 = scmp.eq.s32.totalorder %s18, 1
      %p99 = por %p97, %p98
      %p100 = scmp.ne.s32.totalorder %s91, %s92
      %p101 = scmp.eq.s32.totalorder %s18, 0
      %p102 = por %p100, %p101
      %p103 = scmp.ne.s32.totalorder %s91, %s92
      %p104 = scmp.eq.s32.totalorder %s19, 1
      %p105 = por %p103, %p104
      %p107 = scmp.ne.s32.totalorder %s92, %s106
      %p108 = scmp.eq.s32.totalorder %s19, 0
      %p109 = por %p107, %p108
      %s111 = sadd.s32 %s110, 1
      %p114 = scmp.eq.s32.totalorder %s13, 1
      %p115 = scmp.ne.s32.totalorder %s110, %s112
      %p116 = scmp.eq.s32.totalorder %s13, 0
      %p117 = por %p115, %p116
      %p118 = scmp.ne.s32.totalorder %s110, %s112
      %p119 = scmp.eq.s32.totalorder %s18, 1
      %p120 = por %p118, %p119
      %p121 = scmp.ne.s32.totalorder %s112, %s113
      %p122 = scmp.eq.s32.totalorder %s18, 0
      %p123 = por %p121, %p122
      %p124 = scmp.ne.s32.totalorder %s112, %s113
      %p125 = scmp.eq.s32.totalorder %s19, 1
      %p126 = por %p124, %p125
      %p128 = scmp.ne.s32.totalorder %s113, %s127
      %p129 = scmp.eq.s32.totalorder %s19, 0
      %p130 = por %p128, %p129
      %s131 = ssub.s32 %s13, %s20
      %p132 = scmp.eq.s32.totalorder %s131, 0
      %s134 = sadd.s32 %s133, 1
      %s135 = scalar_select %p132, %s133, %s134
      %p138 = pneg %p132
      %p139 = scmp.eq.s32.totalorder %s13, 1
      %p140 = por %p138, %p139
      %p141 = scmp.ne.s32.totalorder %s133, %s136
      %p142 = scmp.eq.s32.totalorder %s13, 0
      %p143 = por %p141, %p142
      %p144 = scmp.ne.s32.totalorder %s133, %s136
      %p145 = scmp.eq.s32.totalorder %s18, 1
      %p146 = por %p144, %p145
      %p147 = scmp.ne.s32.totalorder %s136, %s137
      %p148 = scmp.eq.s32.totalorder %s18, 0
      %p149 = por %p147, %p148
      %p150 = scmp.ne.s32.totalorder %s136, %s137
      %p151 = scmp.eq.s32.totalorder %s19, 1
      %p152 = por %p150, %p151
      %p154 = scmp.ne.s32.totalorder %s137, %s153
      %p155 = scmp.eq.s32.totalorder %s19, 0
      %p156 = por %p154, %p155
      %p157 = scmp.le.s32.totalorder 1, %s13
      %p158 = scmp.lt.s32.totalorder %s13, 3
      %p159 = pnand %p157, %p158
      %p160 = pneg %p159
      // Predicated region
      $region9: #{recurrent_block_forward.1} parent=5 // pred_check
        _
      $region10: #{recurrent_block_forward.1} parent=5 // pred_check_branch
        %162 = sbr.rel (%p159) target = $region12
      $region11: #{recurrent_block_forward.1} parent=5 // pred_region
        %s163 = ssub.s32 %s13, 1
        // Predicated region
        $region13: #{recurrent_block_forward.1} parent=11 // pred_check
          %p164 = pneg %p60
        $region14: #{recurrent_block_forward.1} parent=11 // pred_check_branch
          %166 = sbr.rel (%p164) target = $region16
        $region15: #{recurrent_block_forward.1} parent=11 // pred_region
          _
        $region16: #{recurrent_block_forward.1} parent=11 // pred_fallthru
          _
        // Predicated region
        $region17: #{recurrent_block_forward.1} parent=11 // pred_check
          %p167 = pneg %p81
        $region18: #{recurrent_block_forward.1} parent=11 // pred_check_branch
          %169 = sbr.rel (%p167) target = $region20
        $region19: #{recurrent_block_forward.1} parent=11 // pred_region
          %s171 = ssub.s32 12288, 12288
          %172 = vsyncadd [#allocation4], %s171
          %s173 = sshll.u32 [#allocation3], 4
          %s174 = int_to_ptr.vmem [resolvable:$true] %s173
          %179 = dma.hbm_to_vmem [thread:$0]  %s2, 12288, %s174, [#allocation4], 128, 128, 8
        $region20: #{recurrent_block_forward.1} parent=11 // pred_fallthru
          _
        // Predicated region
        $region21: #{recurrent_block_forward.1} parent=11 // pred_check
          %p180 = pneg %p102
        $region22: #{recurrent_block_forward.1} parent=11 // pred_check_branch
          %182 = sbr.rel (%p180) target = $region24
        $region23: #{recurrent_block_forward.1} parent=11 // pred_region
          %s184 = ssub.s32 12288, 12288
          %185 = vsyncadd [#allocation6], %s184
          %s186 = sshll.u32 [#allocation5], 4
          %s187 = int_to_ptr.vmem [resolvable:$true] %s186
          %192 = dma.hbm_to_vmem [thread:$0]  %s3, 12288, %s187, [#allocation6], 128, 128, 8
        $region24: #{recurrent_block_forward.1} parent=11 // pred_fallthru
          _
        // Predicated region
        $region25: #{recurrent_block_forward.1} parent=11 // pred_check
          %p193 = pneg %p123
        $region26: #{recurrent_block_forward.1} parent=11 // pred_check_branch
          %195 = sbr.rel (%p193) target = $region28
        $region27: #{recurrent_block_forward.1} parent=11 // pred_region
          _
        $region28: #{recurrent_block_forward.1} parent=11 // pred_fallthru
          _
      $region12: #{recurrent_block_forward.1} parent=5 // pred_fallthru
        _
      %p196 = scmp.lt.s32.totalorder %s13, 2
      // Predicated region
      $region29: #{recurrent_block_forward.1} parent=5 // pred_check
        %p197 = pneg %p196
      $region30: #{recurrent_block_forward.1} parent=5 // pred_check_branch
        %199 = sbr.rel (%p197) target = $region32
      $region31: #{recurrent_block_forward.1} parent=5 // pred_region
        // Predicated region
        $region33: #{recurrent_block_forward.1} parent=31 // pred_check
          %p200 = pneg %p33
        $region34: #{recurrent_block_forward.1} parent=31 // pred_check_branch
          %202 = sbr.rel (%p200) target = $region36
        $region35: #{recurrent_block_forward.1} parent=31 // pred_region
          %p203 = scmp.lt.s32.totalorder %s13, 1
          %s204 = scalar_select %p203, %s13, 1
          %s205 = smul.addr %s204, 2
          %s206 = smul.addr %s205, 4
          %s207 = scalar_lea.vmem %s0, %s206
        $region36: #{recurrent_block_forward.1} parent=31 // pred_fallthru
          _
      $region32: #{recurrent_block_forward.1} parent=5 // pred_fallthru
        _
      %p208 = scmp.le.s32.totalorder 1, %s13
      %p209 = scmp.lt.s32.totalorder %s13, 3
      %p210 = pnand %p208, %p209
      %p211 = pneg %p210
      // Predicated region
      $region37: #{recurrent_block_forward.1} parent=5 // pred_check
        _
      $region38: #{recurrent_block_forward.1} parent=5 // pred_check_branch
        %213 = sbr.rel (%p210) target = $region40
      $region39: #{recurrent_block_forward.1} parent=5 // pred_region
        %s214 = ssub.s32 %s13, 1
        // Predicated region
        $region41: #{recurrent_block_forward.1} parent=39 // pred_check
          %p215 = pneg %p81
        $region42: #{recurrent_block_forward.1} parent=39 // pred_check_branch
          %217 = sbr.rel (%p215) target = $region44
        $region43: #{recurrent_block_forward.1} parent=39 // pred_region
          %218 = dma.done [#allocation4], 12288
        $region44: #{recurrent_block_forward.1} parent=39 // pred_fallthru
          _
        // Predicated region
        $region45: #{recurrent_block_forward.1} parent=39 // pred_check
          %p219 = pneg %p102
        $region46: #{recurrent_block_forward.1} parent=39 // pred_check_branch
          %221 = sbr.rel (%p219) target = $region48
        $region47: #{recurrent_block_forward.1} parent=39 // pred_region
          %222 = dma.done [#allocation6], 12288
        $region48: #{recurrent_block_forward.1} parent=39 // pred_fallthru
          _
        %p223 = scmp.lt.s32.totalorder %s18, 1
        %s224 = scalar_select %p223, %s18, 1
        %s225 = smul.addr %s224, 2
        %s226 = smul.addr %s225, 4
        %s227 = scalar_lea.vmem %s0, %s226
        %p228 = pneg %p39
        %p229 = pneg %p36
        %p230 = pneg %p60
        %p231 = pneg %p57
        %p232 = pneg %p81
        %p233 = pneg %p78
        %p234 = pneg %p102
        %p235 = pneg %p99
        %p236 = pneg %p123
        %p237 = pneg %p120
        %p238 = pneg %p149
        %p239 = pneg %p146
        %p240 = scmp.lt.s32.totalorder %s18, 1
        %s241 = scalar_select %p240, %s18, 1
        %s242 = smul.addr %s241, 4
        %s243 = smul.addr %s242, 8
        %s244 = scalar_lea.vmem %s5, %s243
        %p245 = scmp.lt.s32.totalorder %s18, 1
        %s246 = scalar_select %p245, %s18, 1
        %s247 = smul.addr %s246, 2
        %s248 = smul.addr %s247, 4
        %s249 = scalar_lea.vmem %s0, %s248
        %p250 = scmp.lt.s32.totalorder %s18, 1
        %s251 = scalar_select %p250, %s18, 1
        %s252 = smul.addr %s251, 4
        %s253 = smul.addr %s252, 8
        %s254 = scalar_lea.vmem %s5, %s253
        %v256 = vlaneseq
        %vm257 = vcmp.ge.s32.totalorder %v256, 0
        %vm258 = vcmp.lt.s32.totalorder %v256, 256
        %vm259 = vmand %vm257, %vm258
        %260 = vst.msk [vmem:[#allocation2] ss:$8 sm:$0x3] %vm259, 0.0
        %261 = vst.msk [vmem:[#allocation2] ss:$8 sm:$0x0] %vm259, 0.0
        %s262 = scalar_lea.vmem [#allocation2], 33
        %263 = vst.msk [vmem:[%s262] ss:$8 sm:$0x3] %vm259, 0.0
        %264 = vst.msk [vmem:[%s262] ss:$8 sm:$0x0] %vm259, 0.0
        %v265 = vld [vmem:[%s4] sm:$0x77]
        %v266 = vld [vmem:[%s249] sm:$0xf]
        %v267 = vld [vmem:[%s249 + $0x4] sm:$0xf]
        %v268 = vld [vmem:[%s1] sm:$0xff]
        %v269 = vld [vmem:[%s1 + $0x8] sm:$0xff]
        %v270 = vld [vmem:[%s1 + $0x10] sm:$0xff]
        %v271 = vld [vmem:[%s1 + $0x18] sm:$0xff]
        %v272 = vld [vmem:[%s1 + $0x20] sm:$0xff]
        %v273 = vld [vmem:[%s1 + $0x28] sm:$0xff]
        %v274 = vld [vmem:[%s1 + $0x30] sm:$0xff]
        %v275 = vld [vmem:[%s1 + $0x38] sm:$0xff]
        %v277 = vlaneseq
        %v278 = vshrl.u32 %v277, 7
        %v279 = vsub.s32 0, %v278
        %v280 = vrot.slane %v265, %v279
        %v281 = vlaneseq
        %v282 = vshrl.u32 %v281, 7
        %v283 = vsub.s32 4, %v282
        %v284 = vrot.slane %v265, %v283
        %v287 = vlaneseq
        %v288 = vshrl.u32 %v287, 7
        %v289 = vsub.s32 0, %v288
        %v290 = vrot.slane %v280, %v289
        %v291 = vlaneseq
        %v292 = vshrl.u32 %v291, 7
        %v293 = vsub.s32 0, %v292
        %v294 = vrot.slane %v284, %v293
        %v297 = vunpack.c.l.b16 %v266
        %v298 = vunpack.c.l.b16 %v267
        %v299 = vpack.c.b16 %v298, %v297
        %v308 = vunpack.c.l.b16 %v268
        %v309 = vunpack.c.h.b16 %v268
        %v310 = vunpack.c.l.b16 %v269
        %v311 = vunpack.c.h.b16 %v269
        %v312 = vunpack.c.l.b16 %v270
        %v313 = vunpack.c.h.b16 %v270
        %v314 = vunpack.c.l.b16 %v271
        %v315 = vunpack.c.h.b16 %v271
        %v316 = vunpack.c.l.b16 %v272
        %v317 = vunpack.c.h.b16 %v272
        %v318 = vunpack.c.l.b16 %v273
        %v319 = vunpack.c.h.b16 %v273
        %v320 = vunpack.c.l.b16 %v274
        %v321 = vunpack.c.h.b16 %v274
        %v322 = vunpack.c.l.b16 %v275
        %v323 = vunpack.c.h.b16 %v275
        %v324 = vpack.c.b16 %v310, %v308
        %v325 = vpack.c.b16 %v311, %v309
        %v326 = vpack.c.b16 %v314, %v312
        %v327 = vpack.c.b16 %v315, %v313
        %v328 = vpack.c.b16 %v318, %v316
        %v329 = vpack.c.b16 %v319, %v317
        %v330 = vpack.c.b16 %v322, %v320
        %v331 = vpack.c.b16 %v323, %v321
        %vm340 = vcmask 523264
        %v342 = vsel %vm340, %v299, 0
        %344 = vmatprep.subr.bf16.mxu0 %v325
        %345 = vmatpush1.bf16.msra.mxu0 %v324
        %346 = vmatprep.subr.bf16.mxu0 %v327
        %347 = vmatpush1.bf16.msra.mxu0 %v326
        %348 = vmatprep.subr.bf16.mxu0 %v329
        %349 = vmatpush1.bf16.msra.mxu0 %v328
        %350 = vmatprep.subr.bf16.mxu0 %v331
        %351 = vmatpush1.bf16.msra.mxu0 %v330
        %352 = vmatprep.subr.bf16.mxu0 0
        %353 = vmatpush1.bf16.msra.mxu0 0
        %354 = vmatprep.subr.bf16.mxu0 0
        %355 = vmatpush1.bf16.msra.mxu0 0
        %356 = vmatprep.subr.bf16.mxu0 0
        %357 = vmatpush1.bf16.msra.mxu0 0
        %358 = vmatprep.subr.bf16.mxu0 0
        %359 = vmatpush1.bf16.msra.mxu0 0
        %360 = vmatprep.subr.bf16.mxu0 0
        %361 = vmatpush1.bf16.msra.mxu0 0
        %362 = vmatprep.subr.bf16.mxu0 0
        %363 = vmatpush1.bf16.msra.mxu0 0
        %364 = vmatprep.subr.bf16.mxu0 0
        %365 = vmatpush1.bf16.msra.mxu0 0
        %366 = vmatprep.subr.bf16.mxu0 0
        %367 = vmatpush1.bf16.msra.mxu0 0
        %368 = vmatprep.subr.bf16.mxu0 0
        %369 = vmatpush1.bf16.msra.mxu0 0
        %370 = vmatprep.subr.bf16.mxu0 0
        %371 = vmatpush1.bf16.msra.mxu0 0
        %372 = vmatprep.subr.bf16.mxu0 0
        %373 = vmatpush1.bf16.msra.mxu0 0
        %374 = vmatprep.subr.bf16.mxu0 0
        %375 = vmatpush1.bf16.msra.mxu0 0
        %376 = vmatprep.mubr.bf16.mxu0 0
        %377 = vmatmul.mubr.bf16.gmra.mrb[0].mxu0 %v342
        %v378 = vpop.f32.mrb[0].mxu0
        %v379 = vadd.f32 %v290, %v378
        %v380 = vpop.f32.mrb[0].mxu0
        %v381 = vadd.f32 %v294, %v380
        %v382 = vpop.f32.mrb[0].mxu0
        %v383 = vadd.f32 %v290, %v382
        %v384 = vpop.f32.mrb[0].mxu0
        %v385 = vadd.f32 %v294, %v384
        %386 = vdwg.mxu0
        %vm391 = vcmask 1040384
        %v392 = vrot.slane %v379, 7
        %v393 = vrot.slane %v381, 7
        %v394 = vrot.slane %v383, 7
        %v395 = vsel %vm391, %v392, %v394
        %v396 = vrot.slane %v385, 7
        %v397 = vsel %vm391, %v393, %v396
        %404 = vst [vmem:[#allocation2] sm:$0xfe] %v392
        %405 = vst [vmem:[#allocation2 + $0x8] sm:$0xfe] %v393
        %406 = vst [vmem:[#allocation2 + $0x10] sm:$0xff] %v395
        %407 = vst [vmem:[#allocation2 + $0x18] sm:$0xff] %v397
        %408 = vst [vmem:[#allocation2 + $0x20] sm:$0x1] %v394
        %409 = vst [vmem:[#allocation2 + $0x28] sm:$0x1] %v396
        %v410 = vld [vmem:[#allocation2] sm:$0xff]
        %v411 = vld [vmem:[#allocation2 + $0x8] sm:$0xff]
        %v412 = vld [vmem:[#allocation2 + $0x10] sm:$0xff]
        %v413 = vld [vmem:[#allocation2 + $0x18] sm:$0xff]
        %v414 = vpack.c.bf16 %v412, %v410
        %v415 = vpack.c.bf16 %v413, %v411
        %v416 = vld [vmem:[#allocation3] sm:$0xff]
        %v417 = vld [vmem:[#allocation3 + $0x8] sm:$0xff]
        %v418 = vld [vmem:[#allocation3 + $0x10] sm:$0xff]
        %v419 = vld [vmem:[#allocation3 + $0x18] sm:$0xff]
        %v420 = vld [vmem:[#allocation3 + $0x20] sm:$0xff]
        %v421 = vld [vmem:[#allocation3 + $0x28] sm:$0xff]
        %v422 = vld [vmem:[#allocation3 + $0x30] sm:$0xff]
        %v423 = vld [vmem:[#allocation3 + $0x38] sm:$0xff]
        %v424 = vld [vmem:[#allocation3 + $0x40] sm:$0xff]
        %v425 = vld [vmem:[#allocation3 + $0x48] sm:$0xff]
        %v426 = vld [vmem:[#allocation3 + $0x50] sm:$0xff]
        %v427 = vld [vmem:[#allocation3 + $0x58] sm:$0xff]
        %v428 = vld [vmem:[#allocation3 + $0x60] sm:$0xff]
        %v429 = vld [vmem:[#allocation3 + $0x68] sm:$0xff]
        %v430 = vld [vmem:[#allocation3 + $0x70] sm:$0xff]
        %v431 = vld [vmem:[#allocation3 + $0x78] sm:$0xff]
        %v432 = vld [vmem:[#allocation3 + $0x80] sm:$0xff]
        %v433 = vld [vmem:[#allocation3 + $0x88] sm:$0xff]
        %v434 = vld [vmem:[#allocation3 + $0x90] sm:$0xff]
        %v435 = vld [vmem:[#allocation3 + $0x98] sm:$0xff]
        %v436 = vld [vmem:[#allocation3 + $0xa0] sm:$0xff]
        %v437 = vld [vmem:[#allocation3 + $0xa8] sm:$0xff]
        %v438 = vld [vmem:[#allocation3 + $0xb0] sm:$0xff]
        %v439 = vld [vmem:[#allocation3 + $0xb8] sm:$0xff]
        %v440 = vld [vmem:[#allocation3 + $0xc0] sm:$0xff]
        %v441 = vld [vmem:[#allocation3 + $0xc8] sm:$0xff]
        %v442 = vld [vmem:[#allocation3 + $0xd0] sm:$0xff]
        %v443 = vld [vmem:[#allocation3 + $0xd8] sm:$0xff]
        %v444 = vld [vmem:[#allocation3 + $0xe0] sm:$0xff]
        %v445 = vld [vmem:[#allocation3 + $0xe8] sm:$0xff]
        %v446 = vld [vmem:[#allocation3 + $0xf0] sm:$0xff]
        %v447 = vld [vmem:[#allocation3 + $0xf8] sm:$0xff]
        %v448 = vld [vmem:[#allocation2] sm:$0xfe]
        %v449 = vld [vmem:[#allocation2 + $0x8] sm:$0xfe]
        %v450 = vld [vmem:[#allocation2 + $0x20] sm:$0x1]
        %v451 = vld [vmem:[#allocation2 + $0x28] sm:$0x1]
        %v452 = vpack.c.bf16 %v412, %v448
        %v453 = vpack.c.bf16 %v413, %v449
        %v454 = vpack.c.bf16 %v450, %v450
        %v455 = vpack.c.bf16 %v451, %v451
        %s456 = scalar_lea.vmem [#allocation3], 256
        %v457 = vld [vmem:[%s456] sm:$0xff]
        %v458 = vld [vmem:[%s456 + $0x8] sm:$0xff]
        %v459 = vld [vmem:[%s456 + $0x10] sm:$0xff]
        %v460 = vld [vmem:[%s456 + $0x18] sm:$0xff]
        %v461 = vld [vmem:[%s456 + $0x20] sm:$0xff]
        %v462 = vld [vmem:[%s456 + $0x28] sm:$0xff]
        %v463 = vld [vmem:[%s456 + $0x30] sm:$0xff]
        %v464 = vld [vmem:[%s456 + $0x38] sm:$0xff]
        %v465 = vld [vmem:[%s456 + $0x40] sm:$0xff]
        %v466 = vld [vmem:[%s456 + $0x48] sm:$0xff]
        %v467 = vld [vmem:[%s456 + $0x50] sm:$0xff]
        %v468 = vld [vmem:[%s456 + $0x58] sm:$0xff]
        %v469 = vld [vmem:[%s456 + $0x60] sm:$0xff]
        %v470 = vld [vmem:[%s456 + $0x68] sm:$0xff]
        %v471 = vld [vmem:[%s456 + $0x70] sm:$0xff]
        %v472 = vld [vmem:[%s456 + $0x78] sm:$0xff]
        %v473 = vld [vmem:[%s456 + $0x80] sm:$0xff]
        %v474 = vld [vmem:[%s456 + $0x88] sm:$0xff]
        %v475 = vld [vmem:[%s456 + $0x90] sm:$0xff]
        %v476 = vld [vmem:[%s456 + $0x98] sm:$0xff]
        %v477 = vld [vmem:[%s456 + $0xa0] sm:$0xff]
        %v478 = vld [vmem:[%s456 + $0xa8] sm:$0xff]
        %v479 = vld [vmem:[%s456 + $0xb0] sm:$0xff]
        %v480 = vld [vmem:[%s456 + $0xb8] sm:$0xff]
        %v481 = vld [vmem:[%s456 + $0xc0] sm:$0xff]
        %v482 = vld [vmem:[%s456 + $0xc8] sm:$0xff]
        %v483 = vld [vmem:[%s456 + $0xd0] sm:$0xff]
        %v484 = vld [vmem:[%s456 + $0xd8] sm:$0xff]
        %v485 = vld [vmem:[%s456 + $0xe0] sm:$0xff]
        %v486 = vld [vmem:[%s456 + $0xe8] sm:$0xff]
        %v487 = vld [vmem:[%s456 + $0xf0] sm:$0xff]
        %v488 = vld [vmem:[%s456 + $0xf8] sm:$0xff]
        %vm489 = vsmask.f32 7424
        %v491 = vshrl.u32 %v452, 16
        %v493 = vshll.u32 %v452, 16
        %v495 = vrot.slane %v493, 1
        %v496 = vor.u32 %v491, %v495
        %v498 = vshll.u32 %v454, 16
        %v500 = vrot.slane %v498, 1
        %v501 = vsel %vm489, %v496, %v500
        %v503 = vshrl.u32 %v453, 16
        %v505 = vshll.u32 %v453, 16
        %v507 = vrot.slane %v505, 1
        %v508 = vor.u32 %v503, %v507
        %v510 = vshll.u32 %v455, 16
        %v512 = vrot.slane %v510, 1
        %v513 = vsel %vm489, %v508, %v512
        %v548 = vunpack.c.l.b16 %v457
        %v549 = vunpack.c.h.b16 %v457
        %v550 = vunpack.c.l.b16 %v458
        %v551 = vunpack.c.h.b16 %v458
        %v552 = vunpack.c.l.b16 %v459
        %v553 = vunpack.c.h.b16 %v459
        %v554 = vunpack.c.l.b16 %v460
        %v555 = vunpack.c.h.b16 %v460
        %v556 = vunpack.c.l.b16 %v461
        %v557 = vunpack.c.h.b16 %v461
        %v558 = vunpack.c.l.b16 %v462
        %v559 = vunpack.c.h.b16 %v462
        %v560 = vunpack.c.l.b16 %v463
        %v561 = vunpack.c.h.b16 %v463
        %v562 = vunpack.c.l.b16 %v464
        %v563 = vunpack.c.h.b16 %v464
        %v564 = vunpack.c.l.b16 %v465
        %v565 = vunpack.c.h.b16 %v465
        %v566 = vunpack.c.l.b16 %v466
        %v567 = vunpack.c.h.b16 %v466
        %v568 = vunpack.c.l.b16 %v467
        %v569 = vunpack.c.h.b16 %v467
        %v570 = vunpack.c.l.b16 %v468
        %v571 = vunpack.c.h.b16 %v468
        %v572 = vunpack.c.l.b16 %v469
        %v573 = vunpack.c.h.b16 %v469
        %v574 = vunpack.c.l.b16 %v470
        %v575 = vunpack.c.h.b16 %v470
        %v576 = vunpack.c.l.b16 %v471
        %v577 = vunpack.c.h.b16 %v471
        %v578 = vunpack.c.l.b16 %v472
        %v579 = vunpack.c.h.b16 %v472
        %v580 = vunpack.c.l.b16 %v473
        %v581 = vunpack.c.h.b16 %v473
        %v582 = vunpack.c.l.b16 %v474
        %v583 = vunpack.c.h.b16 %v474
        %v584 = vunpack.c.l.b16 %v475
        %v585 = vunpack.c.h.b16 %v475
        %v586 = vunpack.c.l.b16 %v476
        %v587 = vunpack.c.h.b16 %v476
        %v588 = vunpack.c.l.b16 %v477
        %v589 = vunpack.c.h.b16 %v477
        %v590 = vunpack.c.l.b16 %v478
        %v591 = vunpack.c.h.b16 %v478
        %v592 = vunpack.c.l.b16 %v479
        %v593 = vunpack.c.h.b16 %v479
        %v594 = vunpack.c.l.b16 %v480
        %v595 = vunpack.c.h.b16 %v480
        %v596 = vunpack.c.l.b16 %v481
        %v597 = vunpack.c.h.b16 %v481
        %v598 = vunpack.c.l.b16 %v482
        %v599 = vunpack.c.h.b16 %v482
        %v600 = vunpack.c.l.b16 %v483
        %v601 = vunpack.c.h.b16 %v483
        %v602 = vunpack.c.l.b16 %v484
        %v603 = vunpack.c.h.b16 %v484
        %v604 = vunpack.c.l.b16 %v485
        %v605 = vunpack.c.h.b16 %v485
        %v606 = vunpack.c.l.b16 %v486
        %v607 = vunpack.c.h.b16 %v486
        %v608 = vunpack.c.l.b16 %v487
        %v609 = vunpack.c.h.b16 %v487
        %v610 = vunpack.c.l.b16 %v488
        %v611 = vunpack.c.h.b16 %v488
        %v612 = vpack.c.b16 %v550, %v548
        %v613 = vpack.c.b16 %v551, %v549
        %v614 = vpack.c.b16 %v554, %v552
        %v615 = vpack.c.b16 %v555, %v553
        %v616 = vpack.c.b16 %v558, %v556
        %v617 = vpack.c.b16 %v559, %v557
        %v618 = vpack.c.b16 %v562, %v560
        %v619 = vpack.c.b16 %v563, %v561
        %v620 = vpack.c.b16 %v566, %v564
        %v621 = vpack.c.b16 %v567, %v565
        %v622 = vpack.c.b16 %v570, %v568
        %v623 = vpack.c.b16 %v571, %v569
        %v624 = vpack.c.b16 %v574, %v572
        %v625 = vpack.c.b16 %v575, %v573
        %v626 = vpack.c.b16 %v578, %v576
        %v627 = vpack.c.b16 %v579, %v577
        %v628 = vpack.c.b16 %v582, %v580
        %v629 = vpack.c.b16 %v583, %v581
        %v630 = vpack.c.b16 %v586, %v584
        %v631 = vpack.c.b16 %v587, %v585
        %v632 = vpack.c.b16 %v590, %v588
        %v633 = vpack.c.b16 %v591, %v589
        %v634 = vpack.c.b16 %v594, %v592
        %v635 = vpack.c.b16 %v595, %v593
        %v636 = vpack.c.b16 %v598, %v596
        %v637 = vpack.c.b16 %v599, %v597
        %v638 = vpack.c.b16 %v602, %v600
        %v639 = vpack.c.b16 %v603, %v601
        %v640 = vpack.c.b16 %v606, %v604
        %v641 = vpack.c.b16 %v607, %v605
        %v642 = vpack.c.b16 %v610, %v608
        %v643 = vpack.c.b16 %v611, %v609
        %676 = vmatprep.subr.bf16.mxu0 %v613
        %677 = vmatpush1.bf16.msra.mxu0 %v612
        %678 = vmatprep.subr.bf16.mxu0 %v615
        %679 = vmatpush1.bf16.msra.mxu0 %v614
        %680 = vmatprep.subr.bf16.mxu0 %v617
        %681 = vmatpush1.bf16.msra.mxu0 %v616
        %682 = vmatprep.subr.bf16.mxu0 %v619
        %683 = vmatpush1.bf16.msra.mxu0 %v618
        %684 = vmatprep.subr.bf16.mxu0 %v621
        %685 = vmatpush1.bf16.msra.mxu0 %v620
        %686 = vmatprep.subr.bf16.mxu0 %v623
        %687 = vmatpush1.bf16.msra.mxu0 %v622
        %688 = vmatprep.subr.bf16.mxu0 %v625
        %689 = vmatpush1.bf16.msra.mxu0 %v624
        %690 = vmatprep.subr.bf16.mxu0 %v627
        %691 = vmatpush1.bf16.msra.mxu0 %v626
        %692 = vmatprep.subr.bf16.mxu0 %v629
        %693 = vmatpush1.bf16.msra.mxu0 %v628
        %694 = vmatprep.subr.bf16.mxu0 %v631
        %695 = vmatpush1.bf16.msra.mxu0 %v630
        %696 = vmatprep.subr.bf16.mxu0 %v633
        %697 = vmatpush1.bf16.msra.mxu0 %v632
        %698 = vmatprep.subr.bf16.mxu0 %v635
        %699 = vmatpush1.bf16.msra.mxu0 %v634
        %700 = vmatprep.subr.bf16.mxu0 %v637
        %701 = vmatpush1.bf16.msra.mxu0 %v636
        %702 = vmatprep.subr.bf16.mxu0 %v639
        %703 = vmatpush1.bf16.msra.mxu0 %v638
        %704 = vmatprep.subr.bf16.mxu0 %v641
        %705 = vmatpush1.bf16.msra.mxu0 %v640
        %706 = vmatprep.subr.bf16.mxu0 %v643
        %707 = vmatpush1.bf16.msra.mxu0 %v642
        %708 = vmatprep.mubr.bf16.mxu0 %v513
        %709 = vmatmul.mubr.bf16.gmra.mrb[0].mxu0 %v501
        %v710 = vpop.f32.mrb[0].mxu0
        %v711 = vadd.f32 0.0, %v710
        %v712 = vpop.f32.mrb[0].mxu0
        %v713 = vadd.f32 0.0, %v712
        %v714 = vpop.f32.mrb[0].mxu0
        %v715 = vadd.f32 0.0, %v714
        %v716 = vpop.f32.mrb[0].mxu0
        %v717 = vadd.f32 0.0, %v716
        %718 = vdwg.mxu0
        %v751 = vunpack.c.l.b16 %v416
        %v752 = vunpack.c.h.b16 %v416
        %v753 = vunpack.c.l.b16 %v417
        %v754 = vunpack.c.h.b16 %v417
        %v755 = vunpack.c.l.b16 %v418
        %v756 = vunpack.c.h.b16 %v418
        %v757 = vunpack.c.l.b16 %v419
        %v758 = vunpack.c.h.b16 %v419
        %v759 = vunpack.c.l.b16 %v420
        %v760 = vunpack.c.h.b16 %v420
        %v761 = vunpack.c.l.b16 %v421
        %v762 = vunpack.c.h.b16 %v421
        %v763 = vunpack.c.l.b16 %v422
        %v764 = vunpack.c.h.b16 %v422
        %v765 = vunpack.c.l.b16 %v423
        %v766 = vunpack.c.h.b16 %v423
        %v767 = vunpack.c.l.b16 %v424
        %v768 = vunpack.c.h.b16 %v424
        %v769 = vunpack.c.l.b16 %v425
        %v770 = vunpack.c.h.b16 %v425
        %v771 = vunpack.c.l.b16 %v426
        %v772 = vunpack.c.h.b16 %v426
        %v773 = vunpack.c.l.b16 %v427
        %v774 = vunpack.c.h.b16 %v427
        %v775 = vunpack.c.l.b16 %v428
        %v776 = vunpack.c.h.b16 %v428
        %v777 = vunpack.c.l.b16 %v429
        %v778 = vunpack.c.h.b16 %v429
        %v779 = vunpack.c.l.b16 %v430
        %v780 = vunpack.c.h.b16 %v430
        %v781 = vunpack.c.l.b16 %v431
        %v782 = vunpack.c.h.b16 %v431
        %v783 = vunpack.c.l.b16 %v432
        %v784 = vunpack.c.h.b16 %v432
        %v785 = vunpack.c.l.b16 %v433
        %v786 = vunpack.c.h.b16 %v433
        %v787 = vunpack.c.l.b16 %v434
        %v788 = vunpack.c.h.b16 %v434
        %v789 = vunpack.c.l.b16 %v435
        %v790 = vunpack.c.h.b16 %v435
        %v791 = vunpack.c.l.b16 %v436
        %v792 = vunpack.c.h.b16 %v436
        %v793 = vunpack.c.l.b16 %v437
        %v794 = vunpack.c.h.b16 %v437
        %v795 = vunpack.c.l.b16 %v438
        %v796 = vunpack.c.h.b16 %v438
        %v797 = vunpack.c.l.b16 %v439
        %v798 = vunpack.c.h.b16 %v439
        %v799 = vunpack.c.l.b16 %v440
        %v800 = vunpack.c.h.b16 %v440
        %v801 = vunpack.c.l.b16 %v441
        %v802 = vunpack.c.h.b16 %v441
        %v803 = vunpack.c.l.b16 %v442
        %v804 = vunpack.c.h.b16 %v442
        %v805 = vunpack.c.l.b16 %v443
        %v806 = vunpack.c.h.b16 %v443
        %v807 = vunpack.c.l.b16 %v444
        %v808 = vunpack.c.h.b16 %v444
        %v809 = vunpack.c.l.b16 %v445
        %v810 = vunpack.c.h.b16 %v445
        %v811 = vunpack.c.l.b16 %v446
        %v812 = vunpack.c.h.b16 %v446
        %v813 = vunpack.c.l.b16 %v447
        %v814 = vunpack.c.h.b16 %v447
        %v815 = vpack.c.b16 %v753, %v751
        %v816 = vpack.c.b16 %v754, %v752
        %v817 = vpack.c.b16 %v757, %v755
        %v818 = vpack.c.b16 %v758, %v756
        %v819 = vpack.c.b16 %v761, %v759
        %v820 = vpack.c.b16 %v762, %v760
        %v821 = vpack.c.b16 %v765, %v763
        %v822 = vpack.c.b16 %v766, %v764
        %v823 = vpack.c.b16 %v769, %v767
        %v824 = vpack.c.b16 %v770, %v768
        %v825 = vpack.c.b16 %v773, %v771
        %v826 = vpack.c.b16 %v774, %v772
        %v827 = vpack.c.b16 %v777, %v775
        %v828 = vpack.c.b16 %v778, %v776
        %v829 = vpack.c.b16 %v781, %v779
        %v830 = vpack.c.b16 %v782, %v780
        %v831 = vpack.c.b16 %v785, %v783
        %v832 = vpack.c.b16 %v786, %v784
        %v833 = vpack.c.b16 %v789, %v787
        %v834 = vpack.c.b16 %v790, %v788
        %v835 = vpack.c.b16 %v793, %v791
        %v836 = vpack.c.b16 %v794, %v792
        %v837 = vpack.c.b16 %v797, %v795
        %v838 = vpack.c.b16 %v798, %v796
        %v839 = vpack.c.b16 %v801, %v799
        %v840 = vpack.c.b16 %v802, %v800
        %v841 = vpack.c.b16 %v805, %v803
        %v842 = vpack.c.b16 %v806, %v804
        %v843 = vpack.c.b16 %v809, %v807
        %v844 = vpack.c.b16 %v810, %v808
        %v845 = vpack.c.b16 %v813, %v811
        %v846 = vpack.c.b16 %v814, %v812
        %879 = vmatprep.subr.bf16.mxu0 %v816
        %880 = vmatpush1.bf16.msra.mxu0 %v815
        %881 = vmatprep.subr.bf16.mxu0 %v818
        %882 = vmatpush1.bf16.msra.mxu0 %v817
        %883 = vmatprep.subr.bf16.mxu0 %v820
        %884 = vmatpush1.bf16.msra.mxu0 %v819
        %885 = vmatprep.subr.bf16.mxu0 %v822
        %886 = vmatpush1.bf16.msra.mxu0 %v821
        %887 = vmatprep.subr.bf16.mxu0 %v824
        %888 = vmatpush1.bf16.msra.mxu0 %v823
        %889 = vmatprep.subr.bf16.mxu0 %v826
        %890 = vmatpush1.bf16.msra.mxu0 %v825
        %891 = vmatprep.subr.bf16.mxu0 %v828
        %892 = vmatpush1.bf16.msra.mxu0 %v827
        %893 = vmatprep.subr.bf16.mxu0 %v830
        %894 = vmatpush1.bf16.msra.mxu0 %v829
        %895 = vmatprep.subr.bf16.mxu0 %v832
        %896 = vmatpush1.bf16.msra.mxu0 %v831
        %897 = vmatprep.subr.bf16.mxu0 %v834
        %898 = vmatpush1.bf16.msra.mxu0 %v833
        %899 = vmatprep.subr.bf16.mxu0 %v836
        %900 = vmatpush1.bf16.msra.mxu0 %v835
        %901 = vmatprep.subr.bf16.mxu0 %v838
        %902 = vmatpush1.bf16.msra.mxu0 %v837
        %903 = vmatprep.subr.bf16.mxu0 %v840
        %904 = vmatpush1.bf16.msra.mxu0 %v839
        %905 = vmatprep.subr.bf16.mxu0 %v842
        %906 = vmatpush1.bf16.msra.mxu0 %v841
        %907 = vmatprep.subr.bf16.mxu0 %v844
        %908 = vmatpush1.bf16.msra.mxu0 %v843
        %909 = vmatprep.subr.bf16.mxu0 %v846
        %910 = vmatpush1.bf16.msra.mxu0 %v845
        %911 = vmatprep.mubr.bf16.mxu0 %v415
        %912 = vmatmul.mubr.bf16.gmra.mrb[0].mxu0 %v414
        %v913 = vpop.f32.mrb[0].mxu0
        %v914 = vadd.f32 %v711, %v913
        %v915 = vpop.f32.mrb[0].mxu0
        %v916 = vadd.f32 %v713, %v915
        %v917 = vpop.f32.mrb[0].mxu0
        %v918 = vadd.f32 %v715, %v917
        %v919 = vpop.f32.mrb[0].mxu0
        %v920 = vadd.f32 %v717, %v919
        %921 = vdwg.mxu0
        %v922 = vld [vmem:[#allocation2] sm:$0xfc]
        %v923 = vld [vmem:[#allocation2 + $0x8] sm:$0xfc]
        %v924 = vld [vmem:[#allocation2 + $0x20] sm:$0x3]
        %v925 = vld [vmem:[#allocation2 + $0x28] sm:$0x3]
        %v926 = vpack.c.bf16 %v412, %v922
        %v927 = vpack.c.bf16 %v413, %v923
        %v928 = vpack.c.bf16 %v924, %v924
        %v929 = vpack.c.bf16 %v925, %v925
        %s930 = scalar_lea.vmem [#allocation3], 512
        %v931 = vld [vmem:[%s930] sm:$0xff]
        %v932 = vld [vmem:[%s930 + $0x8] sm:$0xff]
        %v933 = vld [vmem:[%s930 + $0x10] sm:$0xff]
        %v934 = vld [vmem:[%s930 + $0x18] sm:$0xff]
        %v935 = vld [vmem:[%s930 + $0x20] sm:$0xff]
        %v936 = vld [vmem:[%s930 + $0x28] sm:$0xff]
        %v937 = vld [vmem:[%s930 + $0x30] sm:$0xff]
        %v938 = vld [vmem:[%s930 + $0x38] sm:$0xff]
        %v939 = vld [vmem:[%s930 + $0x40] sm:$0xff]
        %v940 = vld [vmem:[%s930 + $0x48] sm:$0xff]
        %v941 = vld [vmem:[%s930 + $0x50] sm:$0xff]
        %v942 = vld [vmem:[%s930 + $0x58] sm:$0xff]
        %v943 = vld [vmem:[%s930 + $0x60] sm:$0xff]
        %v944 = vld [vmem:[%s930 + $0x68] sm:$0xff]
        %v945 = vld [vmem:[%s930 + $0x70] sm:$0xff]
        %v946 = vld [vmem:[%s930 + $0x78] sm:$0xff]
        %v947 = vld [vmem:[%s930 + $0x80] sm:$0xff]
        %v948 = vld [vmem:[%s930 + $0x88] sm:$0xff]
        %v949 = vld [vmem:[%s930 + $0x90] sm:$0xff]
        %v950 = vld [vmem:[%s930 + $0x98] sm:$0xff]
        %v951 = vld [vmem:[%s930 + $0xa0] sm:$0xff]
        %v952 = vld [vmem:[%s930 + $0xa8] sm:$0xff]
        %v953 = vld [vmem:[%s930 + $0xb0] sm:$0xff]
        %v954 = vld [vmem:[%s930 + $0xb8] sm:$0xff]
        %v955 = vld [vmem:[%s930 + $0xc0] sm:$0xff]
        %v956 = vld [vmem:[%s930 + $0xc8] sm:$0xff]
        %v957 = vld [vmem:[%s930 + $0xd0] sm:$0xff]
        %v958 = vld [vmem:[%s930 + $0xd8] sm:$0xff]
        %v959 = vld [vmem:[%s930 + $0xe0] sm:$0xff]
        %v960 = vld [vmem:[%s930 + $0xe8] sm:$0xff]
        %v961 = vld [vmem:[%s930 + $0xf0] sm:$0xff]
        %v962 = vld [vmem:[%s930 + $0xf8] sm:$0xff]
        %vm967 = vcmask 1046528
        %v968 = vrot.slane %v926, 1
        %v969 = vrot.slane %v928, 1
        %v970 = vsel %vm967, %v968, %v969
        %v971 = vrot.slane %v927, 1
        %v972 = vrot.slane %v929, 1
        %v973 = vsel %vm967, %v971, %v972
        %v1008 = vunpack.c.l.b16 %v931
        %v1009 = vunpack.c.h.b16 %v931
        %v1010 = vunpack.c.l.b16 %v932
        %v1011 = vunpack.c.h.b16 %v932
        %v1012 = vunpack.c.l.b16 %v933
        %v1013 = vunpack.c.h.b16 %v933
        %v1014 = vunpack.c.l.b16 %v934
        %v1015 = vunpack.c.h.b16 %v934
        %v1016 = vunpack.c.l.b16 %v935
        %v1017 = vunpack.c.h.b16 %v935
        %v1018 = vunpack.c.l.b16 %v936
        %v1019 = vunpack.c.h.b16 %v936
        %v1020 = vunpack.c.l.b16 %v937
        %v1021 = vunpack.c.h.b16 %v937
        %v1022 = vunpack.c.l.b16 %v938
        %v1023 = vunpack.c.h.b16 %v938
        %v1024 = vunpack.c.l.b16 %v939
        %v1025 = vunpack.c.h.b16 %v939
        %v1026 = vunpack.c.l.b16 %v940
        %v1027 = vunpack.c.h.b16 %v940
        %v1028 = vunpack.c.l.b16 %v941
        %v1029 = vunpack.c.h.b16 %v941
        %v1030 = vunpack.c.l.b16 %v942
        %v1031 = vunpack.c.h.b16 %v942
        %v1032 = vunpack.c.l.b16 %v943
        %v1033 = vunpack.c.h.b16 %v943
        %v1034 = vunpack.c.l.b16 %v944
        %v1035 = vunpack.c.h.b16 %v944
        %v1036 = vunpack.c.l.b16 %v945
        %v1037 = vunpack.c.h.b16 %v945
        %v1038 = vunpack.c.l.b16 %v946
        %v1039 = vunpack.c.h.b16 %v946
        %v1040 = vunpack.c.l.b16 %v947
        %v1041 = vunpack.c.h.b16 %v947
        %v1042 = vunpack.c.l.b16 %v948
        %v1043 = vunpack.c.h.b16 %v948
        %v1044 = vunpack.c.l.b16 %v949
        %v1045 = vunpack.c.h.b16 %v949
        %v1046 = vunpack.c.l.b16 %v950
        %v1047 = vunpack.c.h.b16 %v950
        %v1048 = vunpack.c.l.b16 %v951
        %v1049 = vunpack.c.h.b16 %v951
        %v1050 = vunpack.c.l.b16 %v952
        %v1051 = vunpack.c.h.b16 %v952
        %v1052 = vunpack.c.l.b16 %v953
        %v1053 = vunpack.c.h.b16 %v953
        %v1054 = vunpack.c.l.b16 %v954
        %v1055 = vunpack.c.h.b16 %v954
        %v1056 = vunpack.c.l.b16 %v955
        %v1057 = vunpack.c.h.b16 %v955
        %v1058 = vunpack.c.l.b16 %v956
        %v1059 = vunpack.c.h.b16 %v956
        %v1060 = vunpack.c.l.b16 %v957
        %v1061 = vunpack.c.h.b16 %v957
        %v1062 = vunpack.c.l.b16 %v958
        %v1063 = vunpack.c.h.b16 %v958
        %v1064 = vunpack.c.l.b16 %v959
        %v1065 = vunpack.c.h.b16 %v959
        %v1066 = vunpack.c.l.b16 %v960
        %v1067 = vunpack.c.h.b16 %v960
        %v1068 = vunpack.c.l.b16 %v961
        %v1069 = vunpack.c.h.b16 %v961
        %v1070 = vunpack.c.l.b16 %v962
        %v1071 = vunpack.c.h.b16 %v962
        %v1072 = vpack.c.b16 %v1010, %v1008
        %v1073 = vpack.c.b16 %v1011, %v1009
        %v1074 = vpack.c.b16 %v1014, %v1012
        %v1075 = vpack.c.b16 %v1015, %v1013
        %v1076 = vpack.c.b16 %v1018, %v1016
        %v1077 = vpack.c.b16 %v1019, %v1017
        %v1078 = vpack.c.b16 %v1022, %v1020
        %v1079 = vpack.c.b16 %v1023, %v1021
        %v1080 = vpack.c.b16 %v1026, %v1024
        %v1081 = vpack.c.b16 %v1027, %v1025
        %v1082 = vpack.c.b16 %v1030, %v1028
        %v1083 = vpack.c.b16 %v1031, %v1029
        %v1084 = vpack.c.b16 %v1034, %v1032
        %v1085 = vpack.c.b16 %v1035, %v1033
        %v1086 = vpack.c.b16 %v1038, %v1036
        %v1087 = vpack.c.b16 %v1039, %v1037
        %v1088 = vpack.c.b16 %v1042, %v1040
        %v1089 = vpack.c.b16 %v1043, %v1041
        %v1090 = vpack.c.b16 %v1046, %v1044
        %v1091 = vpack.c.b16 %v1047, %v1045
        %v1092 = vpack.c.b16 %v1050, %v1048
        %v1093 = vpack.c.b16 %v1051, %v1049
        %v1094 = vpack.c.b16 %v1054, %v1052
        %v1095 = vpack.c.b16 %v1055, %v1053
        %v1096 = vpack.c.b16 %v1058, %v1056
        %v1097 = vpack.c.b16 %v1059, %v1057
        %v1098 = vpack.c.b16 %v1062, %v1060
        %v1099 = vpack.c.b16 %v1063, %v1061
        %v1100 = vpack.c.b16 %v1066, %v1064
        %v1101 = vpack.c.b16 %v1067, %v1065
        %v1102 = vpack.c.b16 %v1070, %v1068
        %v1103 = vpack.c.b16 %v1071, %v1069
        %1136 = vmatprep.subr.bf16.mxu0 %v1073
        %1137 = vmatpush1.bf16.msra.mxu0 %v1072
        %1138 = vmatprep.subr.bf16.mxu0 %v1075
        %1139 = vmatpush1.bf16.msra.mxu0 %v1074
        %1140 = vmatprep.subr.bf16.mxu0 %v1077
        %1141 = vmatpush1.bf16.msra.mxu0 %v1076
        %1142 = vmatprep.subr.bf16.mxu0 %v1079
        %1143 = vmatpush1.bf16.msra.mxu0 %v1078
        %1144 = vmatprep.subr.bf16.mxu0 %v1081
        %1145 = vmatpush1.bf16.msra.mxu0 %v1080
        %1146 = vmatprep.subr.bf16.mxu0 %v1083
        %1147 = vmatpush1.bf16.msra.mxu0 %v1082
        %1148 = vmatprep.subr.bf16.mxu0 %v1085
        %1149 = vmatpush1.bf16.msra.mxu0 %v1084
        %1150 = vmatprep.subr.bf16.mxu0 %v1087
        %1151 = vmatpush1.bf16.msra.mxu0 %v1086
        %1152 = vmatprep.subr.bf16.mxu0 %v1089
        %1153 = vmatpush1.bf16.msra.mxu0 %v1088
        %1154 = vmatprep.subr.bf16.mxu0 %v1091
        %1155 = vmatpush1.bf16.msra.mxu0 %v1090
        %1156 = vmatprep.subr.bf16.mxu0 %v1093
        %1157 = vmatpush1.bf16.msra.mxu0 %v1092
        %1158 = vmatprep.subr.bf16.mxu0 %v1095
        %1159 = vmatpush1.bf16.msra.mxu0 %v1094
        %1160 = vmatprep.subr.bf16.mxu0 %v1097
        %1161 = vmatpush1.bf16.msra.mxu0 %v1096
        %1162 = vmatprep.subr.bf16.mxu0 %v1099
        %1163 = vmatpush1.bf16.msra.mxu0 %v1098
        %1164 = vmatprep.subr.bf16.mxu0 %v1101
        %1165 = vmatpush1.bf16.msra.mxu0 %v1100
        %1166 = vmatprep.subr.bf16.mxu0 %v1103
        %1167 = vmatpush1.bf16.msra.mxu0 %v1102
        %1168 = vmatprep.mubr.bf16.mxu0 %v973
        %1169 = vmatmul.mubr.bf16.gmra.mrb[0].mxu0 %v970
        %v1170 = vpop.f32.mrb[0].mxu0
        %v1171 = vadd.f32 0.0, %v1170
        %v1172 = vpop.f32.mrb[0].mxu0
        %v1173 = vadd.f32 0.0, %v1172
        %v1174 = vpop.f32.mrb[0].mxu0
        %v1175 = vadd.f32 0.0, %v1174
        %v1176 = vpop.f32.mrb[0].mxu0
        %v1177 = vadd.f32 0.0, %v1176
        %1178 = vdwg.mxu0
        %v1179 = vadd.f32 %v914, %v1171
        %v1180 = vadd.f32 %v916, %v1173
        %v1181 = vadd.f32 %v918, %v1175
        %v1182 = vadd.f32 %v920, %v1177
        %v1183 = vlaneseq
        %v1184 = vshrl.u32 %v1183, 7
        %v1185 = vsub.s32 1, %v1184
        %v1186 = vrot.slane %v265, %v1185
        %v1187 = vlaneseq
        %v1188 = vshrl.u32 %v1187, 7
        %v1189 = vsub.s32 5, %v1188
        %v1190 = vrot.slane %v265, %v1189
        %v1193 = vlaneseq
        %v1194 = vshrl.u32 %v1193, 7
        %v1195 = vsub.s32 1, %v1194
        %v1196 = vrot.slane %v1186, %v1195
        %v1197 = vlaneseq
        %v1198 = vshrl.u32 %v1197, 7
        %v1199 = vsub.s32 1, %v1198
        %v1200 = vrot.slane %v1190, %v1199
        %v1201 = vadd.f32 %v1179, %v1196
        %v1202 = vadd.f32 %v1180, %v1200
        %v1203 = vadd.f32 %v1181, %v1196
        %v1204 = vadd.f32 %v1182, %v1200
        %v1205 = vmax.f32 %v1201, 0.0
        %v1206 = vmax.f32 %v1202, 0.0
        %v1207 = vmax.f32 %v1203, 0.0
        %v1208 = vmax.f32 %v1204, 0.0
        %v1209 = vadd.f32 %v1205, %v379
        %v1210 = vadd.f32 %v1206, %v381
        %v1211 = vadd.f32 %v1207, %v383
        %v1212 = vadd.f32 %v1208, %v385
        %v1217 = vrot.slane %v1209, 7
        %v1218 = vrot.slane %v1210, 7
        %v1219 = vrot.slane %v1211, 7
        %v1220 = vsel %vm391, %v1217, %v1219
        %v1221 = vrot.slane %v1212, 7
        %v1222 = vsel %vm391, %v1218, %v1221
        %1229 = vst [vmem:[#allocation2] sm:$0xfe] %v1217
        %1230 = vst [vmem:[#allocation2 + $0x8] sm:$0xfe] %v1218
        %1231 = vst [vmem:[#allocation2 + $0x10] sm:$0xff] %v1220
        %1232 = vst [vmem:[#allocation2 + $0x18] sm:$0xff] %v1222
        %1233 = vst [vmem:[#allocation2 + $0x20] sm:$0x1] %v1219
        %1234 = vst [vmem:[#allocation2 + $0x28] sm:$0x1] %v1221
        %v1235 = vld [vmem:[#allocation2] sm:$0xff]
        %v1236 = vld [vmem:[#allocation2 + $0x8] sm:$0xff]
        %v1237 = vld [vmem:[#allocation2 + $0x10] sm:$0xff]
        %v1238 = vld [vmem:[#allocation2 + $0x18] sm:$0xff]
        %v1239 = vpack.c.bf16 %v1237, %v1235
        %v1240 = vpack.c.bf16 %v1238, %v1236
        %v1241 = vld [vmem:[#allocation3] sm:$0xff]
        %v1242 = vld [vmem:[#allocation3 + $0x8] sm:$0xff]
        %v1243 = vld [vmem:[#allocation3 + $0x10] sm:$0xff]
        %v1244 = vld [vmem:[#allocation3 + $0x18] sm:$0xff]
        %v1245 = vld [vmem:[#allocation3 + $0x20] sm:$0xff]
        %v1246 = vld [vmem:[#allocation3 + $0x28] sm:$0xff]
        %v1247 = vld [vmem:[#allocation3 + $0x30] sm:$0xff]
        %v1248 = vld [vmem:[#allocation3 + $0x38] sm:$0xff]
        %v1249 = vld [vmem:[#allocation3 + $0x40] sm:$0xff]
        %v1250 = vld [vmem:[#allocation3 + $0x48] sm:$0xff]
        %v1251 = vld [vmem:[#allocation3 + $0x50] sm:$0xff]
        %v1252 = vld [vmem:[#allocation3 + $0x58] sm:$0xff]
        %v1253 = vld [vmem:[#allocation3 + $0x60] sm:$0xff]
        %v1254 = vld [vmem:[#allocation3 + $0x68] sm:$0xff]
        %v1255 = vld [vmem:[#allocation3 + $0x70] sm:$0xff]
        %v1256 = vld [vmem:[#allocation3 + $0x78] sm:$0xff]
        %v1257 = vld [vmem:[#allocation3 + $0x80] sm:$0xff]
        %v1258 = vld [vmem:[#allocation3 + $0x88] sm:$0xff]
        %v1259 = vld [vmem:[#allocation3 + $0x90] sm:$0xff]
        %v1260 = vld [vmem:[#allocation3 + $0x98] sm:$0xff]
        %v1261 = vld [vmem:[#allocation3 + $0xa0] sm:$0xff]
        %v1262 = vld [vmem:[#allocation3 + $0xa8] sm:$0xff]
        %v1263 = vld [vmem:[#allocation3 + $0xb0] sm:$0xff]
        %v1264 = vld [vmem:[#allocation3 + $0xb8] sm:$0xff]
        %v1265 = vld [vmem:[#allocation3 + $0xc0] sm:$0xff]
        %v1266 = vld [vmem:[#allocation3 + $0xc8] sm:$0xff]
        %v1267 = vld [vmem:[#allocation3 + $0xd0] sm:$0xff]
        %v1268 = vld [vmem:[#allocation3 + $0xd8] sm:$0xff]
        %v1269 = vld [vmem:[#allocation3 + $0xe0] sm:$0xff]
        %v1270 = vld [vmem:[#allocation3 + $0xe8] sm:$0xff]
        %v1271 = vld [vmem:[#allocation3 + $0xf0] sm:$0xff]
        %v1272 = vld [vmem:[#allocation3 + $0xf8] sm:$0xff]
        %v1273 = vld [vmem:[#allocation2] sm:$0xfe]
        %v1274 = vld [vmem:[#allocation2 + $0x8] sm:$0xfe]
        %v1275 = vld [vmem:[#allocation2 + $0x20] sm:$0x1]
        %v1276 = vld [vmem:[#allocation2 + $0x28] sm:$0x1]
        %v1277 = vpack.c.bf16 %v1237, %v1273
        %v1278 = vpack.c.bf16 %v1238, %v1274
        %v1279 = vpack.c.bf16 %v1275, %v1275
        %v1280 = vpack.c.bf16 %v1276, %v1276
        %v1281 = vld [vmem:[%s456] sm:$0xff]
        %v1282 = vld [vmem:[%s456 + $0x8] sm:$0xff]
        %v1283 = vld [vmem:[%s456 + $0x10] sm:$0xff]
        %v1284 = vld [vmem:[%s456 + $0x18] sm:$0xff]
        %v1285 = vld [vmem:[%s456 + $0x20] sm:$0xff]
        %v1286 = vld [vmem:[%s456 + $0x28] sm:$0xff]
        %v1287 = vld [vmem:[%s456 + $0x30] sm:$0xff]
        %v1288 = vld [vmem:[%s456 + $0x38] sm:$0xff]
        %v1289 = vld [vmem:[%s456 + $0x40] sm:$0xff]
        %v1290 = vld [vmem:[%s456 + $0x48] sm:$0xff]
        %v1291 = vld [vmem:[%s456 + $0x50] sm:$0xff]
        %v1292 = vld [vmem:[%s456 + $0x58] sm:$0xff]
        %v1293 = vld [vmem:[%s456 + $0x60] sm:$0xff]
        %v1294 = vld [vmem:[%s456 + $0x68] sm:$0xff]
        %v1295 = vld [vmem:[%s456 + $0x70] sm:$0xff]
        %v1296 = vld [vmem:[%s456 + $0x78] sm:$0xff]
        %v1297 = vld [vmem:[%s456 + $0x80] sm:$0xff]
        %v1298 = vld [vmem:[%s456 + $0x88] sm:$0xff]
        %v1299 = vld [vmem:[%s456 + $0x90] sm:$0xff]
        %v1300 = vld [vmem:[%s456 + $0x98] sm:$0xff]
        %v1301 = vld [vmem:[%s456 + $0xa0] sm:$0xff]
        %v1302 = vld [vmem:[%s456 + $0xa8] sm:$0xff]
        %v1303 = vld [vmem:[%s456 + $0xb0] sm:$0xff]
        %v1304 = vld [vmem:[%s456 + $0xb8] sm:$0xff]
        %v1305 = vld [vmem:[%s456 + $0xc0] sm:$0xff]
        %v1306 = vld [vmem:[%s456 + $0xc8] sm:$0xff]
        %v1307 = vld [vmem:[%s456 + $0xd0] sm:$0xff]
        %v1308 = vld [vmem:[%s456 + $0xd8] sm:$0xff]
        %v1309 = vld [vmem:[%s456 + $0xe0] sm:$0xff]
        %v1310 = vld [vmem:[%s456 + $0xe8] sm:$0xff]
        %v1311 = vld [vmem:[%s456 + $0xf0] sm:$0xff]
        %v1312 = vld [vmem:[%s456 + $0xf8] sm:$0xff]
        %v1314 = vshrl.u32 %v1277, 16
        %v1316 = vshll.u32 %v1277, 16
        %v1318 = vrot.slane %v1316, 1
        %v1319 = vor.u32 %v1314, %v1318
        %v1321 = vshll.u32 %v1279, 16
        %v1323 = vrot.slane %v1321, 1
        %v1324 = vsel %vm489, %v1319, %v1323
        %v1326 = vshrl.u32 %v1278, 16
        %v1328 = vshll.u32 %v1278, 16
        %v1330 = vrot.slane %v1328, 1
        %v1331 = vor.u32 %v1326, %v1330
        %v1333 = vshll.u32 %v1280, 16
        %v1335 = vrot.slane %v1333, 1
        %v1336 = vsel %vm489, %v1331, %v1335
        %v1371 = vunpack.c.l.b16 %v1281
        %v1372 = vunpack.c.h.b16 %v1281
        %v1373 = vunpack.c.l.b16 %v1282
        %v1374 = vunpack.c.h.b16 %v1282
        %v1375 = vunpack.c.l.b16 %v1283
        %v1376 = vunpack.c.h.b16 %v1283
        %v1377 = vunpack.c.l.b16 %v1284
        %v1378 = vunpack.c.h.b16 %v1284
        %v1379 = vunpack.c.l.b16 %v1285
        %v1380 = vunpack.c.h.b16 %v1285
        %v1381 = vunpack.c.l.b16 %v1286
        %v1382 = vunpack.c.h.b16 %v1286
        %v1383 = vunpack.c.l.b16 %v1287
        %v1384 = vunpack.c.h.b16 %v1287
        %v1385 = vunpack.c.l.b16 %v1288
        %v1386 = vunpack.c.h.b16 %v1288
        %v1387 = vunpack.c.l.b16 %v1289
        %v1388 = vunpack.c.h.b16 %v1289
        %v1389 = vunpack.c.l.b16 %v1290
        %v1390 = vunpack.c.h.b16 %v1290
        %v1391 = vunpack.c.l.b16 %v1291
        %v1392 = vunpack.c.h.b16 %v1291
        %v1393 = vunpack.c.l.b16 %v1292
        %v1394 = vunpack.c.h.b16 %v1292
        %v1395 = vunpack.c.l.b16 %v1293
        %v1396 = vunpack.c.h.b16 %v1293
        %v1397 = vunpack.c.l.b16 %v1294
        %v1398 = vunpack.c.h.b16 %v1294
        %v1399 = vunpack.c.l.b16 %v1295
        %v1400 = vunpack.c.h.b16 %v1295
        %v1401 = vunpack.c.l.b16 %v1296
        %v1402 = vunpack.c.h.b16 %v1296
        %v1403 = vunpack.c.l.b16 %v1297
        %v1404 = vunpack.c.h.b16 %v1297
        %v1405 = vunpack.c.l.b16 %v1298
        %v1406 = vunpack.c.h.b16 %v1298
        %v1407 = vunpack.c.l.b16 %v1299
        %v1408 = vunpack.c.h.b16 %v1299
        %v1409 = vunpack.c.l.b16 %v1300
        %v1410 = vunpack.c.h.b16 %v1300
        %v1411 = vunpack.c.l.b16 %v1301
        %v1412 = vunpack.c.h.b16 %v1301
        %v1413 = vunpack.c.l.b16 %v1302
        %v1414 = vunpack.c.h.b16 %v1302
        %v1415 = vunpack.c.l.b16 %v1303
        %v1416 = vunpack.c.h.b16 %v1303
        %v1417 = vunpack.c.l.b16 %v1304
        %v1418 = vunpack.c.h.b16 %v1304
        %v1419 = vunpack.c.l.b16 %v1305
        %v1420 = vunpack.c.h.b16 %v1305
        %v1421 = vunpack.c.l.b16 %v1306
        %v1422 = vunpack.c.h.b16 %v1306
        %v1423 = vunpack.c.l.b16 %v1307
        %v1424 = vunpack.c.h.b16 %v1307
        %v1425 = vunpack.c.l.b16 %v1308
        %v1426 = vunpack.c.h.b16 %v1308
        %v1427 = vunpack.c.l.b16 %v1309
        %v1428 = vunpack.c.h.b16 %v1309
        %v1429 = vunpack.c.l.b16 %v1310
        %v1430 = vunpack.c.h.b16 %v1310
        %v1431 = vunpack.c.l.b16 %v1311
        %v1432 = vunpack.c.h.b16 %v1311
        %v1433 = vunpack.c.l.b16 %v1312
        %v1434 = vunpack.c.h.b16 %v1312
        %v1435 = vpack.c.b16 %v1373, %v1371
        %v1436 = vpack.c.b16 %v1374, %v1372
        %v1437 = vpack.c.b16 %v1377, %v1375
        %v1438 = vpack.c.b16 %v1378, %v1376
        %v1439 = vpack.c.b16 %v1381, %v1379
        %v1440 = vpack.c.b16 %v1382, %v1380
        %v1441 = vpack.c.b16 %v1385, %v1383
        %v1442 = vpack.c.b16 %v1386, %v1384
        %v1443 = vpack.c.b16 %v1389, %v1387
        %v1444 = vpack.c.b16 %v1390, %v1388
        %v1445 = vpack.c.b16 %v1393, %v1391
        %v1446 = vpack.c.b16 %v1394, %v1392
        %v1447 = vpack.c.b16 %v1397, %v1395
        %v1448 = vpack.c.b16 %v1398, %v1396
        %v1449 = vpack.c.b16 %v1401, %v1399
        %v1450 = vpack.c.b16 %v1402, %v1400
        %v1451 = vpack.c.b16 %v1405, %v1403
        %v1452 = vpack.c.b16 %v1406, %v1404
        %v1453 = vpack.c.b16 %v1409, %v1407
        %v1454 = vpack.c.b16 %v1410, %v1408
        %v1455 = vpack.c.b16 %v1413, %v1411
        %v1456 = vpack.c.b16 %v1414, %v1412
        %v1457 = vpack.c.b16 %v1417, %v1415
        %v1458 = vpack.c.b16 %v1418, %v1416
        %v1459 = vpack.c.b16 %v1421, %v1419
        %v1460 = vpack.c.b16 %v1422, %v1420
        %v1461 = vpack.c.b16 %v1425, %v1423
        %v1462 = vpack.c.b16 %v1426, %v1424
        %v1463 = vpack.c.b16 %v1429, %v1427
        %v1464 = vpack.c.b16 %v1430, %v1428
        %v1465 = vpack.c.b16 %v1433, %v1431
        %v1466 = vpack.c.b16 %v1434, %v1432
        %1499 = vmatprep.subr.bf16.mxu0 %v1436
        %1500 = vmatpush1.bf16.msra.mxu0 %v1435
        %1501 = vmatprep.subr.bf16.mxu0 %v1438
        %1502 = vmatpush1.bf16.msra.mxu0 %v1437
        %1503 = vmatprep.subr.bf16.mxu0 %v1440
        %1504 = vmatpush1.bf16.msra.mxu0 %v1439
        %1505 = vmatprep.subr.bf16.mxu0 %v1442
        %1506 = vmatpush1.bf16.msra.mxu0 %v1441
        %1507 = vmatprep.subr.bf16.mxu0 %v1444
        %1508 = vmatpush1.bf16.msra.mxu0 %v1443
        %1509 = vmatprep.subr.bf16.mxu0 %v1446
        %1510 = vmatpush1.bf16.msra.mxu0 %v1445
        %1511 = vmatprep.subr.bf16.mxu0 %v1448
        %1512 = vmatpush1.bf16.msra.mxu0 %v1447
        %1513 = vmatprep.subr.bf16.mxu0 %v1450
        %1514 = vmatpush1.bf16.msra.mxu0 %v1449
        %1515 = vmatprep.subr.bf16.mxu0 %v1452
        %1516 = vmatpush1.bf16.msra.mxu0 %v1451
        %1517 = vmatprep.subr.bf16.mxu0 %v1454
        %1518 = vmatpush1.bf16.msra.mxu0 %v1453
        %1519 = vmatprep.subr.bf16.mxu0 %v1456
        %1520 = vmatpush1.bf16.msra.mxu0 %v1455
        %1521 = vmatprep.subr.bf16.mxu0 %v1458
        %1522 = vmatpush1.bf16.msra.mxu0 %v1457
        %1523 = vmatprep.subr.bf16.mxu0 %v1460
        %1524 = vmatpush1.bf16.msra.mxu0 %v1459
        %1525 = vmatprep.subr.bf16.mxu0 %v1462
        %1526 = vmatpush1.bf16.msra.mxu0 %v1461
        %1527 = vmatprep.subr.bf16.mxu0 %v1464
        %1528 = vmatpush1.bf16.msra.mxu0 %v1463
        %1529 = vmatprep.subr.bf16.mxu0 %v1466
        %1530 = vmatpush1.bf16.msra.mxu0 %v1465
        %1531 = vmatprep.mubr.bf16.mxu0 %v1336
        %1532 = vmatmul.mubr.bf16.gmra.mrb[0].mxu0 %v1324
        %v1533 = vpop.f32.mrb[0].mxu0
        %v1534 = vadd.f32 0.0, %v1533
        %v1535 = vpop.f32.mrb[0].mxu0
        %v1536 = vadd.f32 0.0, %v1535
        %v1537 = vpop.f32.mrb[0].mxu0
        %v1538 = vadd.f32 0.0, %v1537
        %v1539 = vpop.f32.mrb[0].mxu0
        %v1540 = vadd.f32 0.0, %v1539
        %1541 = vdwg.mxu0
        %v1574 = vunpack.c.l.b16 %v1241
        %v1575 = vunpack.c.h.b16 %v1241
        %v1576 = vunpack.c.l.b16 %v1242
        %v1577 = vunpack.c.h.b16 %v1242
        %v1578 = vunpack.c.l.b16 %v1243
        %v1579 = vunpack.c.h.b16 %v1243
        %v1580 = vunpack.c.l.b16 %v1244
        %v1581 = vunpack.c.h.b16 %v1244
        %v1582 = vunpack.c.l.b16 %v1245
        %v1583 = vunpack.c.h.b16 %v1245
        %v1584 = vunpack.c.l.b16 %v1246
        %v1585 = vunpack.c.h.b16 %v1246
        %v1586 = vunpack.c.l.b16 %v1247
        %v1587 = vunpack.c.h.b16 %v1247
        %v1588 = vunpack.c.l.b16 %v1248
        %v1589 = vunpack.c.h.b16 %v1248
        %v1590 = vunpack.c.l.b16 %v1249
        %v1591 = vunpack.c.h.b16 %v1249
        %v1592 = vunpack.c.l.b16 %v1250
        %v1593 = vunpack.c.h.b16 %v1250
        %v1594 = vunpack.c.l.b16 %v1251
        %v1595 = vunpack.c.h.b16 %v1251
        %v1596 = vunpack.c.l.b16 %v1252
        %v1597 = vunpack.c.h.b16 %v1252
        %v1598 = vunpack.c.l.b16 %v1253
        %v1599 = vunpack.c.h.b16 %v1253
        %v1600 = vunpack.c.l.b16 %v1254
        %v1601 = vunpack.c.h.b16 %v1254
        %v1602 = vunpack.c.l.b16 %v1255
        %v1603 = vunpack.c.h.b16 %v1255
        %v1604 = vunpack.c.l.b16 %v1256
        %v1605 = vunpack.c.h.b16 %v1256
        %v1606 = vunpack.c.l.b16 %v1257
        %v1607 = vunpack.c.h.b16 %v1257
        %v1608 = vunpack.c.l.b16 %v1258
        %v1609 = vunpack.c.h.b16 %v1258
        %v1610 = vunpack.c.l.b16 %v1259
        %v1611 = vunpack.c.h.b16 %v1259
        %v1612 = vunpack.c.l.b16 %v1260
        %v1613 = vunpack.c.h.b16 %v1260
        %v1614 = vunpack.c.l.b16 %v1261
        %v1615 = vunpack.c.h.b16 %v1261
        %v1616 = vunpack.c.l.b16 %v1262
        %v1617 = vunpack.c.h.b16 %v1262
        %v1618 = vunpack.c.l.b16 %v1263
        %v1619 = vunpack.c.h.b16 %v1263
        %v1620 = vunpack.c.l.b16 %v1264
        %v1621 = vunpack.c.h.b16 %v1264
        %v1622 = vunpack.c.l.b16 %v1265
        %v1623 = vunpack.c.h.b16 %v1265
        %v1624 = vunpack.c.l.b16 %v1266
        %v1625 = vunpack.c.h.b16 %v1266
        %v1626 = vunpack.c.l.b16 %v1267
        %v1627 = vunpack.c.h.b16 %v1267
        %v1628 = vunpack.c.l.b16 %v1268
        %v1629 = vunpack.c.h.b16 %v1268
        %v1630 = vunpack.c.l.b16 %v1269
        %v1631 = vunpack.c.h.b16 %v1269
        %v1632 = vunpack.c.l.b16 %v1270
        %v1633 = vunpack.c.h.b16 %v1270
        %v1634 = vunpack.c.l.b16 %v1271
        %v1635 = vunpack.c.h.b16 %v1271
        %v1636 = vunpack.c.l.b16 %v1272
        %v1637 = vunpack.c.h.b16 %v1272
        %v1638 = vpack.c.b16 %v1576, %v1574
        %v1639 = vpack.c.b16 %v1577, %v1575
        %v1640 = vpack.c.b16 %v1580, %v1578
        %v1641 = vpack.c.b16 %v1581, %v1579
        %v1642 = vpack.c.b16 %v1584, %v1582
        %v1643 = vpack.c.b16 %v1585, %v1583
        %v1644 = vpack.c.b16 %v1588, %v1586
        %v1645 = vpack.c.b16 %v1589, %v1587
        %v1646 = vpack.c.b16 %v1592, %v1590
        %v1647 = vpack.c.b16 %v1593, %v1591
        %v1648 = vpack.c.b16 %v1596, %v1594
        %v1649 = vpack.c.b16 %v1597, %v1595
        %v1650 = vpack.c.b16 %v1600, %v1598
        %v1651 = vpack.c.b16 %v1601, %v1599
        %v1652 = vpack.c.b16 %v1604, %v1602
        %v1653 = vpack.c.b16 %v1605, %v1603
        %v1654 = vpack.c.b16 %v1608, %v1606
        %v1655 = vpack.c.b16 %v1609, %v1607
        %v1656 = vpack.c.b16 %v1612, %v1610
        %v1657 = vpack.c.b16 %v1613, %v1611
        %v1658 = vpack.c.b16 %v1616, %v1614
        %v1659 = vpack.c.b16 %v1617, %v1615
        %v1660 = vpack.c.b16 %v1620, %v1618
        %v1661 = vpack.c.b16 %v1621, %v1619
        %v1662 = vpack.c.b16 %v1624, %v1622
        %v1663 = vpack.c.b16 %v1625, %v1623
        %v1664 = vpack.c.b16 %v1628, %v1626
        %v1665 = vpack.c.b16 %v1629, %v1627
        %v1666 = vpack.c.b16 %v1632, %v1630
        %v1667 = vpack.c.b16 %v1633, %v1631
        %v1668 = vpack.c.b16 %v1636, %v1634
        %v1669 = vpack.c.b16 %v1637, %v1635
        %1702 = vmatprep.subr.bf16.mxu0 %v1639
        %1703 = vmatpush1.bf16.msra.mxu0 %v1638
        %1704 = vmatprep.subr.bf16.mxu0 %v1641
        %1705 = vmatpush1.bf16.msra.mxu0 %v1640
        %1706 = vmatprep.subr.bf16.mxu0 %v1643
        %1707 = vmatpush1.bf16.msra.mxu0 %v1642
        %1708 = vmatprep.subr.bf16.mxu0 %v1645
        %1709 = vmatpush1.bf16.msra.mxu0 %v1644
        %1710 = vmatprep.subr.bf16.mxu0 %v1647
        %1711 = vmatpush1.bf16.msra.mxu0 %v1646
        %1712 = vmatprep.subr.bf16.mxu0 %v1649
        %1713 = vmatpush1.bf16.msra.mxu0 %v1648
        %1714 = vmatprep.subr.bf16.mxu0 %v1651
        %1715 = vmatpush1.bf16.msra.mxu0 %v1650
        %1716 = vmatprep.subr.bf16.mxu0 %v1653
        %1717 = vmatpush1.bf16.msra.mxu0 %v1652
        %1718 = vmatprep.subr.bf16.mxu0 %v1655
        %1719 = vmatpush1.bf16.msra.mxu0 %v1654
        %1720 = vmatprep.subr.bf16.mxu0 %v1657
        %1721 = vmatpush1.bf16.msra.mxu0 %v1656
        %1722 = vmatprep.subr.bf16.mxu0 %v1659
        %1723 = vmatpush1.bf16.msra.mxu0 %v1658
        %1724 = vmatprep.subr.bf16.mxu0 %v1661
        %1725 = vmatpush1.bf16.msra.mxu0 %v1660
        %1726 = vmatprep.subr.bf16.mxu0 %v1663
        %1727 = vmatpush1.bf16.msra.mxu0 %v1662
        %1728 = vmatprep.subr.bf16.mxu0 %v1665
        %1729 = vmatpush1.bf16.msra.mxu0 %v1664
        %1730 = vmatprep.subr.bf16.mxu0 %v1667
        %1731 = vmatpush1.bf16.msra.mxu0 %v1666
        %1732 = vmatprep.subr.bf16.mxu0 %v1669
        %1733 = vmatpush1.bf16.msra.mxu0 %v1668
        %1734 = vmatprep.mubr.bf16.mxu0 %v1240
        %1735 = vmatmul.mubr.bf16.gmra.mrb[0].mxu0 %v1239
        %v1736 = vpop.f32.mrb[0].mxu0
        %v1737 = vadd.f32 %v1534, %v1736
        %v1738 = vpop.f32.mrb[0].mxu0
        %v1739 = vadd.f32 %v1536, %v1738
        %v1740 = vpop.f32.mrb[0].mxu0
        %v1741 = vadd.f32 %v1538, %v1740
        %v1742 = vpop.f32.mrb[0].mxu0
        %v1743 = vadd.f32 %v1540, %v1742
        %1744 = vdwg.mxu0
        %v1745 = vld [vmem:[#allocation2] sm:$0xfc]
        %v1746 = vld [vmem:[#allocation2 + $0x8] sm:$0xfc]
        %v1747 = vld [vmem:[#allocation2 + $0x20] sm:$0x3]
        %v1748 = vld [vmem:[#allocation2 + $0x28] sm:$0x3]
        %v1749 = vpack.c.bf16 %v1237, %v1745
        %v1750 = vpack.c.bf16 %v1238, %v1746
        %v1751 = vpack.c.bf16 %v1747, %v1747
        %v1752 = vpack.c.bf16 %v1748, %v1748
        %v1753 = vld [vmem:[%s930] sm:$0xff]
        %v1754 = vld [vmem:[%s930 + $0x8] sm:$0xff]
        %v1755 = vld [vmem:[%s930 + $0x10] sm:$0xff]
        %v1756 = vld [vmem:[%s930 + $0x18] sm:$0xff]
        %v1757 = vld [vmem:[%s930 + $0x20] sm:$0xff]
        %v1758 = vld [vmem:[%s930 + $0x28] sm:$0xff]
        %v1759 = vld [vmem:[%s930 + $0x30] sm:$0xff]
        %v1760 = vld [vmem:[%s930 + $0x38] sm:$0xff]
        %v1761 = vld [vmem:[%s930 + $0x40] sm:$0xff]
        %v1762 = vld [vmem:[%s930 + $0x48] sm:$0xff]
        %v1763 = vld [vmem:[%s930 + $0x50] sm:$0xff]
        %v1764 = vld [vmem:[%s930 + $0x58] sm:$0xff]
        %v1765 = vld [vmem:[%s930 + $0x60] sm:$0xff]
        %v1766 = vld [vmem:[%s930 + $0x68] sm:$0xff]
        %v1767 = vld [vmem:[%s930 + $0x70] sm:$0xff]
        %v1768 = vld [vmem:[%s930 + $0x78] sm:$0xff]
        %v1769 = vld [vmem:[%s930 + $0x80] sm:$0xff]
        %v1770 = vld [vmem:[%s930 + $0x88] sm:$0xff]
        %v1771 = vld [vmem:[%s930 + $0x90] sm:$0xff]
        %v1772 = vld [vmem:[%s930 + $0x98] sm:$0xff]
        %v1773 = vld [vmem:[%s930 + $0xa0] sm:$0xff]
        %v1774 = vld [vmem:[%s930 + $0xa8] sm:$0xff]
        %v1775 = vld [vmem:[%s930 + $0xb0] sm:$0xff]
        %v1776 = vld [vmem:[%s930 + $0xb8] sm:$0xff]
        %v1777 = vld [vmem:[%s930 + $0xc0] sm:$0xff]
        %v1778 = vld [vmem:[%s930 + $0xc8] sm:$0xff]
        %v1779 = vld [vmem:[%s930 + $0xd0] sm:$0xff]
        %v1780 = vld [vmem:[%s930 + $0xd8] sm:$0xff]
        %v1781 = vld [vmem:[%s930 + $0xe0] sm:$0xff]
        %v1782 = vld [vmem:[%s930 + $0xe8] sm:$0xff]
        %v1783 = vld [vmem:[%s930 + $0xf0] sm:$0xff]
        %v1784 = vld [vmem:[%s930 + $0xf8] sm:$0xff]
        %v1789 = vrot.slane %v1749, 1
        %v1790 = vrot.slane %v1751, 1
        %v1791 = vsel %vm967, %v1789, %v1790
        %v1792 = vrot.slane %v1750, 1
        %v1793 = vrot.slane %v1752, 1
        %v1794 = vsel %vm967, %v1792, %v1793
        %v1829 = vunpack.c.l.b16 %v1753
        %v1830 = vunpack.c.h.b16 %v1753
        %v1831 = vunpack.c.l.b16 %v1754
        %v1832 = vunpack.c.h.b16 %v1754
        %v1833 = vunpack.c.l.b16 %v1755
        %v1834 = vunpack.c.h.b16 %v1755
        %v1835 = vunpack.c.l.b16 %v1756
        %v1836 = vunpack.c.h.b16 %v1756
        %v1837 = vunpack.c.l.b16 %v1757
        %v1838 = vunpack.c.h.b16 %v1757
        %v1839 = vunpack.c.l.b16 %v1758
        %v1840 = vunpack.c.h.b16 %v1758
        %v1841 = vunpack.c.l.b16 %v1759
        %v1842 = vunpack.c.h.b16 %v1759
        %v1843 = vunpack.c.l.b16 %v1760
        %v1844 = vunpack.c.h.b16 %v1760
        %v1845 = vunpack.c.l.b16 %v1761
        %v1846 = vunpack.c.h.b16 %v1761
        %v1847 = vunpack.c.l.b16 %v1762
        %v1848 = vunpack.c.h.b16 %v1762
        %v1849 = vunpack.c.l.b16 %v1763
        %v1850 = vunpack.c.h.b16 %v1763
        %v1851 = vunpack.c.l.b16 %v1764
        %v1852 = vunpack.c.h.b16 %v1764
        %v1853 = vunpack.c.l.b16 %v1765
        %v1854 = vunpack.c.h.b16 %v1765
        %v1855 = vunpack.c.l.b16 %v1766
        %v1856 = vunpack.c.h.b16 %v1766
        %v1857 = vunpack.c.l.b16 %v1767
        %v1858 = vunpack.c.h.b16 %v1767
        %v1859 = vunpack.c.l.b16 %v1768
        %v1860 = vunpack.c.h.b16 %v1768
        %v1861 = vunpack.c.l.b16 %v1769
        %v1862 = vunpack.c.h.b16 %v1769
        %v1863 = vunpack.c.l.b16 %v1770
        %v1864 = vunpack.c.h.b16 %v1770
        %v1865 = vunpack.c.l.b16 %v1771
        %v1866 = vunpack.c.h.b16 %v1771
        %v1867 = vunpack.c.l.b16 %v1772
        %v1868 = vunpack.c.h.b16 %v1772
        %v1869 = vunpack.c.l.b16 %v1773
        %v1870 = vunpack.c.h.b16 %v1773
        %v1871 = vunpack.c.l.b16 %v1774
        %v1872 = vunpack.c.h.b16 %v1774
        %v1873 = vunpack.c.l.b16 %v1775
        %v1874 = vunpack.c.h.b16 %v1775
        %v1875 = vunpack.c.l.b16 %v1776
        %v1876 = vunpack.c.h.b16 %v1776
        %v1877 = vunpack.c.l.b16 %v1777
        %v1878 = vunpack.c.h.b16 %v1777
        %v1879 = vunpack.c.l.b16 %v1778
        %v1880 = vunpack.c.h.b16 %v1778
        %v1881 = vunpack.c.l.b16 %v1779
        %v1882 = vunpack.c.h.b16 %v1779
        %v1883 = vunpack.c.l.b16 %v1780
        %v1884 = vunpack.c.h.b16 %v1780
        %v1885 = vunpack.c.l.b16 %v1781
        %v1886 = vunpack.c.h.b16 %v1781
        %v1887 = vunpack.c.l.b16 %v1782
        %v1888 = vunpack.c.h.b16 %v1782
        %v1889 = vunpack.c.l.b16 %v1783
        %v1890 = vunpack.c.h.b16 %v1783
        %v1891 = vunpack.c.l.b16 %v1784
        %v1892 = vunpack.c.h.b16 %v1784
        %v1893 = vpack.c.b16 %v1831, %v1829
        %v1894 = vpack.c.b16 %v1832, %v1830
        %v1895 = vpack.c.b16 %v1835, %v1833
        %v1896 = vpack.c.b16 %v1836, %v1834
        %v1897 = vpack.c.b16 %v1839, %v1837
        %v1898 = vpack.c.b16 %v1840, %v1838
        %v1899 = vpack.c.b16 %v1843, %v1841
        %v1900 = vpack.c.b16 %v1844, %v1842
        %v1901 = vpack.c.b16 %v1847, %v1845
        %v1902 = vpack.c.b16 %v1848, %v1846
        %v1903 = vpack.c.b16 %v1851, %v1849
        %v1904 = vpack.c.b16 %v1852, %v1850
        %v1905 = vpack.c.b16 %v1855, %v1853
        %v1906 = vpack.c.b16 %v1856, %v1854
        %v1907 = vpack.c.b16 %v1859, %v1857
        %v1908 = vpack.c.b16 %v1860, %v1858
        %v1909 = vpack.c.b16 %v1863, %v1861
        %v1910 = vpack.c.b16 %v1864, %v1862
        %v1911 = vpack.c.b16 %v1867, %v1865
        %v1912 = vpack.c.b16 %v1868, %v1866
        %v1913 = vpack.c.b16 %v1871, %v1869
        %v1914 = vpack.c.b16 %v1872, %v1870
        %v1915 = vpack.c.b16 %v1875, %v1873
        %v1916 = vpack.c.b16 %v1876, %v1874
        %v1917 = vpack.c.b16 %v1879, %v1877
        %v1918 = vpack.c.b16 %v1880, %v1878
        %v1919 = vpack.c.b16 %v1883, %v1881
        %v1920 = vpack.c.b16 %v1884, %v1882
        %v1921 = vpack.c.b16 %v1887, %v1885
        %v1922 = vpack.c.b16 %v1888, %v1886
        %v1923 = vpack.c.b16 %v1891, %v1889
        %v1924 = vpack.c.b16 %v1892, %v1890
        %1957 = vmatprep.subr.bf16.mxu0 %v1894
        %1958 = vmatpush1.bf16.msra.mxu0 %v1893
        %1959 = vmatprep.subr.bf16.mxu0 %v1896
        %1960 = vmatpush1.bf16.msra.mxu0 %v1895
        %1961 = vmatprep.subr.bf16.mxu0 %v1898
        %1962 = vmatpush1.bf16.msra.mxu0 %v1897
        %1963 = vmatprep.subr.bf16.mxu0 %v1900
        %1964 = vmatpush1.bf16.msra.mxu0 %v1899
        %1965 = vmatprep.subr.bf16.mxu0 %v1902
        %1966 = vmatpush1.bf16.msra.mxu0 %v1901
        %1967 = vmatprep.subr.bf16.mxu0 %v1904
        %1968 = vmatpush1.bf16.msra.mxu0 %v1903
        %1969 = vmatprep.subr.bf16.mxu0 %v1906
        %1970 = vmatpush1.bf16.msra.mxu0 %v1905
        %1971 = vmatprep.subr.bf16.mxu0 %v1908
        %1972 = vmatpush1.bf16.msra.mxu0 %v1907
        %1973 = vmatprep.subr.bf16.mxu0 %v1910
        %1974 = vmatpush1.bf16.msra.mxu0 %v1909
        %1975 = vmatprep.subr.bf16.mxu0 %v1912
        %1976 = vmatpush1.bf16.msra.mxu0 %v1911
        %1977 = vmatprep.subr.bf16.mxu0 %v1914
        %1978 = vmatpush1.bf16.msra.mxu0 %v1913
        %1979 = vmatprep.subr.bf16.mxu0 %v1916
        %1980 = vmatpush1.bf16.msra.mxu0 %v1915
        %1981 = vmatprep.subr.bf16.mxu0 %v1918
        %1982 = vmatpush1.bf16.msra.mxu0 %v1917
        %1983 = vmatprep.subr.bf16.mxu0 %v1920
        %1984 = vmatpush1.bf16.msra.mxu0 %v1919
        %1985 = vmatprep.subr.bf16.mxu0 %v1922
        %1986 = vmatpush1.bf16.msra.mxu0 %v1921
        %1987 = vmatprep.subr.bf16.mxu0 %v1924
        %1988 = vmatpush1.bf16.msra.mxu0 %v1923
        %1989 = vmatprep.mubr.bf16.mxu0 %v1794
        %1990 = vmatmul.mubr.bf16.gmra.mrb[0].mxu0 %v1791
        %v1991 = vpop.f32.mrb[0].mxu0
        %v1992 = vadd.f32 0.0, %v1991
        %v1993 = vpop.f32.mrb[0].mxu0
        %v1994 = vadd.f32 0.0, %v1993
        %v1995 = vpop.f32.mrb[0].mxu0
        %v1996 = vadd.f32 0.0, %v1995
        %v1997 = vpop.f32.mrb[0].mxu0
        %v1998 = vadd.f32 0.0, %v1997
        %1999 = vdwg.mxu0
        %v2000 = vadd.f32 %v1737, %v1992
        %v2001 = vadd.f32 %v1739, %v1994
        %v2002 = vadd.f32 %v1741, %v1996
        %v2003 = vadd.f32 %v1743, %v1998
        %v2004 = vadd.f32 %v2000, %v1196
        %v2005 = vadd.f32 %v2001, %v1200
        %v2006 = vadd.f32 %v2002, %v1196
        %v2007 = vadd.f32 %v2003, %v1200
        %v2008 = vmax.f32 %v2004, 0.0
        %v2009 = vmax.f32 %v2005, 0.0
        %v2010 = vmax.f32 %v2006, 0.0
        %v2011 = vmax.f32 %v2007, 0.0
        %v2012 = vadd.f32 %v2008, %v379
        %v2013 = vadd.f32 %v2009, %v381
        %v2014 = vadd.f32 %v2010, %v383
        %v2015 = vadd.f32 %v2011, %v385
        %v2020 = vrot.slane %v2012, 7
        %v2021 = vrot.slane %v2013, 7
        %v2022 = vrot.slane %v2014, 7
        %v2023 = vsel %vm391, %v2020, %v2022
        %v2024 = vrot.slane %v2015, 7
        %v2025 = vsel %vm391, %v2021, %v2024
        %2032 = vst [vmem:[#allocation2] sm:$0xfe] %v2020
        %2033 = vst [vmem:[#allocation2 + $0x8] sm:$0xfe] %v2021
        %2034 = vst [vmem:[#allocation2 + $0x10] sm:$0xff] %v2023
        %2035 = vst [vmem:[#allocation2 + $0x18] sm:$0xff] %v2025
        %2036 = vst [vmem:[#allocation2 + $0x20] sm:$0x1] %v2022
        %2037 = vst [vmem:[#allocation2 + $0x28] sm:$0x1] %v2024
        %v2038 = vld [vmem:[#allocation2] sm:$0xff]
        %v2039 = vld [vmem:[#allocation2 + $0x8] sm:$0xff]
        %v2040 = vld [vmem:[#allocation2 + $0x10] sm:$0xff]
        %v2041 = vld [vmem:[#allocation2 + $0x18] sm:$0xff]
        %v2042 = vpack.c.bf16 %v2040, %v2038
        %v2043 = vpack.c.bf16 %v2041, %v2039
        %v2044 = vld [vmem:[#allocation3] sm:$0xff]
        %v2045 = vld [vmem:[#allocation3 + $0x8] sm:$0xff]
        %v2046 = vld [vmem:[#allocation3 + $0x10] sm:$0xff]
        %v2047 = vld [vmem:[#allocation3 + $0x18] sm:$0xff]
        %v2048 = vld [vmem:[#allocation3 + $0x20] sm:$0xff]
        %v2049 = vld [vmem:[#allocation3 + $0x28] sm:$0xff]
        %v2050 = vld [vmem:[#allocation3 + $0x30] sm:$0xff]
        %v2051 = vld [vmem:[#allocation3 + $0x38] sm:$0xff]
        %v2052 = vld [vmem:[#allocation3 + $0x40] sm:$0xff]
        %v2053 = vld [vmem:[#allocation3 + $0x48] sm:$0xff]
        %v2054 = vld [vmem:[#allocation3 + $0x50] sm:$0xff]
        %v2055 = vld [vmem:[#allocation3 + $0x58] sm:$0xff]
        %v2056 = vld [vmem:[#allocation3 + $0x60] sm:$0xff]
        %v2057 = vld [vmem:[#allocation3 + $0x68] sm:$0xff]
        %v2058 = vld [vmem:[#allocation3 + $0x70] sm:$0xff]
        %v2059 = vld [vmem:[#allocation3 + $0x78] sm:$0xff]
        %v2060 = vld [vmem:[#allocation3 + $0x80] sm:$0xff]
        %v2061 = vld [vmem:[#allocation3 + $0x88] sm:$0xff]
        %v2062 = vld [vmem:[#allocation3 + $0x90] sm:$0xff]
        %v2063 = vld [vmem:[#allocation3 + $0x98] sm:$0xff]
        %v2064 = vld [vmem:[#allocation3 + $0xa0] sm:$0xff]
        %v2065 = vld [vmem:[#allocation3 + $0xa8] sm:$0xff]
        %v2066 = vld [vmem:[#allocation3 + $0xb0] sm:$0xff]
        %v2067 = vld [vmem:[#allocation3 + $0xb8] sm:$0xff]
        %v2068 = vld [vmem:[#allocation3 + $0xc0] sm:$0xff]
        %v2069 = vld [vmem:[#allocation3 + $0xc8] sm:$0xff]
        %v2070 = vld [vmem:[#allocation3 + $0xd0] sm:$0xff]
        %v2071 = vld [vmem:[#allocation3 + $0xd8] sm:$0xff]
        %v2072 = vld [vmem:[#allocation3 + $0xe0] sm:$0xff]
        %v2073 = vld [vmem:[#allocation3 + $0xe8] sm:$0xff]
        %v2074 = vld [vmem:[#allocation3 + $0xf0] sm:$0xff]
        %v2075 = vld [vmem:[#allocation3 + $0xf8] sm:$0xff]
        %v2076 = vld [vmem:[#allocation2] sm:$0xfe]
        %v2077 = vld [vmem:[#allocation2 + $0x8] sm:$0xfe]
        %v2078 = vld [vmem:[#allocation2 + $0x20] sm:$0x1]
        %v2079 = vld [vmem:[#allocation2 + $0x28] sm:$0x1]
        %v2080 = vpack.c.bf16 %v2040, %v2076
        %v2081 = vpack.c.bf16 %v2041, %v2077
        %v2082 = vpack.c.bf16 %v2078, %v2078
        %v2083 = vpack.c.bf16 %v2079, %v2079
        %v2084 = vld [vmem:[%s456] sm:$0xff]
        %v2085 = vld [vmem:[%s456 + $0x8] sm:$0xff]
        %v2086 = vld [vmem:[%s456 + $0x10] sm:$0xff]
        %v2087 = vld [vmem:[%s456 + $0x18] sm:$0xff]
        %v2088 = vld [vmem:[%s456 + $0x20] sm:$0xff]
        %v2089 = vld [vmem:[%s456 + $0x28] sm:$0xff]
        %v2090 = vld [vmem:[%s456 + $0x30] sm:$0xff]
        %v2091 = vld [vmem:[%s456 + $0x38] sm:$0xff]
        %v2092 = vld [vmem:[%s456 + $0x40] sm:$0xff]
        %v2093 = vld [vmem:[%s456 + $0x48] sm:$0xff]
        %v2094 = vld [vmem:[%s456 + $0x50] sm:$0xff]
        %v2095 = vld [vmem:[%s456 + $0x58] sm:$0xff]
        %v2096 = vld [vmem:[%s456 + $0x60] sm:$0xff]
        %v2097 = vld [vmem:[%s456 + $0x68] sm:$0xff]
        %v2098 = vld [vmem:[%s456 + $0x70] sm:$0xff]
        %v2099 = vld [vmem:[%s456 + $0x78] sm:$0xff]
        %v2100 = vld [vmem:[%s456 + $0x80] sm:$0xff]
        %v2101 = vld [vmem:[%s456 + $0x88] sm:$0xff]
        %v2102 = vld [vmem:[%s456 + $0x90] sm:$0xff]
        %v2103 = vld [vmem:[%s456 + $0x98] sm:$0xff]
        %v2104 = vld [vmem:[%s456 + $0xa0] sm:$0xff]
        %v2105 = vld [vmem:[%s456 + $0xa8] sm:$0xff]
        %v2106 = vld [vmem:[%s456 + $0xb0] sm:$0xff]
        %v2107 = vld [vmem:[%s456 + $0xb8] sm:$0xff]
        %v2108 = vld [vmem:[%s456 + $0xc0] sm:$0xff]
        %v2109 = vld [vmem:[%s456 + $0xc8] sm:$0xff]
        %v2110 = vld [vmem:[%s456 + $0xd0] sm:$0xff]
        %v2111 = vld [vmem:[%s456 + $0xd8] sm:$0xff]
        %v2112 = vld [vmem:[%s456 + $0xe0] sm:$0xff]
        %v2113 = vld [vmem:[%s456 + $0xe8] sm:$0xff]
        %v2114 = vld [vmem:[%s456 + $0xf0] sm:$0xff]
        %v2115 = vld [vmem:[%s456 + $0xf8] sm:$0xff]
        %v2117 = vshrl.u32 %v2080, 16
        %v2119 = vshll.u32 %v2080, 16
        %v2121 = vrot.slane %v2119, 1
        %v2122 = vor.u32 %v2117, %v2121
        %v2124 = vshll.u32 %v2082, 16
        %v2126 = vrot.slane %v2124, 1
        %v2127 = vsel %vm489, %v2122, %v2126
        %v2129 = vshrl.u32 %v2081, 16
        %v2131 = vshll.u32 %v2081, 16
        %v2133 = vrot.slane %v2131, 1
        %v2134 = vor.u32 %v2129, %v2133
        %v2136 = vshll.u32 %v2083, 16
        %v2138 = vrot.slane %v2136, 1
        %v2139 = vsel %vm489, %v2134, %v2138
        %v2174 = vunpack.c.l.b16 %v2084
        %v2175 = vunpack.c.h.b16 %v2084
        %v2176 = vunpack.c.l.b16 %v2085
        %v2177 = vunpack.c.h.b16 %v2085
        %v2178 = vunpack.c.l.b16 %v2086
        %v2179 = vunpack.c.h.b16 %v2086
        %v2180 = vunpack.c.l.b16 %v2087
        %v2181 = vunpack.c.h.b16 %v2087
        %v2182 = vunpack.c.l.b16 %v2088
        %v2183 = vunpack.c.h.b16 %v2088
        %v2184 = vunpack.c.l.b16 %v2089
        %v2185 = vunpack.c.h.b16 %v2089
        %v2186 = vunpack.c.l.b16 %v2090
        %v2187 = vunpack.c.h.b16 %v2090
        %v2188 = vunpack.c.l.b16 %v2091
        %v2189 = vunpack.c.h.b16 %v2091
        %v2190 = vunpack.c.l.b16 %v2092
        %v2191 = vunpack.c.h.b16 %v2092
        %v2192 = vunpack.c.l.b16 %v2093
        %v2193 = vunpack.c.h.b16 %v2093
        %v2194 = vunpack.c.l.b16 %v2094
        %v2195 = vunpack.c.h.b16 %v2094
        %v2196 = vunpack.c.l.b16 %v2095
        %v2197 = vunpack.c.h.b16 %v2095
        %v2198 = vunpack.c.l.b16 %v2096
        %v2199 = vunpack.c.h.b16 %v2096
        %v2200 = vunpack.c.l.b16 %v2097
        %v2201 = vunpack.c.h.b16 %v2097
        %v2202 = vunpack.c.l.b16 %v2098
        %v2203 = vunpack.c.h.b16 %v2098
        %v2204 = vunpack.c.l.b16 %v2099
        %v2205 = vunpack.c.h.b16 %v2099
        %v2206 = vunpack.c.l.b16 %v2100
        %v2207 = vunpack.c.h.b16 %v2100
        %v2208 = vunpack.c.l.b16 %v2101
        %v2209 = vunpack.c.h.b16 %v2101
        %v2210 = vunpack.c.l.b16 %v2102
        %v2211 = vunpack.c.h.b16 %v2102
        %v2212 = vunpack.c.l.b16 %v2103
        %v2213 = vunpack.c.h.b16 %v2103
        %v2214 = vunpack.c.l.b16 %v2104
        %v2215 = vunpack.c.h.b16 %v2104
        %v2216 = vunpack.c.l.b16 %v2105
        %v2217 = vunpack.c.h.b16 %v2105
        %v2218 = vunpack.c.l.b16 %v2106
        %v2219 = vunpack.c.h.b16 %v2106
        %v2220 = vunpack.c.l.b16 %v2107
        %v2221 = vunpack.c.h.b16 %v2107
        %v2222 = vunpack.c.l.b16 %v2108
        %v2223 = vunpack.c.h.b16 %v2108
        %v2224 = vunpack.c.l.b16 %v2109
        %v2225 = vunpack.c.h.b16 %v2109
        %v2226 = vunpack.c.l.b16 %v2110
        %v2227 = vunpack.c.h.b16 %v2110
        %v2228 = vunpack.c.l.b16 %v2111
        %v2229 = vunpack.c.h.b16 %v2111
        %v2230 = vunpack.c.l.b16 %v2112
        %v2231 = vunpack.c.h.b16 %v2112
        %v2232 = vunpack.c.l.b16 %v2113
        %v2233 = vunpack.c.h.b16 %v2113
        %v2234 = vunpack.c.l.b16 %v2114
        %v2235 = vunpack.c.h.b16 %v2114
        %v2236 = vunpack.c.l.b16 %v2115
        %v2237 = vunpack.c.h.b16 %v2115
        %v2238 = vpack.c.b16 %v2176, %v2174
        %v2239 = vpack.c.b16 %v2177, %v2175
        %v2240 = vpack.c.b16 %v2180, %v2178
        %v2241 = vpack.c.b16 %v2181, %v2179
        %v2242 = vpack.c.b16 %v2184, %v2182
        %v2243 = vpack.c.b16 %v2185, %v2183
        %v2244 = vpack.c.b16 %v2188, %v2186
        %v2245 = vpack.c.b16 %v2189, %v2187
        %v2246 = vpack.c.b16 %v2192, %v2190
        %v2247 = vpack.c.b16 %v2193, %v2191
        %v2248 = vpack.c.b16 %v2196, %v2194
        %v2249 = vpack.c.b16 %v2197, %v2195
        %v2250 = vpack.c.b16 %v2200, %v2198
        %v2251 = vpack.c.b16 %v2201, %v2199
        %v2252 = vpack.c.b16 %v2204, %v2202
        %v2253 = vpack.c.b16 %v2205, %v2203
        %v2254 = vpack.c.b16 %v2208, %v2206
        %v2255 = vpack.c.b16 %v2209, %v2207
        %v2256 = vpack.c.b16 %v2212, %v2210
        %v2257 = vpack.c.b16 %v2213, %v2211
        %v2258 = vpack.c.b16 %v2216, %v2214
        %v2259 = vpack.c.b16 %v2217, %v2215
        %v2260 = vpack.c.b16 %v2220, %v2218
        %v2261 = vpack.c.b16 %v2221, %v2219
        %v2262 = vpack.c.b16 %v2224, %v2222
        %v2263 = vpack.c.b16 %v2225, %v2223
        %v2264 = vpack.c.b16 %v2228, %v2226
        %v2265 = vpack.c.b16 %v2229, %v2227
        %v2266 = vpack.c.b16 %v2232, %v2230
        %v2267 = vpack.c.b16 %v2233, %v2231
        %v2268 = vpack.c.b16 %v2236, %v2234
        %v2269 = vpack.c.b16 %v2237, %v2235
        %2302 = vmatprep.subr.bf16.mxu0 %v2239
        %2303 = vmatpush1.bf16.msra.mxu0 %v2238
        %2304 = vmatprep.subr.bf16.mxu0 %v2241
        %2305 = vmatpush1.bf16.msra.mxu0 %v2240
        %2306 = vmatprep.subr.bf16.mxu0 %v2243
        %2307 = vmatpush1.bf16.msra.mxu0 %v2242
        %2308 = vmatprep.subr.bf16.mxu0 %v2245
        %2309 = vmatpush1.bf16.msra.mxu0 %v2244
        %2310 = vmatprep.subr.bf16.mxu0 %v2247
        %2311 = vmatpush1.bf16.msra.mxu0 %v2246
        %2312 = vmatprep.subr.bf16.mxu0 %v2249
        %2313 = vmatpush1.bf16.msra.mxu0 %v2248
        %2314 = vmatprep.subr.bf16.mxu0 %v2251
        %2315 = vmatpush1.bf16.msra.mxu0 %v2250
        %2316 = vmatprep.subr.bf16.mxu0 %v2253
        %2317 = vmatpush1.bf16.msra.mxu0 %v2252
        %2318 = vmatprep.subr.bf16.mxu0 %v2255
        %2319 = vmatpush1.bf16.msra.mxu0 %v2254
        %2320 = vmatprep.subr.bf16.mxu0 %v2257
        %2321 = vmatpush1.bf16.msra.mxu0 %v2256
        %2322 = vmatprep.subr.bf16.mxu0 %v2259
        %2323 = vmatpush1.bf16.msra.mxu0 %v2258
        %2324 = vmatprep.subr.bf16.mxu0 %v2261
        %2325 = vmatpush1.bf16.msra.mxu0 %v2260
        %2326 = vmatprep.subr.bf16.mxu0 %v2263
        %2327 = vmatpush1.bf16.msra.mxu0 %v2262
        %2328 = vmatprep.subr.bf16.mxu0 %v2265
        %2329 = vmatpush1.bf16.msra.mxu0 %v2264
        %2330 = vmatprep.subr.bf16.mxu0 %v2267
        %2331 = vmatpush1.bf16.msra.mxu0 %v2266
        %2332 = vmatprep.subr.bf16.mxu0 %v2269
        %2333 = vmatpush1.bf16.msra.mxu0 %v2268
        %2334 = vmatprep.mubr.bf16.mxu0 %v2139
        %2335 = vmatmul.mubr.bf16.gmra.mrb[0].mxu0 %v2127
        %v2336 = vpop.f32.mrb[0].mxu0
        %v2337 = vadd.f32 0.0, %v2336
        %v2338 = vpop.f32.mrb[0].mxu0
        %v2339 = vadd.f32 0.0, %v2338
        %v2340 = vpop.f32.mrb[0].mxu0
        %v2341 = vadd.f32 0.0, %v2340
        %v2342 = vpop.f32.mrb[0].mxu0
        %v2343 = vadd.f32 0.0, %v2342
        %2344 = vdwg.mxu0
        %v2377 = vunpack.c.l.b16 %v2044
        %v2378 = vunpack.c.h.b16 %v2044
        %v2379 = vunpack.c.l.b16 %v2045
        %v2380 = vunpack.c.h.b16 %v2045
        %v2381 = vunpack.c.l.b16 %v2046
        %v2382 = vunpack.c.h.b16 %v2046
        %v2383 = vunpack.c.l.b16 %v2047
        %v2384 = vunpack.c.h.b16 %v2047
        %v2385 = vunpack.c.l.b16 %v2048
        %v2386 = vunpack.c.h.b16 %v2048
        %v2387 = vunpack.c.l.b16 %v2049
        %v2388 = vunpack.c.h.b16 %v2049
        %v2389 = vunpack.c.l.b16 %v2050
        %v2390 = vunpack.c.h.b16 %v2050
        %v2391 = vunpack.c.l.b16 %v2051
        %v2392 = vunpack.c.h.b16 %v2051
        %v2393 = vunpack.c.l.b16 %v2052
        %v2394 = vunpack.c.h.b16 %v2052
        %v2395 = vunpack.c.l.b16 %v2053
        %v2396 = vunpack.c.h.b16 %v2053
        %v2397 = vunpack.c.l.b16 %v2054
        %v2398 = vunpack.c.h.b16 %v2054
        %v2399 = vunpack.c.l.b16 %v2055
        %v2400 = vunpack.c.h.b16 %v2055
        %v2401 = vunpack.c.l.b16 %v2056
        %v2402 = vunpack.c.h.b16 %v2056
        %v2403 = vunpack.c.l.b16 %v2057
        %v2404 = vunpack.c.h.b16 %v2057
        %v2405 = vunpack.c.l.b16 %v2058
        %v2406 = vunpack.c.h.b16 %v2058
        %v2407 = vunpack.c.l.b16 %v2059
        %v2408 = vunpack.c.h.b16 %v2059
        %v2409 = vunpack.c.l.b16 %v2060
        %v2410 = vunpack.c.h.b16 %v2060
        %v2411 = vunpack.c.l.b16 %v2061
        %v2412 = vunpack.c.h.b16 %v2061
        %v2413 = vunpack.c.l.b16 %v2062
        %v2414 = vunpack.c.h.b16 %v2062
        %v2415 = vunpack.c.l.b16 %v2063
        %v2416 = vunpack.c.h.b16 %v2063
        %v2417 = vunpack.c.l.b16 %v2064
        %v2418 = vunpack.c.h.b16 %v2064
        %v2419 = vunpack.c.l.b16 %v2065
        %v2420 = vunpack.c.h.b16 %v2065
        %v2421 = vunpack.c.l.b16 %v2066
        %v2422 = vunpack.c.h.b16 %v2066
        %v2423 = vunpack.c.l.b16 %v2067
        %v2424 = vunpack.c.h.b16 %v2067
        %v2425 = vunpack.c.l.b16 %v2068
        %v2426 = vunpack.c.h.b16 %v2068
        %v2427 = vunpack.c.l.b16 %v2069
        %v2428 = vunpack.c.h.b16 %v2069
        %v2429 = vunpack.c.l.b16 %v2070
        %v2430 = vunpack.c.h.b16 %v2070
        %v2431 = vunpack.c.l.b16 %v2071
        %v2432 = vunpack.c.h.b16 %v2071
        %v2433 = vunpack.c.l.b16 %v2072
        %v2434 = vunpack.c.h.b16 %v2072
        %v2435 = vunpack.c.l.b16 %v2073
        %v2436 = vunpack.c.h.b16 %v2073
        %v2437 = vunpack.c.l.b16 %v2074
        %v2438 = vunpack.c.h.b16 %v2074
        %v2439 = vunpack.c.l.b16 %v2075
        %v2440 = vunpack.c.h.b16 %v2075
        %v2441 = vpack.c.b16 %v2379, %v2377
        %v2442 = vpack.c.b16 %v2380, %v2378
        %v2443 = vpack.c.b16 %v2383, %v2381
        %v2444 = vpack.c.b16 %v2384, %v2382
        %v2445 = vpack.c.b16 %v2387, %v2385
        %v2446 = vpack.c.b16 %v2388, %v2386
        %v2447 = vpack.c.b16 %v2391, %v2389
        %v2448 = vpack.c.b16 %v2392, %v2390
        %v2449 = vpack.c.b16 %v2395, %v2393
        %v2450 = vpack.c.b16 %v2396, %v2394
        %v2451 = vpack.c.b16 %v2399, %v2397
        %v2452 = vpack.c.b16 %v2400, %v2398
        %v2453 = vpack.c.b16 %v2403, %v2401
        %v2454 = vpack.c.b16 %v2404, %v2402
        %v2455 = vpack.c.b16 %v2407, %v2405
        %v2456 = vpack.c.b16 %v2408, %v2406
        %v2457 = vpack.c.b16 %v2411, %v2409
        %v2458 = vpack.c.b16 %v2412, %v2410
        %v2459 = vpack.c.b16 %v2415, %v2413
        %v2460 = vpack.c.b16 %v2416, %v2414
        %v2461 = vpack.c.b16 %v2419, %v2417
        %v2462 = vpack.c.b16 %v2420, %v2418
        %v2463 = vpack.c.b16 %v2423, %v2421
        %v2464 = vpack.c.b16 %v2424, %v2422
        %v2465 = vpack.c.b16 %v2427, %v2425
        %v2466 = vpack.c.b16 %v2428, %v2426
        %v2467 = vpack.c.b16 %v2431, %v2429
        %v2468 = vpack.c.b16 %v2432, %v2430
        %v2469 = vpack.c.b16 %v2435, %v2433
        %v2470 = vpack.c.b16 %v2436, %v2434
        %v2471 = vpack.c.b16 %v2439, %v2437
        %v2472 = vpack.c.b16 %v2440, %v2438
        %2505 = vmatprep.subr.bf16.mxu0 %v2442
        %2506 = vmatpush1.bf16.msra.mxu0 %v2441
        %2507 = vmatprep.subr.bf16.mxu0 %v2444
        %2508 = vmatpush1.bf16.msra.mxu0 %v2443
        %2509 = vmatprep.subr.bf16.mxu0 %v2446
        %2510 = vmatpush1.bf16.msra.mxu0 %v2445
        %2511 = vmatprep.subr.bf16.mxu0 %v2448
        %2512 = vmatpush1.bf16.msra.mxu0 %v2447
        %2513 = vmatprep.subr.bf16.mxu0 %v2450
        %2514 = vmatpush1.bf16.msra.mxu0 %v2449
        %2515 = vmatprep.subr.bf16.mxu0 %v2452
        %2516 = vmatpush1.bf16.msra.mxu0 %v2451
        %2517 = vmatprep.subr.bf16.mxu0 %v2454
        %2518 = vmatpush1.bf16.msra.mxu0 %v2453
        %2519 = vmatprep.subr.bf16.mxu0 %v2456
        %2520 = vmatpush1.bf16.msra.mxu0 %v2455
        %2521 = vmatprep.subr.bf16.mxu0 %v2458
        %2522 = vmatpush1.bf16.msra.mxu0 %v2457
        %2523 = vmatprep.subr.bf16.mxu0 %v2460
        %2524 = vmatpush1.bf16.msra.mxu0 %v2459
        %2525 = vmatprep.subr.bf16.mxu0 %v2462
        %2526 = vmatpush1.bf16.msra.mxu0 %v2461
        %2527 = vmatprep.subr.bf16.mxu0 %v2464
        %2528 = vmatpush1.bf16.msra.mxu0 %v2463
        %2529 = vmatprep.subr.bf16.mxu0 %v2466
        %2530 = vmatpush1.bf16.msra.mxu0 %v2465
        %2531 = vmatprep.subr.bf16.mxu0 %v2468
        %2532 = vmatpush1.bf16.msra.mxu0 %v2467
        %2533 = vmatprep.subr.bf16.mxu0 %v2470
        %2534 = vmatpush1.bf16.msra.mxu0 %v2469
        %2535 = vmatprep.subr.bf16.mxu0 %v2472
        %2536 = vmatpush1.bf16.msra.mxu0 %v2471
        %2537 = vmatprep.mubr.bf16.mxu0 %v2043
        %2538 = vmatmul.mubr.bf16.gmra.mrb[0].mxu0 %v2042
        %v2539 = vpop.f32.mrb[0].mxu0
        %v2540 = vadd.f32 %v2337, %v2539
        %v2541 = vpop.f32.mrb[0].mxu0
        %v2542 = vadd.f32 %v2339, %v2541
        %v2543 = vpop.f32.mrb[0].mxu0
        %v2544 = vadd.f32 %v2341, %v2543
        %v2545 = vpop.f32.mrb[0].mxu0
        %v2546 = vadd.f32 %v2343, %v2545
        %2547 = vdwg.mxu0
        %v2548 = vld [vmem:[#allocation2] sm:$0xfc]
        %v2549 = vld [vmem:[#allocation2 + $0x8] sm:$0xfc]
        %v2550 = vld [vmem:[#allocation2 + $0x20] sm:$0x3]
        %v2551 = vld [vmem:[#allocation2 + $0x28] sm:$0x3]
        %v2552 = vpack.c.bf16 %v2040, %v2548
        %v2553 = vpack.c.bf16 %v2041, %v2549
        %v2554 = vpack.c.bf16 %v2550, %v2550
        %v2555 = vpack.c.bf16 %v2551, %v2551
        %v2556 = vld [vmem:[%s930] sm:$0xff]
        %v2557 = vld [vmem:[%s930 + $0x8] sm:$0xff]
        %v2558 = vld [vmem:[%s930 + $0x10] sm:$0xff]
        %v2559 = vld [vmem:[%s930 + $0x18] sm:$0xff]
        %v2560 = vld [vmem:[%s930 + $0x20] sm:$0xff]
        %v2561 = vld [vmem:[%s930 + $0x28] sm:$0xff]
        %v2562 = vld [vmem:[%s930 + $0x30] sm:$0xff]
        %v2563 = vld [vmem:[%s930 + $0x38] sm:$0xff]
        %v2564 = vld [vmem:[%s930 + $0x40] sm:$0xff]
        %v2565 = vld [vmem:[%s930 + $0x48] sm:$0xff]
        %v2566 = vld [vmem:[%s930 + $0x50] sm:$0xff]
        %v2567 = vld [vmem:[%s930 + $0x58] sm:$0xff]
        %v2568 = vld [vmem:[%s930 + $0x60] sm:$0xff]
        %v2569 = vld [vmem:[%s930 + $0x68] sm:$0xff]
        %v2570 = vld [vmem:[%s930 + $0x70] sm:$0xff]
        %v2571 = vld [vmem:[%s930 + $0x78] sm:$0xff]
        %v2572 = vld [vmem:[%s930 + $0x80] sm:$0xff]
        %v2573 = vld [vmem:[%s930 + $0x88] sm:$0xff]
        %v2574 = vld [vmem:[%s930 + $0x90] sm:$0xff]
        %v2575 = vld [vmem:[%s930 + $0x98] sm:$0xff]
        %v2576 = vld [vmem:[%s930 + $0xa0] sm:$0xff]
        %v2577 = vld [vmem:[%s930 + $0xa8] sm:$0xff]
        %v2578 = vld [vmem:[%s930 + $0xb0] sm:$0xff]
        %v2579 = vld [vmem:[%s930 + $0xb8] sm:$0xff]
        %v2580 = vld [vmem:[%s930 + $0xc0] sm:$0xff]
        %v2581 = vld [vmem:[%s930 + $0xc8] sm:$0xff]
        %v2582 = vld [vmem:[%s930 + $0xd0] sm:$0xff]
        %v2583 = vld [vmem:[%s930 + $0xd8] sm:$0xff]
        %v2584 = vld [vmem:[%s930 + $0xe0] sm:$0xff]
        %v2585 = vld [vmem:[%s930 + $0xe8] sm:$0xff]
        %v2586 = vld [vmem:[%s930 + $0xf0] sm:$0xff]
        %v2587 = vld [vmem:[%s930 + $0xf8] sm:$0xff]
        %v2592 = vrot.slane %v2552, 1
        %v2593 = vrot.slane %v2554, 1
        %v2594 = vsel %vm967, %v2592, %v2593
        %v2595 = vrot.slane %v2553, 1
        %v2596 = vrot.slane %v2555, 1
        %v2597 = vsel %vm967, %v2595, %v2596
        %v2632 = vunpack.c.l.b16 %v2556
        %v2633 = vunpack.c.h.b16 %v2556
        %v2634 = vunpack.c.l.b16 %v2557
        %v2635 = vunpack.c.h.b16 %v2557
        %v2636 = vunpack.c.l.b16 %v2558
        %v2637 = vunpack.c.h.b16 %v2558
        %v2638 = vunpack.c.l.b16 %v2559
        %v2639 = vunpack.c.h.b16 %v2559
        %v2640 = vunpack.c.l.b16 %v2560
        %v2641 = vunpack.c.h.b16 %v2560
        %v2642 = vunpack.c.l.b16 %v2561
        %v2643 = vunpack.c.h.b16 %v2561
        %v2644 = vunpack.c.l.b16 %v2562
        %v2645 = vunpack.c.h.b16 %v2562
        %v2646 = vunpack.c.l.b16 %v2563
        %v2647 = vunpack.c.h.b16 %v2563
        %v2648 = vunpack.c.l.b16 %v2564
        %v2649 = vunpack.c.h.b16 %v2564
        %v2650 = vunpack.c.l.b16 %v2565
        %v2651 = vunpack.c.h.b16 %v2565
        %v2652 = vunpack.c.l.b16 %v2566
        %v2653 = vunpack.c.h.b16 %v2566
        %v2654 = vunpack.c.l.b16 %v2567
        %v2655 = vunpack.c.h.b16 %v2567
        %v2656 = vunpack.c.l.b16 %v2568
        %v2657 = vunpack.c.h.b16 %v2568
        %v2658 = vunpack.c.l.b16 %v2569
        %v2659 = vunpack.c.h.b16 %v2569
        %v2660 = vunpack.c.l.b16 %v2570
        %v2661 = vunpack.c.h.b16 %v2570
        %v2662 = vunpack.c.l.b16 %v2571
        %v2663 = vunpack.c.h.b16 %v2571
        %v2664 = vunpack.c.l.b16 %v2572
        %v2665 = vunpack.c.h.b16 %v2572
        %v2666 = vunpack.c.l.b16 %v2573
        %v2667 = vunpack.c.h.b16 %v2573
        %v2668 = vunpack.c.l.b16 %v2574
        %v2669 = vunpack.c.h.b16 %v2574
        %v2670 = vunpack.c.l.b16 %v2575
        %v2671 = vunpack.c.h.b16 %v2575
        %v2672 = vunpack.c.l.b16 %v2576
        %v2673 = vunpack.c.h.b16 %v2576
        %v2674 = vunpack.c.l.b16 %v2577
        %v2675 = vunpack.c.h.b16 %v2577
        %v2676 = vunpack.c.l.b16 %v2578
        %v2677 = vunpack.c.h.b16 %v2578
        %v2678 = vunpack.c.l.b16 %v2579
        %v2679 = vunpack.c.h.b16 %v2579
        %v2680 = vunpack.c.l.b16 %v2580
        %v2681 = vunpack.c.h.b16 %v2580
        %v2682 = vunpack.c.l.b16 %v2581
        %v2683 = vunpack.c.h.b16 %v2581
        %v2684 = vunpack.c.l.b16 %v2582
        %v2685 = vunpack.c.h.b16 %v2582
        %v2686 = vunpack.c.l.b16 %v2583
        %v2687 = vunpack.c.h.b16 %v2583
        %v2688 = vunpack.c.l.b16 %v2584
        %v2689 = vunpack.c.h.b16 %v2584
        %v2690 = vunpack.c.l.b16 %v2585
        %v2691 = vunpack.c.h.b16 %v2585
        %v2692 = vunpack.c.l.b16 %v2586
        %v2693 = vunpack.c.h.b16 %v2586
        %v2694 = vunpack.c.l.b16 %v2587
        %v2695 = vunpack.c.h.b16 %v2587
        %v2696 = vpack.c.b16 %v2634, %v2632
        %v2697 = vpack.c.b16 %v2635, %v2633
        %v2698 = vpack.c.b16 %v2638, %v2636
        %v2699 = vpack.c.b16 %v2639, %v2637
        %v2700 = vpack.c.b16 %v2642, %v2640
        %v2701 = vpack.c.b16 %v2643, %v2641
        %v2702 = vpack.c.b16 %v2646, %v2644
        %v2703 = vpack.c.b16 %v2647, %v2645
        %v2704 = vpack.c.b16 %v2650, %v2648
        %v2705 = vpack.c.b16 %v2651, %v2649
        %v2706 = vpack.c.b16 %v2654, %v2652
        %v2707 = vpack.c.b16 %v2655, %v2653
        %v2708 = vpack.c.b16 %v2658, %v2656
        %v2709 = vpack.c.b16 %v2659, %v2657
        %v2710 = vpack.c.b16 %v2662, %v2660
        %v2711 = vpack.c.b16 %v2663, %v2661
        %v2712 = vpack.c.b16 %v2666, %v2664
        %v2713 = vpack.c.b16 %v2667, %v2665
        %v2714 = vpack.c.b16 %v2670, %v2668
        %v2715 = vpack.c.b16 %v2671, %v2669
        %v2716 = vpack.c.b16 %v2674, %v2672
        %v2717 = vpack.c.b16 %v2675, %v2673
        %v2718 = vpack.c.b16 %v2678, %v2676
        %v2719 = vpack.c.b16 %v2679, %v2677
        %v2720 = vpack.c.b16 %v2682, %v2680
        %v2721 = vpack.c.b16 %v2683, %v2681
        %v2722 = vpack.c.b16 %v2686, %v2684
        %v2723 = vpack.c.b16 %v2687, %v2685
        %v2724 = vpack.c.b16 %v2690, %v2688
        %v2725 = vpack.c.b16 %v2691, %v2689
        %v2726 = vpack.c.b16 %v2694, %v2692
        %v2727 = vpack.c.b16 %v2695, %v2693
        %2760 = vmatprep.subr.bf16.mxu0 %v2697
        %2761 = vmatpush1.bf16.msra.mxu0 %v2696
        %2762 = vmatprep.subr.bf16.mxu0 %v2699
        %2763 = vmatpush1.bf16.msra.mxu0 %v2698
        %2764 = vmatprep.subr.bf16.mxu0 %v2701
        %2765 = vmatpush1.bf16.msra.mxu0 %v2700
        %2766 = vmatprep.subr.bf16.mxu0 %v2703
        %2767 = vmatpush1.bf16.msra.mxu0 %v2702
        %2768 = vmatprep.subr.bf16.mxu0 %v2705
        %2769 = vmatpush1.bf16.msra.mxu0 %v2704
        %2770 = vmatprep.subr.bf16.mxu0 %v2707
        %2771 = vmatpush1.bf16.msra.mxu0 %v2706
        %2772 = vmatprep.subr.bf16.mxu0 %v2709
        %2773 = vmatpush1.bf16.msra.mxu0 %v2708
        %2774 = vmatprep.subr.bf16.mxu0 %v2711
        %2775 = vmatpush1.bf16.msra.mxu0 %v2710
        %2776 = vmatprep.subr.bf16.mxu0 %v2713
        %2777 = vmatpush1.bf16.msra.mxu0 %v2712
        %2778 = vmatprep.subr.bf16.mxu0 %v2715
        %2779 = vmatpush1.bf16.msra.mxu0 %v2714
        %2780 = vmatprep.subr.bf16.mxu0 %v2717
        %2781 = vmatpush1.bf16.msra.mxu0 %v2716
        %2782 = vmatprep.subr.bf16.mxu0 %v2719
        %2783 = vmatpush1.bf16.msra.mxu0 %v2718
        %2784 = vmatprep.subr.bf16.mxu0 %v2721
        %2785 = vmatpush1.bf16.msra.mxu0 %v2720
        %2786 = vmatprep.subr.bf16.mxu0 %v2723
        %2787 = vmatpush1.bf16.msra.mxu0 %v2722
        %2788 = vmatprep.subr.bf16.mxu0 %v2725
        %2789 = vmatpush1.bf16.msra.mxu0 %v2724
        %2790 = vmatprep.subr.bf16.mxu0 %v2727
        %2791 = vmatpush1.bf16.msra.mxu0 %v2726
        %2792 = vmatprep.mubr.bf16.mxu0 %v2597
        %2793 = vmatmul.mubr.bf16.gmra.mrb[0].mxu0 %v2594
        %v2794 = vpop.f32.mrb[0].mxu0
        %v2795 = vadd.f32 0.0, %v2794
        %v2796 = vpop.f32.mrb[0].mxu0
        %v2797 = vadd.f32 0.0, %v2796
        %v2798 = vpop.f32.mrb[0].mxu0
        %v2799 = vadd.f32 0.0, %v2798
        %v2800 = vpop.f32.mrb[0].mxu0
        %v2801 = vadd.f32 0.0, %v2800
        %2802 = vdwg.mxu0
        %v2803 = vadd.f32 %v2540, %v2795
        %v2804 = vadd.f32 %v2542, %v2797
        %v2805 = vadd.f32 %v2544, %v2799
        %v2806 = vadd.f32 %v2546, %v2801
        %v2807 = vadd.f32 %v2803, %v1196
        %v2808 = vadd.f32 %v2804, %v1200
        %v2809 = vadd.f32 %v2805, %v1196
        %v2810 = vadd.f32 %v2806, %v1200
        %v2811 = vmax.f32 %v2807, 0.0
        %v2812 = vmax.f32 %v2808, 0.0
        %v2813 = vmax.f32 %v2809, 0.0
        %v2814 = vmax.f32 %v2810, 0.0
        %v2819 = vrot.slane %v2811, 7
        %v2820 = vrot.slane %v2812, 7
        %v2821 = vrot.slane %v2813, 7
        %v2822 = vsel %vm391, %v2819, %v2821
        %v2823 = vrot.slane %v2814, 7
        %v2824 = vsel %vm391, %v2820, %v2823
        %2831 = vst [vmem:[#allocation2] sm:$0xfe] %v2819
        %2832 = vst [vmem:[#allocation2 + $0x8] sm:$0xfe] %v2820
        %2833 = vst [vmem:[#allocation2 + $0x10] sm:$0xff] %v2822
        %2834 = vst [vmem:[#allocation2 + $0x18] sm:$0xff] %v2824
        %2835 = vst [vmem:[#allocation2 + $0x20] sm:$0x1] %v2821
        %2836 = vst [vmem:[#allocation2 + $0x28] sm:$0x1] %v2823
        %v2837 = vld [vmem:[#allocation2] sm:$0xff]
        %v2838 = vld [vmem:[#allocation2 + $0x8] sm:$0xff]
        %v2839 = vld [vmem:[#allocation2 + $0x10] sm:$0xff]
        %v2840 = vld [vmem:[#allocation2 + $0x18] sm:$0xff]
        %v2841 = vpack.c.bf16 %v2839, %v2837
        %v2842 = vpack.c.bf16 %v2840, %v2838
        %v2843 = vld [vmem:[#allocation5] sm:$0xff]
        %v2844 = vld [vmem:[#allocation5 + $0x8] sm:$0xff]
        %v2845 = vld [vmem:[#allocation5 + $0x10] sm:$0xff]
        %v2846 = vld [vmem:[#allocation5 + $0x18] sm:$0xff]
        %v2847 = vld [vmem:[#allocation5 + $0x20] sm:$0xff]
        %v2848 = vld [vmem:[#allocation5 + $0x28] sm:$0xff]
        %v2849 = vld [vmem:[#allocation5 + $0x30] sm:$0xff]
        %v2850 = vld [vmem:[#allocation5 + $0x38] sm:$0xff]
        %v2851 = vld [vmem:[#allocation5 + $0x40] sm:$0xff]
        %v2852 = vld [vmem:[#allocation5 + $0x48] sm:$0xff]
        %v2853 = vld [vmem:[#allocation5 + $0x50] sm:$0xff]
        %v2854 = vld [vmem:[#allocation5 + $0x58] sm:$0xff]
        %v2855 = vld [vmem:[#allocation5 + $0x60] sm:$0xff]
        %v2856 = vld [vmem:[#allocation5 + $0x68] sm:$0xff]
        %v2857 = vld [vmem:[#allocation5 + $0x70] sm:$0xff]
        %v2858 = vld [vmem:[#allocation5 + $0x78] sm:$0xff]
        %v2859 = vld [vmem:[#allocation5 + $0x80] sm:$0xff]
        %v2860 = vld [vmem:[#allocation5 + $0x88] sm:$0xff]
        %v2861 = vld [vmem:[#allocation5 + $0x90] sm:$0xff]
        %v2862 = vld [vmem:[#allocation5 + $0x98] sm:$0xff]
        %v2863 = vld [vmem:[#allocation5 + $0xa0] sm:$0xff]
        %v2864 = vld [vmem:[#allocation5 + $0xa8] sm:$0xff]
        %v2865 = vld [vmem:[#allocation5 + $0xb0] sm:$0xff]
        %v2866 = vld [vmem:[#allocation5 + $0xb8] sm:$0xff]
        %v2867 = vld [vmem:[#allocation5 + $0xc0] sm:$0xff]
        %v2868 = vld [vmem:[#allocation5 + $0xc8] sm:$0xff]
        %v2869 = vld [vmem:[#allocation5 + $0xd0] sm:$0xff]
        %v2870 = vld [vmem:[#allocation5 + $0xd8] sm:$0xff]
        %v2871 = vld [vmem:[#allocation5 + $0xe0] sm:$0xff]
        %v2872 = vld [vmem:[#allocation5 + $0xe8] sm:$0xff]
        %v2873 = vld [vmem:[#allocation5 + $0xf0] sm:$0xff]
        %v2874 = vld [vmem:[#allocation5 + $0xf8] sm:$0xff]
        %v2875 = vld [vmem:[#allocation2] sm:$0xfe]
        %v2876 = vld [vmem:[#allocation2 + $0x8] sm:$0xfe]
        %v2877 = vld [vmem:[#allocation2 + $0x20] sm:$0x1]
        %v2878 = vld [vmem:[#allocation2 + $0x28] sm:$0x1]
        %v2879 = vpack.c.bf16 %v2839, %v2875
        %v2880 = vpack.c.bf16 %v2840, %v2876
        %v2881 = vpack.c.bf16 %v2877, %v2877
        %v2882 = vpack.c.bf16 %v2878, %v2878
        %s2883 = scalar_lea.vmem [#allocation5], 256
        %v2884 = vld [vmem:[%s2883] sm:$0xff]
        %v2885 = vld [vmem:[%s2883 + $0x8] sm:$0xff]
        %v2886 = vld [vmem:[%s2883 + $0x10] sm:$0xff]
        %v2887 = vld [vmem:[%s2883 + $0x18] sm:$0xff]
        %v2888 = vld [vmem:[%s2883 + $0x20] sm:$0xff]
        %v2889 = vld [vmem:[%s2883 + $0x28] sm:$0xff]
        %v2890 = vld [vmem:[%s2883 + $0x30] sm:$0xff]
        %v2891 = vld [vmem:[%s2883 + $0x38] sm:$0xff]
        %v2892 = vld [vmem:[%s2883 + $0x40] sm:$0xff]
        %v2893 = vld [vmem:[%s2883 + $0x48] sm:$0xff]
        %v2894 = vld [vmem:[%s2883 + $0x50] sm:$0xff]
        %v2895 = vld [vmem:[%s2883 + $0x58] sm:$0xff]
        %v2896 = vld [vmem:[%s2883 + $0x60] sm:$0xff]
        %v2897 = vld [vmem:[%s2883 + $0x68] sm:$0xff]
        %v2898 = vld [vmem:[%s2883 + $0x70] sm:$0xff]
        %v2899 = vld [vmem:[%s2883 + $0x78] sm:$0xff]
        %v2900 = vld [vmem:[%s2883 + $0x80] sm:$0xff]
        %v2901 = vld [vmem:[%s2883 + $0x88] sm:$0xff]
        %v2902 = vld [vmem:[%s2883 + $0x90] sm:$0xff]
        %v2903 = vld [vmem:[%s2883 + $0x98] sm:$0xff]
        %v2904 = vld [vmem:[%s2883 + $0xa0] sm:$0xff]
        %v2905 = vld [vmem:[%s2883 + $0xa8] sm:$0xff]
        %v2906 = vld [vmem:[%s2883 + $0xb0] sm:$0xff]
        %v2907 = vld [vmem:[%s2883 + $0xb8] sm:$0xff]
        %v2908 = vld [vmem:[%s2883 + $0xc0] sm:$0xff]
        %v2909 = vld [vmem:[%s2883 + $0xc8] sm:$0xff]
        %v2910 = vld [vmem:[%s2883 + $0xd0] sm:$0xff]
        %v2911 = vld [vmem:[%s2883 + $0xd8] sm:$0xff]
        %v2912 = vld [vmem:[%s2883 + $0xe0] sm:$0xff]
        %v2913 = vld [vmem:[%s2883 + $0xe8] sm:$0xff]
        %v2914 = vld [vmem:[%s2883 + $0xf0] sm:$0xff]
        %v2915 = vld [vmem:[%s2883 + $0xf8] sm:$0xff]
        %v2917 = vshrl.u32 %v2879, 16
        %v2919 = vshll.u32 %v2879, 16
        %v2921 = vrot.slane %v2919, 1
        %v2922 = vor.u32 %v2917, %v2921
        %v2924 = vshll.u32 %v2881, 16
        %v2926 = vrot.slane %v2924, 1
        %v2927 = vsel %vm489, %v2922, %v2926
        %v2929 = vshrl.u32 %v2880, 16
        %v2931 = vshll.u32 %v2880, 16
        %v2933 = vrot.slane %v2931, 1
        %v2934 = vor.u32 %v2929, %v2933
        %v2936 = vshll.u32 %v2882, 16
        %v2938 = vrot.slane %v2936, 1
        %v2939 = vsel %vm489, %v2934, %v2938
        %v2974 = vunpack.c.l.b16 %v2884
        %v2975 = vunpack.c.h.b16 %v2884
        %v2976 = vunpack.c.l.b16 %v2885
        %v2977 = vunpack.c.h.b16 %v2885
        %v2978 = vunpack.c.l.b16 %v2886
        %v2979 = vunpack.c.h.b16 %v2886
        %v2980 = vunpack.c.l.b16 %v2887
        %v2981 = vunpack.c.h.b16 %v2887
        %v2982 = vunpack.c.l.b16 %v2888
        %v2983 = vunpack.c.h.b16 %v2888
        %v2984 = vunpack.c.l.b16 %v2889
        %v2985 = vunpack.c.h.b16 %v2889
        %v2986 = vunpack.c.l.b16 %v2890
        %v2987 = vunpack.c.h.b16 %v2890
        %v2988 = vunpack.c.l.b16 %v2891
        %v2989 = vunpack.c.h.b16 %v2891
        %v2990 = vunpack.c.l.b16 %v2892
        %v2991 = vunpack.c.h.b16 %v2892
        %v2992 = vunpack.c.l.b16 %v2893
        %v2993 = vunpack.c.h.b16 %v2893
        %v2994 = vunpack.c.l.b16 %v2894
        %v2995 = vunpack.c.h.b16 %v2894
        %v2996 = vunpack.c.l.b16 %v2895
        %v2997 = vunpack.c.h.b16 %v2895
        %v2998 = vunpack.c.l.b16 %v2896
        %v2999 = vunpack.c.h.b16 %v2896
        %v3000 = vunpack.c.l.b16 %v2897
        %v3001 = vunpack.c.h.b16 %v2897
        %v3002 = vunpack.c.l.b16 %v2898
        %v3003 = vunpack.c.h.b16 %v2898
        %v3004 = vunpack.c.l.b16 %v2899
        %v3005 = vunpack.c.h.b16 %v2899
        %v3006 = vunpack.c.l.b16 %v2900
        %v3007 = vunpack.c.h.b16 %v2900
        %v3008 = vunpack.c.l.b16 %v2901
        %v3009 = vunpack.c.h.b16 %v2901
        %v3010 = vunpack.c.l.b16 %v2902
        %v3011 = vunpack.c.h.b16 %v2902
        %v3012 = vunpack.c.l.b16 %v2903
        %v3013 = vunpack.c.h.b16 %v2903
        %v3014 = vunpack.c.l.b16 %v2904
        %v3015 = vunpack.c.h.b16 %v2904
        %v3016 = vunpack.c.l.b16 %v2905
        %v3017 = vunpack.c.h.b16 %v2905
        %v3018 = vunpack.c.l.b16 %v2906
        %v3019 = vunpack.c.h.b16 %v2906
        %v3020 = vunpack.c.l.b16 %v2907
        %v3021 = vunpack.c.h.b16 %v2907
        %v3022 = vunpack.c.l.b16 %v2908
        %v3023 = vunpack.c.h.b16 %v2908
        %v3024 = vunpack.c.l.b16 %v2909
        %v3025 = vunpack.c.h.b16 %v2909
        %v3026 = vunpack.c.l.b16 %v2910
        %v3027 = vunpack.c.h.b16 %v2910
        %v3028 = vunpack.c.l.b16 %v2911
        %v3029 = vunpack.c.h.b16 %v2911
        %v3030 = vunpack.c.l.b16 %v2912
        %v3031 = vunpack.c.h.b16 %v2912
        %v3032 = vunpack.c.l.b16 %v2913
        %v3033 = vunpack.c.h.b16 %v2913
        %v3034 = vunpack.c.l.b16 %v2914
        %v3035 = vunpack.c.h.b16 %v2914
        %v3036 = vunpack.c.l.b16 %v2915
        %v3037 = vunpack.c.h.b16 %v2915
        %v3038 = vpack.c.b16 %v2976, %v2974
        %v3039 = vpack.c.b16 %v2977, %v2975
        %v3040 = vpack.c.b16 %v2980, %v2978
        %v3041 = vpack.c.b16 %v2981, %v2979
        %v3042 = vpack.c.b16 %v2984, %v2982
        %v3043 = vpack.c.b16 %v2985, %v2983
        %v3044 = vpack.c.b16 %v2988, %v2986
        %v3045 = vpack.c.b16 %v2989, %v2987
        %v3046 = vpack.c.b16 %v2992, %v2990
        %v3047 = vpack.c.b16 %v2993, %v2991
        %v3048 = vpack.c.b16 %v2996, %v2994
        %v3049 = vpack.c.b16 %v2997, %v2995
        %v3050 = vpack.c.b16 %v3000, %v2998
        %v3051 = vpack.c.b16 %v3001, %v2999
        %v3052 = vpack.c.b16 %v3004, %v3002
        %v3053 = vpack.c.b16 %v3005, %v3003
        %v3054 = vpack.c.b16 %v3008, %v3006
        %v3055 = vpack.c.b16 %v3009, %v3007
        %v3056 = vpack.c.b16 %v3012, %v3010
        %v3057 = vpack.c.b16 %v3013, %v3011
        %v3058 = vpack.c.b16 %v3016, %v3014
        %v3059 = vpack.c.b16 %v3017, %v3015
        %v3060 = vpack.c.b16 %v3020, %v3018
        %v3061 = vpack.c.b16 %v3021, %v3019
        %v3062 = vpack.c.b16 %v3024, %v3022
        %v3063 = vpack.c.b16 %v3025, %v3023
        %v3064 = vpack.c.b16 %v3028, %v3026
        %v3065 = vpack.c.b16 %v3029, %v3027
        %v3066 = vpack.c.b16 %v3032, %v3030
        %v3067 = vpack.c.b16 %v3033, %v3031
        %v3068 = vpack.c.b16 %v3036, %v3034
        %v3069 = vpack.c.b16 %v3037, %v3035
        %3102 = vmatprep.subr.bf16.mxu0 %v3039
        %3103 = vmatpush1.bf16.msra.mxu0 %v3038
        %3104 = vmatprep.subr.bf16.mxu0 %v3041
        %3105 = vmatpush1.bf16.msra.mxu0 %v3040
        %3106 = vmatprep.subr.bf16.mxu0 %v3043
        %3107 = vmatpush1.bf16.msra.mxu0 %v3042
        %3108 = vmatprep.subr.bf16.mxu0 %v3045
        %3109 = vmatpush1.bf16.msra.mxu0 %v3044
        %3110 = vmatprep.subr.bf16.mxu0 %v3047
        %3111 = vmatpush1.bf16.msra.mxu0 %v3046
        %3112 = vmatprep.subr.bf16.mxu0 %v3049
        %3113 = vmatpush1.bf16.msra.mxu0 %v3048
        %3114 = vmatprep.subr.bf16.mxu0 %v3051
        %3115 = vmatpush1.bf16.msra.mxu0 %v3050
        %3116 = vmatprep.subr.bf16.mxu0 %v3053
        %3117 = vmatpush1.bf16.msra.mxu0 %v3052
        %3118 = vmatprep.subr.bf16.mxu0 %v3055
        %3119 = vmatpush1.bf16.msra.mxu0 %v3054
        %3120 = vmatprep.subr.bf16.mxu0 %v3057
        %3121 = vmatpush1.bf16.msra.mxu0 %v3056
        %3122 = vmatprep.subr.bf16.mxu0 %v3059
        %3123 = vmatpush1.bf16.msra.mxu0 %v3058
        %3124 = vmatprep.subr.bf16.mxu0 %v3061
        %3125 = vmatpush1.bf16.msra.mxu0 %v3060
        %3126 = vmatprep.subr.bf16.mxu0 %v3063
        %3127 = vmatpush1.bf16.msra.mxu0 %v3062
        %3128 = vmatprep.subr.bf16.mxu0 %v3065
        %3129 = vmatpush1.bf16.msra.mxu0 %v3064
        %3130 = vmatprep.subr.bf16.mxu0 %v3067
        %3131 = vmatpush1.bf16.msra.mxu0 %v3066
        %3132 = vmatprep.subr.bf16.mxu0 %v3069
        %3133 = vmatpush1.bf16.msra.mxu0 %v3068
        %3134 = vmatprep.mubr.bf16.mxu0 %v2939
        %3135 = vmatmul.mubr.bf16.gmra.mrb[0].mxu0 %v2927
        %v3136 = vpop.f32.mrb[0].mxu0
        %v3137 = vadd.f32 0.0, %v3136
        %v3138 = vpop.f32.mrb[0].mxu0
        %v3139 = vadd.f32 0.0, %v3138
        %v3140 = vpop.f32.mrb[0].mxu0
        %v3141 = vadd.f32 0.0, %v3140
        %v3142 = vpop.f32.mrb[0].mxu0
        %v3143 = vadd.f32 0.0, %v3142
        %3144 = vdwg.mxu0
        %v3177 = vunpack.c.l.b16 %v2843
        %v3178 = vunpack.c.h.b16 %v2843
        %v3179 = vunpack.c.l.b16 %v2844
        %v3180 = vunpack.c.h.b16 %v2844
        %v3181 = vunpack.c.l.b16 %v2845
        %v3182 = vunpack.c.h.b16 %v2845
        %v3183 = vunpack.c.l.b16 %v2846
        %v3184 = vunpack.c.h.b16 %v2846
        %v3185 = vunpack.c.l.b16 %v2847
        %v3186 = vunpack.c.h.b16 %v2847
        %v3187 = vunpack.c.l.b16 %v2848
        %v3188 = vunpack.c.h.b16 %v2848
        %v3189 = vunpack.c.l.b16 %v2849
        %v3190 = vunpack.c.h.b16 %v2849
        %v3191 = vunpack.c.l.b16 %v2850
        %v3192 = vunpack.c.h.b16 %v2850
        %v3193 = vunpack.c.l.b16 %v2851
        %v3194 = vunpack.c.h.b16 %v2851
        %v3195 = vunpack.c.l.b16 %v2852
        %v3196 = vunpack.c.h.b16 %v2852
        %v3197 = vunpack.c.l.b16 %v2853
        %v3198 = vunpack.c.h.b16 %v2853
        %v3199 = vunpack.c.l.b16 %v2854
        %v3200 = vunpack.c.h.b16 %v2854
        %v3201 = vunpack.c.l.b16 %v2855
        %v3202 = vunpack.c.h.b16 %v2855
        %v3203 = vunpack.c.l.b16 %v2856
        %v3204 = vunpack.c.h.b16 %v2856
        %v3205 = vunpack.c.l.b16 %v2857
        %v3206 = vunpack.c.h.b16 %v2857
        %v3207 = vunpack.c.l.b16 %v2858
        %v3208 = vunpack.c.h.b16 %v2858
        %v3209 = vunpack.c.l.b16 %v2859
        %v3210 = vunpack.c.h.b16 %v2859
        %v3211 = vunpack.c.l.b16 %v2860
        %v3212 = vunpack.c.h.b16 %v2860
        %v3213 = vunpack.c.l.b16 %v2861
        %v3214 = vunpack.c.h.b16 %v2861
        %v3215 = vunpack.c.l.b16 %v2862
        %v3216 = vunpack.c.h.b16 %v2862
        %v3217 = vunpack.c.l.b16 %v2863
        %v3218 = vunpack.c.h.b16 %v2863
        %v3219 = vunpack.c.l.b16 %v2864
        %v3220 = vunpack.c.h.b16 %v2864
        %v3221 = vunpack.c.l.b16 %v2865
        %v3222 = vunpack.c.h.b16 %v2865
        %v3223 = vunpack.c.l.b16 %v2866
        %v3224 = vunpack.c.h.b16 %v2866
        %v3225 = vunpack.c.l.b16 %v2867
        %v3226 = vunpack.c.h.b16 %v2867
        %v3227 = vunpack.c.l.b16 %v2868
        %v3228 = vunpack.c.h.b16 %v2868
        %v3229 = vunpack.c.l.b16 %v2869
        %v3230 = vunpack.c.h.b16 %v2869
        %v3231 = vunpack.c.l.b16 %v2870
        %v3232 = vunpack.c.h.b16 %v2870
        %v3233 = vunpack.c.l.b16 %v2871
        %v3234 = vunpack.c.h.b16 %v2871
        %v3235 = vunpack.c.l.b16 %v2872
        %v3236 = vunpack.c.h.b16 %v2872
        %v3237 = vunpack.c.l.b16 %v2873
        %v3238 = vunpack.c.h.b16 %v2873
        %v3239 = vunpack.c.l.b16 %v2874
        %v3240 = vunpack.c.h.b16 %v2874
        %v3241 = vpack.c.b16 %v3179, %v3177
        %v3242 = vpack.c.b16 %v3180, %v3178
        %v3243 = vpack.c.b16 %v3183, %v3181
        %v3244 = vpack.c.b16 %v3184, %v3182
        %v3245 = vpack.c.b16 %v3187, %v3185
        %v3246 = vpack.c.b16 %v3188, %v3186
        %v3247 = vpack.c.b16 %v3191, %v3189
        %v3248 = vpack.c.b16 %v3192, %v3190
        %v3249 = vpack.c.b16 %v3195, %v3193
        %v3250 = vpack.c.b16 %v3196, %v3194
        %v3251 = vpack.c.b16 %v3199, %v3197
        %v3252 = vpack.c.b16 %v3200, %v3198
        %v3253 = vpack.c.b16 %v3203, %v3201
        %v3254 = vpack.c.b16 %v3204, %v3202
        %v3255 = vpack.c.b16 %v3207, %v3205
        %v3256 = vpack.c.b16 %v3208, %v3206
        %v3257 = vpack.c.b16 %v3211, %v3209
        %v3258 = vpack.c.b16 %v3212, %v3210
        %v3259 = vpack.c.b16 %v3215, %v3213
        %v3260 = vpack.c.b16 %v3216, %v3214
        %v3261 = vpack.c.b16 %v3219, %v3217
        %v3262 = vpack.c.b16 %v3220, %v3218
        %v3263 = vpack.c.b16 %v3223, %v3221
        %v3264 = vpack.c.b16 %v3224, %v3222
        %v3265 = vpack.c.b16 %v3227, %v3225
        %v3266 = vpack.c.b16 %v3228, %v3226
        %v3267 = vpack.c.b16 %v3231, %v3229
        %v3268 = vpack.c.b16 %v3232, %v3230
        %v3269 = vpack.c.b16 %v3235, %v3233
        %v3270 = vpack.c.b16 %v3236, %v3234
        %v3271 = vpack.c.b16 %v3239, %v3237
        %v3272 = vpack.c.b16 %v3240, %v3238
        %3305 = vmatprep.subr.bf16.mxu0 %v3242
        %3306 = vmatpush1.bf16.msra.mxu0 %v3241
        %3307 = vmatprep.subr.bf16.mxu0 %v3244
        %3308 = vmatpush1.bf16.msra.mxu0 %v3243
        %3309 = vmatprep.subr.bf16.mxu0 %v3246
        %3310 = vmatpush1.bf16.msra.mxu0 %v3245
        %3311 = vmatprep.subr.bf16.mxu0 %v3248
        %3312 = vmatpush1.bf16.msra.mxu0 %v3247
        %3313 = vmatprep.subr.bf16.mxu0 %v3250
        %3314 = vmatpush1.bf16.msra.mxu0 %v3249
        %3315 = vmatprep.subr.bf16.mxu0 %v3252
        %3316 = vmatpush1.bf16.msra.mxu0 %v3251
        %3317 = vmatprep.subr.bf16.mxu0 %v3254
        %3318 = vmatpush1.bf16.msra.mxu0 %v3253
        %3319 = vmatprep.subr.bf16.mxu0 %v3256
        %3320 = vmatpush1.bf16.msra.mxu0 %v3255
        %3321 = vmatprep.subr.bf16.mxu0 %v3258
        %3322 = vmatpush1.bf16.msra.mxu0 %v3257
        %3323 = vmatprep.subr.bf16.mxu0 %v3260
        %3324 = vmatpush1.bf16.msra.mxu0 %v3259
        %3325 = vmatprep.subr.bf16.mxu0 %v3262
        %3326 = vmatpush1.bf16.msra.mxu0 %v3261
        %3327 = vmatprep.subr.bf16.mxu0 %v3264
        %3328 = vmatpush1.bf16.msra.mxu0 %v3263
        %3329 = vmatprep.subr.bf16.mxu0 %v3266
        %3330 = vmatpush1.bf16.msra.mxu0 %v3265
        %3331 = vmatprep.subr.bf16.mxu0 %v3268
        %3332 = vmatpush1.bf16.msra.mxu0 %v3267
        %3333 = vmatprep.subr.bf16.mxu0 %v3270
        %3334 = vmatpush1.bf16.msra.mxu0 %v3269
        %3335 = vmatprep.subr.bf16.mxu0 %v3272
        %3336 = vmatpush1.bf16.msra.mxu0 %v3271
        %3337 = vmatprep.mubr.bf16.mxu0 %v2842
        %3338 = vmatmul.mubr.bf16.gmra.mrb[0].mxu0 %v2841
        %v3339 = vpop.f32.mrb[0].mxu0
        %v3340 = vadd.f32 %v3137, %v3339
        %v3341 = vpop.f32.mrb[0].mxu0
        %v3342 = vadd.f32 %v3139, %v3341
        %v3343 = vpop.f32.mrb[0].mxu0
        %v3344 = vadd.f32 %v3141, %v3343
        %v3345 = vpop.f32.mrb[0].mxu0
        %v3346 = vadd.f32 %v3143, %v3345
        %3347 = vdwg.mxu0
        %v3348 = vld [vmem:[#allocation2] sm:$0xfc]
        %v3349 = vld [vmem:[#allocation2 + $0x8] sm:$0xfc]
        %v3350 = vld [vmem:[#allocation2 + $0x20] sm:$0x3]
        %v3351 = vld [vmem:[#allocation2 + $0x28] sm:$0x3]
        %v3352 = vpack.c.bf16 %v2839, %v3348
        %v3353 = vpack.c.bf16 %v2840, %v3349
        %v3354 = vpack.c.bf16 %v3350, %v3350
        %v3355 = vpack.c.bf16 %v3351, %v3351
        %s3356 = scalar_lea.vmem [#allocation5], 512
        %v3357 = vld [vmem:[%s3356] sm:$0xff]
        %v3358 = vld [vmem:[%s3356 + $0x8] sm:$0xff]
        %v3359 = vld [vmem:[%s3356 + $0x10] sm:$0xff]
        %v3360 = vld [vmem:[%s3356 + $0x18] sm:$0xff]
        %v3361 = vld [vmem:[%s3356 + $0x20] sm:$0xff]
        %v3362 = vld [vmem:[%s3356 + $0x28] sm:$0xff]
        %v3363 = vld [vmem:[%s3356 + $0x30] sm:$0xff]
        %v3364 = vld [vmem:[%s3356 + $0x38] sm:$0xff]
        %v3365 = vld [vmem:[%s3356 + $0x40] sm:$0xff]
        %v3366 = vld [vmem:[%s3356 + $0x48] sm:$0xff]
        %v3367 = vld [vmem:[%s3356 + $0x50] sm:$0xff]
        %v3368 = vld [vmem:[%s3356 + $0x58] sm:$0xff]
        %v3369 = vld [vmem:[%s3356 + $0x60] sm:$0xff]
        %v3370 = vld [vmem:[%s3356 + $0x68] sm:$0xff]
        %v3371 = vld [vmem:[%s3356 + $0x70] sm:$0xff]
        %v3372 = vld [vmem:[%s3356 + $0x78] sm:$0xff]
        %v3373 = vld [vmem:[%s3356 + $0x80] sm:$0xff]
        %v3374 = vld [vmem:[%s3356 + $0x88] sm:$0xff]
        %v3375 = vld [vmem:[%s3356 + $0x90] sm:$0xff]
        %v3376 = vld [vmem:[%s3356 + $0x98] sm:$0xff]
        %v3377 = vld [vmem:[%s3356 + $0xa0] sm:$0xff]
        %v3378 = vld [vmem:[%s3356 + $0xa8] sm:$0xff]
        %v3379 = vld [vmem:[%s3356 + $0xb0] sm:$0xff]
        %v3380 = vld [vmem:[%s3356 + $0xb8] sm:$0xff]
        %v3381 = vld [vmem:[%s3356 + $0xc0] sm:$0xff]
        %v3382 = vld [vmem:[%s3356 + $0xc8] sm:$0xff]
        %v3383 = vld [vmem:[%s3356 + $0xd0] sm:$0xff]
        %v3384 = vld [vmem:[%s3356 + $0xd8] sm:$0xff]
        %v3385 = vld [vmem:[%s3356 + $0xe0] sm:$0xff]
        %v3386 = vld [vmem:[%s3356 + $0xe8] sm:$0xff]
        %v3387 = vld [vmem:[%s3356 + $0xf0] sm:$0xff]
        %v3388 = vld [vmem:[%s3356 + $0xf8] sm:$0xff]
        %v3393 = vrot.slane %v3352, 1
        %v3394 = vrot.slane %v3354, 1
        %v3395 = vsel %vm967, %v3393, %v3394
        %v3396 = vrot.slane %v3353, 1
        %v3397 = vrot.slane %v3355, 1
        %v3398 = vsel %vm967, %v3396, %v3397
        %v3433 = vunpack.c.l.b16 %v3357
        %v3434 = vunpack.c.h.b16 %v3357
        %v3435 = vunpack.c.l.b16 %v3358
        %v3436 = vunpack.c.h.b16 %v3358
        %v3437 = vunpack.c.l.b16 %v3359
        %v3438 = vunpack.c.h.b16 %v3359
        %v3439 = vunpack.c.l.b16 %v3360
        %v3440 = vunpack.c.h.b16 %v3360
        %v3441 = vunpack.c.l.b16 %v3361
        %v3442 = vunpack.c.h.b16 %v3361
        %v3443 = vunpack.c.l.b16 %v3362
        %v3444 = vunpack.c.h.b16 %v3362
        %v3445 = vunpack.c.l.b16 %v3363
        %v3446 = vunpack.c.h.b16 %v3363
        %v3447 = vunpack.c.l.b16 %v3364
        %v3448 = vunpack.c.h.b16 %v3364
        %v3449 = vunpack.c.l.b16 %v3365
        %v3450 = vunpack.c.h.b16 %v3365
        %v3451 = vunpack.c.l.b16 %v3366
        %v3452 = vunpack.c.h.b16 %v3366
        %v3453 = vunpack.c.l.b16 %v3367
        %v3454 = vunpack.c.h.b16 %v3367
        %v3455 = vunpack.c.l.b16 %v3368
        %v3456 = vunpack.c.h.b16 %v3368
        %v3457 = vunpack.c.l.b16 %v3369
        %v3458 = vunpack.c.h.b16 %v3369
        %v3459 = vunpack.c.l.b16 %v3370
        %v3460 = vunpack.c.h.b16 %v3370
        %v3461 = vunpack.c.l.b16 %v3371
        %v3462 = vunpack.c.h.b16 %v3371
        %v3463 = vunpack.c.l.b16 %v3372
        %v3464 = vunpack.c.h.b16 %v3372
        %v3465 = vunpack.c.l.b16 %v3373
        %v3466 = vunpack.c.h.b16 %v3373
        %v3467 = vunpack.c.l.b16 %v3374
        %v3468 = vunpack.c.h.b16 %v3374
        %v3469 = vunpack.c.l.b16 %v3375
        %v3470 = vunpack.c.h.b16 %v3375
        %v3471 = vunpack.c.l.b16 %v3376
        %v3472 = vunpack.c.h.b16 %v3376
        %v3473 = vunpack.c.l.b16 %v3377
        %v3474 = vunpack.c.h.b16 %v3377
        %v3475 = vunpack.c.l.b16 %v3378
        %v3476 = vunpack.c.h.b16 %v3378
        %v3477 = vunpack.c.l.b16 %v3379
        %v3478 = vunpack.c.h.b16 %v3379
        %v3479 = vunpack.c.l.b16 %v3380
        %v3480 = vunpack.c.h.b16 %v3380
        %v3481 = vunpack.c.l.b16 %v3381
        %v3482 = vunpack.c.h.b16 %v3381
        %v3483 = vunpack.c.l.b16 %v3382
        %v3484 = vunpack.c.h.b16 %v3382
        %v3485 = vunpack.c.l.b16 %v3383
        %v3486 = vunpack.c.h.b16 %v3383
        %v3487 = vunpack.c.l.b16 %v3384
        %v3488 = vunpack.c.h.b16 %v3384
        %v3489 = vunpack.c.l.b16 %v3385
        %v3490 = vunpack.c.h.b16 %v3385
        %v3491 = vunpack.c.l.b16 %v3386
        %v3492 = vunpack.c.h.b16 %v3386
        %v3493 = vunpack.c.l.b16 %v3387
        %v3494 = vunpack.c.h.b16 %v3387
        %v3495 = vunpack.c.l.b16 %v3388
        %v3496 = vunpack.c.h.b16 %v3388
        %v3497 = vpack.c.b16 %v3435, %v3433
        %v3498 = vpack.c.b16 %v3436, %v3434
        %v3499 = vpack.c.b16 %v3439, %v3437
        %v3500 = vpack.c.b16 %v3440, %v3438
        %v3501 = vpack.c.b16 %v3443, %v3441
        %v3502 = vpack.c.b16 %v3444, %v3442
        %v3503 = vpack.c.b16 %v3447, %v3445
        %v3504 = vpack.c.b16 %v3448, %v3446
        %v3505 = vpack.c.b16 %v3451, %v3449
        %v3506 = vpack.c.b16 %v3452, %v3450
        %v3507 = vpack.c.b16 %v3455, %v3453
        %v3508 = vpack.c.b16 %v3456, %v3454
        %v3509 = vpack.c.b16 %v3459, %v3457
        %v3510 = vpack.c.b16 %v3460, %v3458
        %v3511 = vpack.c.b16 %v3463, %v3461
        %v3512 = vpack.c.b16 %v3464, %v3462
        %v3513 = vpack.c.b16 %v3467, %v3465
        %v3514 = vpack.c.b16 %v3468, %v3466
        %v3515 = vpack.c.b16 %v3471, %v3469
        %v3516 = vpack.c.b16 %v3472, %v3470
        %v3517 = vpack.c.b16 %v3475, %v3473
        %v3518 = vpack.c.b16 %v3476, %v3474
        %v3519 = vpack.c.b16 %v3479, %v3477
        %v3520 = vpack.c.b16 %v3480, %v3478
        %v3521 = vpack.c.b16 %v3483, %v3481
        %v3522 = vpack.c.b16 %v3484, %v3482
        %v3523 = vpack.c.b16 %v3487, %v3485
        %v3524 = vpack.c.b16 %v3488, %v3486
        %v3525 = vpack.c.b16 %v3491, %v3489
        %v3526 = vpack.c.b16 %v3492, %v3490
        %v3527 = vpack.c.b16 %v3495, %v3493
        %v3528 = vpack.c.b16 %v3496, %v3494
        %3561 = vmatprep.subr.bf16.mxu0 %v3498
        %3562 = vmatpush1.bf16.msra.mxu0 %v3497
        %3563 = vmatprep.subr.bf16.mxu0 %v3500
        %3564 = vmatpush1.bf16.msra.mxu0 %v3499
        %3565 = vmatprep.subr.bf16.mxu0 %v3502
        %3566 = vmatpush1.bf16.msra.mxu0 %v3501
        %3567 = vmatprep.subr.bf16.mxu0 %v3504
        %3568 = vmatpush1.bf16.msra.mxu0 %v3503
        %3569 = vmatprep.subr.bf16.mxu0 %v3506
        %3570 = vmatpush1.bf16.msra.mxu0 %v3505
        %3571 = vmatprep.subr.bf16.mxu0 %v3508
        %3572 = vmatpush1.bf16.msra.mxu0 %v3507
        %3573 = vmatprep.subr.bf16.mxu0 %v3510
        %3574 = vmatpush1.bf16.msra.mxu0 %v3509
        %3575 = vmatprep.subr.bf16.mxu0 %v3512
        %3576 = vmatpush1.bf16.msra.mxu0 %v3511
        %3577 = vmatprep.subr.bf16.mxu0 %v3514
        %3578 = vmatpush1.bf16.msra.mxu0 %v3513
        %3579 = vmatprep.subr.bf16.mxu0 %v3516
        %3580 = vmatpush1.bf16.msra.mxu0 %v3515
        %3581 = vmatprep.subr.bf16.mxu0 %v3518
        %3582 = vmatpush1.bf16.msra.mxu0 %v3517
        %3583 = vmatprep.subr.bf16.mxu0 %v3520
        %3584 = vmatpush1.bf16.msra.mxu0 %v3519
        %3585 = vmatprep.subr.bf16.mxu0 %v3522
        %3586 = vmatpush1.bf16.msra.mxu0 %v3521
        %3587 = vmatprep.subr.bf16.mxu0 %v3524
        %3588 = vmatpush1.bf16.msra.mxu0 %v3523
        %3589 = vmatprep.subr.bf16.mxu0 %v3526
        %3590 = vmatpush1.bf16.msra.mxu0 %v3525
        %3591 = vmatprep.subr.bf16.mxu0 %v3528
        %3592 = vmatpush1.bf16.msra.mxu0 %v3527
        %3593 = vmatprep.mubr.bf16.mxu0 %v3398
        %3594 = vmatmul.mubr.bf16.gmra.mrb[0].mxu0 %v3395
        %v3595 = vpop.f32.mrb[0].mxu0
        %v3596 = vadd.f32 0.0, %v3595
        %v3597 = vpop.f32.mrb[0].mxu0
        %v3598 = vadd.f32 0.0, %v3597
        %v3599 = vpop.f32.mrb[0].mxu0
        %v3600 = vadd.f32 0.0, %v3599
        %v3601 = vpop.f32.mrb[0].mxu0
        %v3602 = vadd.f32 0.0, %v3601
        %3603 = vdwg.mxu0
        %v3604 = vadd.f32 %v3340, %v3596
        %v3605 = vadd.f32 %v3342, %v3598
        %v3606 = vadd.f32 %v3344, %v3600
        %v3607 = vadd.f32 %v3346, %v3602
        %v3608 = vlaneseq
        %v3609 = vshrl.u32 %v3608, 7
        %v3610 = vsub.s32 2, %v3609
        %v3611 = vrot.slane %v265, %v3610
        %v3612 = vlaneseq
        %v3613 = vshrl.u32 %v3612, 7
        %v3614 = vsub.s32 6, %v3613
        %v3615 = vrot.slane %v265, %v3614
        %v3618 = vlaneseq
        %v3619 = vshrl.u32 %v3618, 7
        %v3620 = vsub.s32 2, %v3619
        %v3621 = vrot.slane %v3611, %v3620
        %v3622 = vlaneseq
        %v3623 = vshrl.u32 %v3622, 7
        %v3624 = vsub.s32 2, %v3623
        %v3625 = vrot.slane %v3615, %v3624
        %v3626 = vadd.f32 %v3604, %v3621
        %v3627 = vadd.f32 %v3605, %v3625
        %v3628 = vadd.f32 %v3606, %v3621
        %v3629 = vadd.f32 %v3607, %v3625
        %v3630 = vmax.f32 %v3626, 0.0
        %v3631 = vmax.f32 %v3627, 0.0
        %v3632 = vmax.f32 %v3628, 0.0
        %v3633 = vmax.f32 %v3629, 0.0
        %v3634 = vadd.f32 %v3630, %v2811
        %v3635 = vadd.f32 %v3631, %v2812
        %v3636 = vadd.f32 %v3632, %v2813
        %v3637 = vadd.f32 %v3633, %v2814
        %v3642 = vrot.slane %v3634, 7
        %v3643 = vrot.slane %v3635, 7
        %v3644 = vrot.slane %v3636, 7
        %v3645 = vsel %vm391, %v3642, %v3644
        %v3646 = vrot.slane %v3637, 7
        %v3647 = vsel %vm391, %v3643, %v3646
        %3654 = vst [vmem:[#allocation2] sm:$0xfe] %v3642
        %3655 = vst [vmem:[#allocation2 + $0x8] sm:$0xfe] %v3643
        %3656 = vst [vmem:[#allocation2 + $0x10] sm:$0xff] %v3645
        %3657 = vst [vmem:[#allocation2 + $0x18] sm:$0xff] %v3647
        %3658 = vst [vmem:[#allocation2 + $0x20] sm:$0x1] %v3644
        %3659 = vst [vmem:[#allocation2 + $0x28] sm:$0x1] %v3646
        %v3660 = vld [vmem:[#allocation2] sm:$0xff]
        %v3661 = vld [vmem:[#allocation2 + $0x8] sm:$0xff]
        %v3662 = vld [vmem:[#allocation2 + $0x10] sm:$0xff]
        %v3663 = vld [vmem:[#allocation2 + $0x18] sm:$0xff]
        %v3664 = vpack.c.bf16 %v3662, %v3660
        %v3665 = vpack.c.bf16 %v3663, %v3661
        %v3666 = vld [vmem:[#allocation5] sm:$0xff]
        %v3667 = vld [vmem:[#allocation5 + $0x8] sm:$0xff]
        %v3668 = vld [vmem:[#allocation5 + $0x10] sm:$0xff]
        %v3669 = vld [vmem:[#allocation5 + $0x18] sm:$0xff]
        %v3670 = vld [vmem:[#allocation5 + $0x20] sm:$0xff]
        %v3671 = vld [vmem:[#allocation5 + $0x28] sm:$0xff]
        %v3672 = vld [vmem:[#allocation5 + $0x30] sm:$0xff]
        %v3673 = vld [vmem:[#allocation5 + $0x38] sm:$0xff]
        %v3674 = vld [vmem:[#allocation5 + $0x40] sm:$0xff]
        %v3675 = vld [vmem:[#allocation5 + $0x48] sm:$0xff]
        %v3676 = vld [vmem:[#allocation5 + $0x50] sm:$0xff]
        %v3677 = vld [vmem:[#allocation5 + $0x58] sm:$0xff]
        %v3678 = vld [vmem:[#allocation5 + $0x60] sm:$0xff]
        %v3679 = vld [vmem:[#allocation5 + $0x68] sm:$0xff]
        %v3680 = vld [vmem:[#allocation5 + $0x70] sm:$0xff]
        %v3681 = vld [vmem:[#allocation5 + $0x78] sm:$0xff]
        %v3682 = vld [vmem:[#allocation5 + $0x80] sm:$0xff]
        %v3683 = vld [vmem:[#allocation5 + $0x88] sm:$0xff]
        %v3684 = vld [vmem:[#allocation5 + $0x90] sm:$0xff]
        %v3685 = vld [vmem:[#allocation5 + $0x98] sm:$0xff]
        %v3686 = vld [vmem:[#allocation5 + $0xa0] sm:$0xff]
        %v3687 = vld [vmem:[#allocation5 + $0xa8] sm:$0xff]
        %v3688 = vld [vmem:[#allocation5 + $0xb0] sm:$0xff]
        %v3689 = vld [vmem:[#allocation5 + $0xb8] sm:$0xff]
        %v3690 = vld [vmem:[#allocation5 + $0xc0] sm:$0xff]
        %v3691 = vld [vmem:[#allocation5 + $0xc8] sm:$0xff]
        %v3692 = vld [vmem:[#allocation5 + $0xd0] sm:$0xff]
        %v3693 = vld [vmem:[#allocation5 + $0xd8] sm:$0xff]
        %v3694 = vld [vmem:[#allocation5 + $0xe0] sm:$0xff]
        %v3695 = vld [vmem:[#allocation5 + $0xe8] sm:$0xff]
        %v3696 = vld [vmem:[#allocation5 + $0xf0] sm:$0xff]
        %v3697 = vld [vmem:[#allocation5 + $0xf8] sm:$0xff]
        %v3698 = vld [vmem:[#allocation2] sm:$0xfe]
        %v3699 = vld [vmem:[#allocation2 + $0x8] sm:$0xfe]
        %v3700 = vld [vmem:[#allocation2 + $0x20] sm:$0x1]
        %v3701 = vld [vmem:[#allocation2 + $0x28] sm:$0x1]
        %v3702 = vpack.c.bf16 %v3662, %v3698
        %v3703 = vpack.c.bf16 %v3663, %v3699
        %v3704 = vpack.c.bf16 %v3700, %v3700
        %v3705 = vpack.c.bf16 %v3701, %v3701
        %v3706 = vld [vmem:[%s2883] sm:$0xff]
        %v3707 = vld [vmem:[%s2883 + $0x8] sm:$0xff]
        %v3708 = vld [vmem:[%s2883 + $0x10] sm:$0xff]
        %v3709 = vld [vmem:[%s2883 + $0x18] sm:$0xff]
        %v3710 = vld [vmem:[%s2883 + $0x20] sm:$0xff]
        %v3711 = vld [vmem:[%s2883 + $0x28] sm:$0xff]
        %v3712 = vld [vmem:[%s2883 + $0x30] sm:$0xff]
        %v3713 = vld [vmem:[%s2883 + $0x38] sm:$0xff]
        %v3714 = vld [vmem:[%s2883 + $0x40] sm:$0xff]
        %v3715 = vld [vmem:[%s2883 + $0x48] sm:$0xff]
        %v3716 = vld [vmem:[%s2883 + $0x50] sm:$0xff]
        %v3717 = vld [vmem:[%s2883 + $0x58] sm:$0xff]
        %v3718 = vld [vmem:[%s2883 + $0x60] sm:$0xff]
        %v3719 = vld [vmem:[%s2883 + $0x68] sm:$0xff]
        %v3720 = vld [vmem:[%s2883 + $0x70] sm:$0xff]
        %v3721 = vld [vmem:[%s2883 + $0x78] sm:$0xff]
        %v3722 = vld [vmem:[%s2883 + $0x80] sm:$0xff]
        %v3723 = vld [vmem:[%s2883 + $0x88] sm:$0xff]
        %v3724 = vld [vmem:[%s2883 + $0x90] sm:$0xff]
        %v3725 = vld [vmem:[%s2883 + $0x98] sm:$0xff]
        %v3726 = vld [vmem:[%s2883 + $0xa0] sm:$0xff]
        %v3727 = vld [vmem:[%s2883 + $0xa8] sm:$0xff]
        %v3728 = vld [vmem:[%s2883 + $0xb0] sm:$0xff]
        %v3729 = vld [vmem:[%s2883 + $0xb8] sm:$0xff]
        %v3730 = vld [vmem:[%s2883 + $0xc0] sm:$0xff]
        %v3731 = vld [vmem:[%s2883 + $0xc8] sm:$0xff]
        %v3732 = vld [vmem:[%s2883 + $0xd0] sm:$0xff]
        %v3733 = vld [vmem:[%s2883 + $0xd8] sm:$0xff]
        %v3734 = vld [vmem:[%s2883 + $0xe0] sm:$0xff]
        %v3735 = vld [vmem:[%s2883 + $0xe8] sm:$0xff]
        %v3736 = vld [vmem:[%s2883 + $0xf0] sm:$0xff]
        %v3737 = vld [vmem:[%s2883 + $0xf8] sm:$0xff]
        %v3739 = vshrl.u32 %v3702, 16
        %v3741 = vshll.u32 %v3702, 16
        %v3743 = vrot.slane %v3741, 1
        %v3744 = vor.u32 %v3739, %v3743
        %v3746 = vshll.u32 %v3704, 16
        %v3748 = vrot.slane %v3746, 1
        %v3749 = vsel %vm489, %v3744, %v3748
        %v3751 = vshrl.u32 %v3703, 16
        %v3753 = vshll.u32 %v3703, 16
        %v3755 = vrot.slane %v3753, 1
        %v3756 = vor.u32 %v3751, %v3755
        %v3758 = vshll.u32 %v3705, 16
        %v3760 = vrot.slane %v3758, 1
        %v3761 = vsel %vm489, %v3756, %v3760
        %v3796 = vunpack.c.l.b16 %v3706
        %v3797 = vunpack.c.h.b16 %v3706
        %v3798 = vunpack.c.l.b16 %v3707
        %v3799 = vunpack.c.h.b16 %v3707
        %v3800 = vunpack.c.l.b16 %v3708
        %v3801 = vunpack.c.h.b16 %v3708
        %v3802 = vunpack.c.l.b16 %v3709
        %v3803 = vunpack.c.h.b16 %v3709
        %v3804 = vunpack.c.l.b16 %v3710
        %v3805 = vunpack.c.h.b16 %v3710
        %v3806 = vunpack.c.l.b16 %v3711
        %v3807 = vunpack.c.h.b16 %v3711
        %v3808 = vunpack.c.l.b16 %v3712
        %v3809 = vunpack.c.h.b16 %v3712
        %v3810 = vunpack.c.l.b16 %v3713
        %v3811 = vunpack.c.h.b16 %v3713
        %v3812 = vunpack.c.l.b16 %v3714
        %v3813 = vunpack.c.h.b16 %v3714
        %v3814 = vunpack.c.l.b16 %v3715
        %v3815 = vunpack.c.h.b16 %v3715
        %v3816 = vunpack.c.l.b16 %v3716
        %v3817 = vunpack.c.h.b16 %v3716
        %v3818 = vunpack.c.l.b16 %v3717
        %v3819 = vunpack.c.h.b16 %v3717
        %v3820 = vunpack.c.l.b16 %v3718
        %v3821 = vunpack.c.h.b16 %v3718
        %v3822 = vunpack.c.l.b16 %v3719
        %v3823 = vunpack.c.h.b16 %v3719
        %v3824 = vunpack.c.l.b16 %v3720
        %v3825 = vunpack.c.h.b16 %v3720
        %v3826 = vunpack.c.l.b16 %v3721
        %v3827 = vunpack.c.h.b16 %v3721
        %v3828 = vunpack.c.l.b16 %v3722
        %v3829 = vunpack.c.h.b16 %v3722
        %v3830 = vunpack.c.l.b16 %v3723
        %v3831 = vunpack.c.h.b16 %v3723
        %v3832 = vunpack.c.l.b16 %v3724
        %v3833 = vunpack.c.h.b16 %v3724
        %v3834 = vunpack.c.l.b16 %v3725
        %v3835 = vunpack.c.h.b16 %v3725
        %v3836 = vunpack.c.l.b16 %v3726
        %v3837 = vunpack.c.h.b16 %v3726
        %v3838 = vunpack.c.l.b16 %v3727
        %v3839 = vunpack.c.h.b16 %v3727
        %v3840 = vunpack.c.l.b16 %v3728
        %v3841 = vunpack.c.h.b16 %v3728
        %v3842 = vunpack.c.l.b16 %v3729
        %v3843 = vunpack.c.h.b16 %v3729
        %v3844 = vunpack.c.l.b16 %v3730
        %v3845 = vunpack.c.h.b16 %v3730
        %v3846 = vunpack.c.l.b16 %v3731
        %v3847 = vunpack.c.h.b16 %v3731
        %v3848 = vunpack.c.l.b16 %v3732
        %v3849 = vunpack.c.h.b16 %v3732
        %v3850 = vunpack.c.l.b16 %v3733
        %v3851 = vunpack.c.h.b16 %v3733
        %v3852 = vunpack.c.l.b16 %v3734
        %v3853 = vunpack.c.h.b16 %v3734
        %v3854 = vunpack.c.l.b16 %v3735
        %v3855 = vunpack.c.h.b16 %v3735
        %v3856 = vunpack.c.l.b16 %v3736
        %v3857 = vunpack.c.h.b16 %v3736
        %v3858 = vunpack.c.l.b16 %v3737
        %v3859 = vunpack.c.h.b16 %v3737
        %v3860 = vpack.c.b16 %v3798, %v3796
        %v3861 = vpack.c.b16 %v3799, %v3797
        %v3862 = vpack.c.b16 %v3802, %v3800
        %v3863 = vpack.c.b16 %v3803, %v3801
        %v3864 = vpack.c.b16 %v3806, %v3804
        %v3865 = vpack.c.b16 %v3807, %v3805
        %v3866 = vpack.c.b16 %v3810, %v3808
        %v3867 = vpack.c.b16 %v3811, %v3809
        %v3868 = vpack.c.b16 %v3814, %v3812
        %v3869 = vpack.c.b16 %v3815, %v3813
        %v3870 = vpack.c.b16 %v3818, %v3816
        %v3871 = vpack.c.b16 %v3819, %v3817
        %v3872 = vpack.c.b16 %v3822, %v3820
        %v3873 = vpack.c.b16 %v3823, %v3821
        %v3874 = vpack.c.b16 %v3826, %v3824
        %v3875 = vpack.c.b16 %v3827, %v3825
        %v3876 = vpack.c.b16 %v3830, %v3828
        %v3877 = vpack.c.b16 %v3831, %v3829
        %v3878 = vpack.c.b16 %v3834, %v3832
        %v3879 = vpack.c.b16 %v3835, %v3833
        %v3880 = vpack.c.b16 %v3838, %v3836
        %v3881 = vpack.c.b16 %v3839, %v3837
        %v3882 = vpack.c.b16 %v3842, %v3840
        %v3883 = vpack.c.b16 %v3843, %v3841
        %v3884 = vpack.c.b16 %v3846, %v3844
        %v3885 = vpack.c.b16 %v3847, %v3845
        %v3886 = vpack.c.b16 %v3850, %v3848
        %v3887 = vpack.c.b16 %v3851, %v3849
        %v3888 = vpack.c.b16 %v3854, %v3852
        %v3889 = vpack.c.b16 %v3855, %v3853
        %v3890 = vpack.c.b16 %v3858, %v3856
        %v3891 = vpack.c.b16 %v3859, %v3857
        %3924 = vmatprep.subr.bf16.mxu0 %v3861
        %3925 = vmatpush1.bf16.msra.mxu0 %v3860
        %3926 = vmatprep.subr.bf16.mxu0 %v3863
        %3927 = vmatpush1.bf16.msra.mxu0 %v3862
        %3928 = vmatprep.subr.bf16.mxu0 %v3865
        %3929 = vmatpush1.bf16.msra.mxu0 %v3864
        %3930 = vmatprep.subr.bf16.mxu0 %v3867
        %3931 = vmatpush1.bf16.msra.mxu0 %v3866
        %3932 = vmatprep.subr.bf16.mxu0 %v3869
        %3933 = vmatpush1.bf16.msra.mxu0 %v3868
        %3934 = vmatprep.subr.bf16.mxu0 %v3871
        %3935 = vmatpush1.bf16.msra.mxu0 %v3870
        %3936 = vmatprep.subr.bf16.mxu0 %v3873
        %3937 = vmatpush1.bf16.msra.mxu0 %v3872
        %3938 = vmatprep.subr.bf16.mxu0 %v3875
        %3939 = vmatpush1.bf16.msra.mxu0 %v3874
        %3940 = vmatprep.subr.bf16.mxu0 %v3877
        %3941 = vmatpush1.bf16.msra.mxu0 %v3876
        %3942 = vmatprep.subr.bf16.mxu0 %v3879
        %3943 = vmatpush1.bf16.msra.mxu0 %v3878
        %3944 = vmatprep.subr.bf16.mxu0 %v3881
        %3945 = vmatpush1.bf16.msra.mxu0 %v3880
        %3946 = vmatprep.subr.bf16.mxu0 %v3883
        %3947 = vmatpush1.bf16.msra.mxu0 %v3882
        %3948 = vmatprep.subr.bf16.mxu0 %v3885
        %3949 = vmatpush1.bf16.msra.mxu0 %v3884
        %3950 = vmatprep.subr.bf16.mxu0 %v3887
        %3951 = vmatpush1.bf16.msra.mxu0 %v3886
        %3952 = vmatprep.subr.bf16.mxu0 %v3889
        %3953 = vmatpush1.bf16.msra.mxu0 %v3888
        %3954 = vmatprep.subr.bf16.mxu0 %v3891
        %3955 = vmatpush1.bf16.msra.mxu0 %v3890
        %3956 = vmatprep.mubr.bf16.mxu0 %v3761
        %3957 = vmatmul.mubr.bf16.gmra.mrb[0].mxu0 %v3749
        %v3958 = vpop.f32.mrb[0].mxu0
        %v3959 = vadd.f32 0.0, %v3958
        %v3960 = vpop.f32.mrb[0].mxu0
        %v3961 = vadd.f32 0.0, %v3960
        %v3962 = vpop.f32.mrb[0].mxu0
        %v3963 = vadd.f32 0.0, %v3962
        %v3964 = vpop.f32.mrb[0].mxu0
        %v3965 = vadd.f32 0.0, %v3964
        %3966 = vdwg.mxu0
        %v3999 = vunpack.c.l.b16 %v3666
        %v4000 = vunpack.c.h.b16 %v3666
        %v4001 = vunpack.c.l.b16 %v3667
        %v4002 = vunpack.c.h.b16 %v3667
        %v4003 = vunpack.c.l.b16 %v3668
        %v4004 = vunpack.c.h.b16 %v3668
        %v4005 = vunpack.c.l.b16 %v3669
        %v4006 = vunpack.c.h.b16 %v3669
        %v4007 = vunpack.c.l.b16 %v3670
        %v4008 = vunpack.c.h.b16 %v3670
        %v4009 = vunpack.c.l.b16 %v3671
        %v4010 = vunpack.c.h.b16 %v3671
        %v4011 = vunpack.c.l.b16 %v3672
        %v4012 = vunpack.c.h.b16 %v3672
        %v4013 = vunpack.c.l.b16 %v3673
        %v4014 = vunpack.c.h.b16 %v3673
        %v4015 = vunpack.c.l.b16 %v3674
        %v4016 = vunpack.c.h.b16 %v3674
        %v4017 = vunpack.c.l.b16 %v3675
        %v4018 = vunpack.c.h.b16 %v3675
        %v4019 = vunpack.c.l.b16 %v3676
        %v4020 = vunpack.c.h.b16 %v3676
        %v4021 = vunpack.c.l.b16 %v3677
        %v4022 = vunpack.c.h.b16 %v3677
        %v4023 = vunpack.c.l.b16 %v3678
        %v4024 = vunpack.c.h.b16 %v3678
        %v4025 = vunpack.c.l.b16 %v3679
        %v4026 = vunpack.c.h.b16 %v3679
        %v4027 = vunpack.c.l.b16 %v3680
        %v4028 = vunpack.c.h.b16 %v3680
        %v4029 = vunpack.c.l.b16 %v3681
        %v4030 = vunpack.c.h.b16 %v3681
        %v4031 = vunpack.c.l.b16 %v3682
        %v4032 = vunpack.c.h.b16 %v3682
        %v4033 = vunpack.c.l.b16 %v3683
        %v4034 = vunpack.c.h.b16 %v3683
        %v4035 = vunpack.c.l.b16 %v3684
        %v4036 = vunpack.c.h.b16 %v3684
        %v4037 = vunpack.c.l.b16 %v3685
        %v4038 = vunpack.c.h.b16 %v3685
        %v4039 = vunpack.c.l.b16 %v3686
        %v4040 = vunpack.c.h.b16 %v3686
        %v4041 = vunpack.c.l.b16 %v3687
        %v4042 = vunpack.c.h.b16 %v3687
        %v4043 = vunpack.c.l.b16 %v3688
        %v4044 = vunpack.c.h.b16 %v3688
        %v4045 = vunpack.c.l.b16 %v3689
        %v4046 = vunpack.c.h.b16 %v3689
        %v4047 = vunpack.c.l.b16 %v3690
        %v4048 = vunpack.c.h.b16 %v3690
        %v4049 = vunpack.c.l.b16 %v3691
        %v4050 = vunpack.c.h.b16 %v3691
        %v4051 = vunpack.c.l.b16 %v3692
        %v4052 = vunpack.c.h.b16 %v3692
        %v4053 = vunpack.c.l.b16 %v3693
        %v4054 = vunpack.c.h.b16 %v3693
        %v4055 = vunpack.c.l.b16 %v3694
        %v4056 = vunpack.c.h.b16 %v3694
        %v4057 = vunpack.c.l.b16 %v3695
        %v4058 = vunpack.c.h.b16 %v3695
        %v4059 = vunpack.c.l.b16 %v3696
        %v4060 = vunpack.c.h.b16 %v3696
        %v4061 = vunpack.c.l.b16 %v3697
        %v4062 = vunpack.c.h.b16 %v3697
        %v4063 = vpack.c.b16 %v4001, %v3999
        %v4064 = vpack.c.b16 %v4002, %v4000
        %v4065 = vpack.c.b16 %v4005, %v4003
        %v4066 = vpack.c.b16 %v4006, %v4004
        %v4067 = vpack.c.b16 %v4009, %v4007
        %v4068 = vpack.c.b16 %v4010, %v4008
        %v4069 = vpack.c.b16 %v4013, %v4011
        %v4070 = vpack.c.b16 %v4014, %v4012
        %v4071 = vpack.c.b16 %v4017, %v4015
        %v4072 = vpack.c.b16 %v4018, %v4016
        %v4073 = vpack.c.b16 %v4021, %v4019
        %v4074 = vpack.c.b16 %v4022, %v4020
        %v4075 = vpack.c.b16 %v4025, %v4023
        %v4076 = vpack.c.b16 %v4026, %v4024
        %v4077 = vpack.c.b16 %v4029, %v4027
        %v4078 = vpack.c.b16 %v4030, %v4028
        %v4079 = vpack.c.b16 %v4033, %v4031
        %v4080 = vpack.c.b16 %v4034, %v4032
        %v4081 = vpack.c.b16 %v4037, %v4035
        %v4082 = vpack.c.b16 %v4038, %v4036
        %v4083 = vpack.c.b16 %v4041, %v4039
        %v4084 = vpack.c.b16 %v4042, %v4040
        %v4085 = vpack.c.b16 %v4045, %v4043
        %v4086 = vpack.c.b16 %v4046, %v4044
        %v4087 = vpack.c.b16 %v4049, %v4047
        %v4088 = vpack.c.b16 %v4050, %v4048
        %v4089 = vpack.c.b16 %v4053, %v4051
        %v4090 = vpack.c.b16 %v4054, %v4052
        %v4091 = vpack.c.b16 %v4057, %v4055
        %v4092 = vpack.c.b16 %v4058, %v4056
        %v4093 = vpack.c.b16 %v4061, %v4059
        %v4094 = vpack.c.b16 %v4062, %v4060
        %4127 = vmatprep.subr.bf16.mxu0 %v4064
        %4128 = vmatpush1.bf16.msra.mxu0 %v4063
        %4129 = vmatprep.subr.bf16.mxu0 %v4066
        %4130 = vmatpush1.bf16.msra.mxu0 %v4065
        %4131 = vmatprep.subr.bf16.mxu0 %v4068
        %4132 = vmatpush1.bf16.msra.mxu0 %v4067
        %4133 = vmatprep.subr.bf16.mxu0 %v4070
        %4134 = vmatpush1.bf16.msra.mxu0 %v4069
        %4135 = vmatprep.subr.bf16.mxu0 %v4072
        %4136 = vmatpush1.bf16.msra.mxu0 %v4071
        %4137 = vmatprep.subr.bf16.mxu0 %v4074
        %4138 = vmatpush1.bf16.msra.mxu0 %v4073
        %4139 = vmatprep.subr.bf16.mxu0 %v4076
        %4140 = vmatpush1.bf16.msra.mxu0 %v4075
        %4141 = vmatprep.subr.bf16.mxu0 %v4078
        %4142 = vmatpush1.bf16.msra.mxu0 %v4077
        %4143 = vmatprep.subr.bf16.mxu0 %v4080
        %4144 = vmatpush1.bf16.msra.mxu0 %v4079
        %4145 = vmatprep.subr.bf16.mxu0 %v4082
        %4146 = vmatpush1.bf16.msra.mxu0 %v4081
        %4147 = vmatprep.subr.bf16.mxu0 %v4084
        %4148 = vmatpush1.bf16.msra.mxu0 %v4083
        %4149 = vmatprep.subr.bf16.mxu0 %v4086
        %4150 = vmatpush1.bf16.msra.mxu0 %v4085
        %4151 = vmatprep.subr.bf16.mxu0 %v4088
        %4152 = vmatpush1.bf16.msra.mxu0 %v4087
        %4153 = vmatprep.subr.bf16.mxu0 %v4090
        %4154 = vmatpush1.bf16.msra.mxu0 %v4089
        %4155 = vmatprep.subr.bf16.mxu0 %v4092
        %4156 = vmatpush1.bf16.msra.mxu0 %v4091
        %4157 = vmatprep.subr.bf16.mxu0 %v4094
        %4158 = vmatpush1.bf16.msra.mxu0 %v4093
        %4159 = vmatprep.mubr.bf16.mxu0 %v3665
        %4160 = vmatmul.mubr.bf16.gmra.mrb[0].mxu0 %v3664
        %v4161 = vpop.f32.mrb[0].mxu0
        %v4162 = vadd.f32 %v3959, %v4161
        %v4163 = vpop.f32.mrb[0].mxu0
        %v4164 = vadd.f32 %v3961, %v4163
        %v4165 = vpop.f32.mrb[0].mxu0
        %v4166 = vadd.f32 %v3963, %v4165
        %v4167 = vpop.f32.mrb[0].mxu0
        %v4168 = vadd.f32 %v3965, %v4167
        %4169 = vdwg.mxu0
        %v4170 = vld [vmem:[#allocation2] sm:$0xfc]
        %v4171 = vld [vmem:[#allocation2 + $0x8] sm:$0xfc]
        %v4172 = vld [vmem:[#allocation2 + $0x20] sm:$0x3]
        %v4173 = vld [vmem:[#allocation2 + $0x28] sm:$0x3]
        %v4174 = vpack.c.bf16 %v3662, %v4170
        %v4175 = vpack.c.bf16 %v3663, %v4171
        %v4176 = vpack.c.bf16 %v4172, %v4172
        %v4177 = vpack.c.bf16 %v4173, %v4173
        %v4178 = vld [vmem:[%s3356] sm:$0xff]
        %v4179 = vld [vmem:[%s3356 + $0x8] sm:$0xff]
        %v4180 = vld [vmem:[%s3356 + $0x10] sm:$0xff]
        %v4181 = vld [vmem:[%s3356 + $0x18] sm:$0xff]
        %v4182 = vld [vmem:[%s3356 + $0x20] sm:$0xff]
        %v4183 = vld [vmem:[%s3356 + $0x28] sm:$0xff]
        %v4184 = vld [vmem:[%s3356 + $0x30] sm:$0xff]
        %v4185 = vld [vmem:[%s3356 + $0x38] sm:$0xff]
        %v4186 = vld [vmem:[%s3356 + $0x40] sm:$0xff]
        %v4187 = vld [vmem:[%s3356 + $0x48] sm:$0xff]
        %v4188 = vld [vmem:[%s3356 + $0x50] sm:$0xff]
        %v4189 = vld [vmem:[%s3356 + $0x58] sm:$0xff]
        %v4190 = vld [vmem:[%s3356 + $0x60] sm:$0xff]
        %v4191 = vld [vmem:[%s3356 + $0x68] sm:$0xff]
        %v4192 = vld [vmem:[%s3356 + $0x70] sm:$0xff]
        %v4193 = vld [vmem:[%s3356 + $0x78] sm:$0xff]
        %v4194 = vld [vmem:[%s3356 + $0x80] sm:$0xff]
        %v4195 = vld [vmem:[%s3356 + $0x88] sm:$0xff]
        %v4196 = vld [vmem:[%s3356 + $0x90] sm:$0xff]
        %v4197 = vld [vmem:[%s3356 + $0x98] sm:$0xff]
        %v4198 = vld [vmem:[%s3356 + $0xa0] sm:$0xff]
        %v4199 = vld [vmem:[%s3356 + $0xa8] sm:$0xff]
        %v4200 = vld [vmem:[%s3356 + $0xb0] sm:$0xff]
        %v4201 = vld [vmem:[%s3356 + $0xb8] sm:$0xff]
        %v4202 = vld [vmem:[%s3356 + $0xc0] sm:$0xff]
        %v4203 = vld [vmem:[%s3356 + $0xc8] sm:$0xff]
        %v4204 = vld [vmem:[%s3356 + $0xd0] sm:$0xff]
        %v4205 = vld [vmem:[%s3356 + $0xd8] sm:$0xff]
        %v4206 = vld [vmem:[%s3356 + $0xe0] sm:$0xff]
        %v4207 = vld [vmem:[%s3356 + $0xe8] sm:$0xff]
        %v4208 = vld [vmem:[%s3356 + $0xf0] sm:$0xff]
        %v4209 = vld [vmem:[%s3356 + $0xf8] sm:$0xff]
        %v4214 = vrot.slane %v4174, 1
        %v4215 = vrot.slane %v4176, 1
        %v4216 = vsel %vm967, %v4214, %v4215
        %v4217 = vrot.slane %v4175, 1
        %v4218 = vrot.slane %v4177, 1
        %v4219 = vsel %vm967, %v4217, %v4218
        %v4254 = vunpack.c.l.b16 %v4178
        %v4255 = vunpack.c.h.b16 %v4178
        %v4256 = vunpack.c.l.b16 %v4179
        %v4257 = vunpack.c.h.b16 %v4179
        %v4258 = vunpack.c.l.b16 %v4180
        %v4259 = vunpack.c.h.b16 %v4180
        %v4260 = vunpack.c.l.b16 %v4181
        %v4261 = vunpack.c.h.b16 %v4181
        %v4262 = vunpack.c.l.b16 %v4182
        %v4263 = vunpack.c.h.b16 %v4182
        %v4264 = vunpack.c.l.b16 %v4183
        %v4265 = vunpack.c.h.b16 %v4183
        %v4266 = vunpack.c.l.b16 %v4184
        %v4267 = vunpack.c.h.b16 %v4184
        %v4268 = vunpack.c.l.b16 %v4185
        %v4269 = vunpack.c.h.b16 %v4185
        %v4270 = vunpack.c.l.b16 %v4186
        %v4271 = vunpack.c.h.b16 %v4186
        %v4272 = vunpack.c.l.b16 %v4187
        %v4273 = vunpack.c.h.b16 %v4187
        %v4274 = vunpack.c.l.b16 %v4188
        %v4275 = vunpack.c.h.b16 %v4188
        %v4276 = vunpack.c.l.b16 %v4189
        %v4277 = vunpack.c.h.b16 %v4189
        %v4278 = vunpack.c.l.b16 %v4190
        %v4279 = vunpack.c.h.b16 %v4190
        %v4280 = vunpack.c.l.b16 %v4191
        %v4281 = vunpack.c.h.b16 %v4191
        %v4282 = vunpack.c.l.b16 %v4192
        %v4283 = vunpack.c.h.b16 %v4192
        %v4284 = vunpack.c.l.b16 %v4193
        %v4285 = vunpack.c.h.b16 %v4193
        %v4286 = vunpack.c.l.b16 %v4194
        %v4287 = vunpack.c.h.b16 %v4194
        %v4288 = vunpack.c.l.b16 %v4195
        %v4289 = vunpack.c.h.b16 %v4195
        %v4290 = vunpack.c.l.b16 %v4196
        %v4291 = vunpack.c.h.b16 %v4196
        %v4292 = vunpack.c.l.b16 %v4197
        %v4293 = vunpack.c.h.b16 %v4197
        %v4294 = vunpack.c.l.b16 %v4198
        %v4295 = vunpack.c.h.b16 %v4198
        %v4296 = vunpack.c.l.b16 %v4199
        %v4297 = vunpack.c.h.b16 %v4199
        %v4298 = vunpack.c.l.b16 %v4200
        %v4299 = vunpack.c.h.b16 %v4200
        %v4300 = vunpack.c.l.b16 %v4201
        %v4301 = vunpack.c.h.b16 %v4201
        %v4302 = vunpack.c.l.b16 %v4202
        %v4303 = vunpack.c.h.b16 %v4202
        %v4304 = vunpack.c.l.b16 %v4203
        %v4305 = vunpack.c.h.b16 %v4203
        %v4306 = vunpack.c.l.b16 %v4204
        %v4307 = vunpack.c.h.b16 %v4204
        %v4308 = vunpack.c.l.b16 %v4205
        %v4309 = vunpack.c.h.b16 %v4205
        %v4310 = vunpack.c.l.b16 %v4206
        %v4311 = vunpack.c.h.b16 %v4206
        %v4312 = vunpack.c.l.b16 %v4207
        %v4313 = vunpack.c.h.b16 %v4207
        %v4314 = vunpack.c.l.b16 %v4208
        %v4315 = vunpack.c.h.b16 %v4208
        %v4316 = vunpack.c.l.b16 %v4209
        %v4317 = vunpack.c.h.b16 %v4209
        %v4318 = vpack.c.b16 %v4256, %v4254
        %v4319 = vpack.c.b16 %v4257, %v4255
        %v4320 = vpack.c.b16 %v4260, %v4258
        %v4321 = vpack.c.b16 %v4261, %v4259
        %v4322 = vpack.c.b16 %v4264, %v4262
        %v4323 = vpack.c.b16 %v4265, %v4263
        %v4324 = vpack.c.b16 %v4268, %v4266
        %v4325 = vpack.c.b16 %v4269, %v4267
        %v4326 = vpack.c.b16 %v4272, %v4270
        %v4327 = vpack.c.b16 %v4273, %v4271
        %v4328 = vpack.c.b16 %v4276, %v4274
        %v4329 = vpack.c.b16 %v4277, %v4275
        %v4330 = vpack.c.b16 %v4280, %v4278
        %v4331 = vpack.c.b16 %v4281, %v4279
        %v4332 = vpack.c.b16 %v4284, %v4282
        %v4333 = vpack.c.b16 %v4285, %v4283
        %v4334 = vpack.c.b16 %v4288, %v4286
        %v4335 = vpack.c.b16 %v4289, %v4287
        %v4336 = vpack.c.b16 %v4292, %v4290
        %v4337 = vpack.c.b16 %v4293, %v4291
        %v4338 = vpack.c.b16 %v4296, %v4294
        %v4339 = vpack.c.b16 %v4297, %v4295
        %v4340 = vpack.c.b16 %v4300, %v4298
        %v4341 = vpack.c.b16 %v4301, %v4299
        %v4342 = vpack.c.b16 %v4304, %v4302
        %v4343 = vpack.c.b16 %v4305, %v4303
        %v4344 = vpack.c.b16 %v4308, %v4306
        %v4345 = vpack.c.b16 %v4309, %v4307
        %v4346 = vpack.c.b16 %v4312, %v4310
        %v4347 = vpack.c.b16 %v4313, %v4311
        %v4348 = vpack.c.b16 %v4316, %v4314
        %v4349 = vpack.c.b16 %v4317, %v4315
        %4382 = vmatprep.subr.bf16.mxu0 %v4319
        %4383 = vmatpush1.bf16.msra.mxu0 %v4318
        %4384 = vmatprep.subr.bf16.mxu0 %v4321
        %4385 = vmatpush1.bf16.msra.mxu0 %v4320
        %4386 = vmatprep.subr.bf16.mxu0 %v4323
        %4387 = vmatpush1.bf16.msra.mxu0 %v4322
        %4388 = vmatprep.subr.bf16.mxu0 %v4325
        %4389 = vmatpush1.bf16.msra.mxu0 %v4324
        %4390 = vmatprep.subr.bf16.mxu0 %v4327
        %4391 = vmatpush1.bf16.msra.mxu0 %v4326
        %4392 = vmatprep.subr.bf16.mxu0 %v4329
        %4393 = vmatpush1.bf16.msra.mxu0 %v4328
        %4394 = vmatprep.subr.bf16.mxu0 %v4331
        %4395 = vmatpush1.bf16.msra.mxu0 %v4330
        %4396 = vmatprep.subr.bf16.mxu0 %v4333
        %4397 = vmatpush1.bf16.msra.mxu0 %v4332
        %4398 = vmatprep.subr.bf16.mxu0 %v4335
        %4399 = vmatpush1.bf16.msra.mxu0 %v4334
        %4400 = vmatprep.subr.bf16.mxu0 %v4337
        %4401 = vmatpush1.bf16.msra.mxu0 %v4336
        %4402 = vmatprep.subr.bf16.mxu0 %v4339
        %4403 = vmatpush1.bf16.msra.mxu0 %v4338
        %4404 = vmatprep.subr.bf16.mxu0 %v4341
        %4405 = vmatpush1.bf16.msra.mxu0 %v4340
        %4406 = vmatprep.subr.bf16.mxu0 %v4343
        %4407 = vmatpush1.bf16.msra.mxu0 %v4342
        %4408 = vmatprep.subr.bf16.mxu0 %v4345
        %4409 = vmatpush1.bf16.msra.mxu0 %v4344
        %4410 = vmatprep.subr.bf16.mxu0 %v4347
        %4411 = vmatpush1.bf16.msra.mxu0 %v4346
        %4412 = vmatprep.subr.bf16.mxu0 %v4349
        %4413 = vmatpush1.bf16.msra.mxu0 %v4348
        %4414 = vmatprep.mubr.bf16.mxu0 %v4219
        %4415 = vmatmul.mubr.bf16.gmra.mrb[0].mxu0 %v4216
        %v4416 = vpop.f32.mrb[0].mxu0
        %v4417 = vadd.f32 0.0, %v4416
        %v4418 = vpop.f32.mrb[0].mxu0
        %v4419 = vadd.f32 0.0, %v4418
        %v4420 = vpop.f32.mrb[0].mxu0
        %v4421 = vadd.f32 0.0, %v4420
        %v4422 = vpop.f32.mrb[0].mxu0
        %v4423 = vadd.f32 0.0, %v4422
        %4424 = vdwg.mxu0
        %v4425 = vadd.f32 %v4162, %v4417
        %v4426 = vadd.f32 %v4164, %v4419
        %v4427 = vadd.f32 %v4166, %v4421
        %v4428 = vadd.f32 %v4168, %v4423
        %v4429 = vadd.f32 %v4425, %v3621
        %v4430 = vadd.f32 %v4426, %v3625
        %v4431 = vadd.f32 %v4427, %v3621
        %v4432 = vadd.f32 %v4428, %v3625
        %v4433 = vmax.f32 %v4429, 0.0
        %v4434 = vmax.f32 %v4430, 0.0
        %v4435 = vmax.f32 %v4431, 0.0
        %v4436 = vmax.f32 %v4432, 0.0
        %v4437 = vadd.f32 %v4433, %v2811
        %v4438 = vadd.f32 %v4434, %v2812
        %v4439 = vadd.f32 %v4435, %v2813
        %v4440 = vadd.f32 %v4436, %v2814
        %v4445 = vrot.slane %v4437, 7
        %v4446 = vrot.slane %v4438, 7
        %v4447 = vrot.slane %v4439, 7
        %v4448 = vsel %vm391, %v4445, %v4447
        %v4449 = vrot.slane %v4440, 7
        %v4450 = vsel %vm391, %v4446, %v4449
        %4457 = vst [vmem:[#allocation2] sm:$0xfe] %v4445
        %4458 = vst [vmem:[#allocation2 + $0x8] sm:$0xfe] %v4446
        %4459 = vst [vmem:[#allocation2 + $0x10] sm:$0xff] %v4448
        %4460 = vst [vmem:[#allocation2 + $0x18] sm:$0xff] %v4450
        %4461 = vst [vmem:[#allocation2 + $0x20] sm:$0x1] %v4447
        %4462 = vst [vmem:[#allocation2 + $0x28] sm:$0x1] %v4449
        %v4463 = vld [vmem:[#allocation2] sm:$0xff]
        %v4464 = vld [vmem:[#allocation2 + $0x8] sm:$0xff]
        %v4465 = vld [vmem:[#allocation2 + $0x10] sm:$0xff]
        %v4466 = vld [vmem:[#allocation2 + $0x18] sm:$0xff]
        %v4467 = vpack.c.bf16 %v4465, %v4463
        %v4468 = vpack.c.bf16 %v4466, %v4464
        %v4469 = vld [vmem:[#allocation5] sm:$0xff]
        %v4470 = vld [vmem:[#allocation5 + $0x8] sm:$0xff]
        %v4471 = vld [vmem:[#allocation5 + $0x10] sm:$0xff]
        %v4472 = vld [vmem:[#allocation5 + $0x18] sm:$0xff]
        %v4473 = vld [vmem:[#allocation5 + $0x20] sm:$0xff]
        %v4474 = vld [vmem:[#allocation5 + $0x28] sm:$0xff]
        %v4475 = vld [vmem:[#allocation5 + $0x30] sm:$0xff]
        %v4476 = vld [vmem:[#allocation5 + $0x38] sm:$0xff]
        %v4477 = vld [vmem:[#allocation5 + $0x40] sm:$0xff]
        %v4478 = vld [vmem:[#allocation5 + $0x48] sm:$0xff]
        %v4479 = vld [vmem:[#allocation5 + $0x50] sm:$0xff]
        %v4480 = vld [vmem:[#allocation5 + $0x58] sm:$0xff]
        %v4481 = vld [vmem:[#allocation5 + $0x60] sm:$0xff]
        %v4482 = vld [vmem:[#allocation5 + $0x68] sm:$0xff]
        %v4483 = vld [vmem:[#allocation5 + $0x70] sm:$0xff]
        %v4484 = vld [vmem:[#allocation5 + $0x78] sm:$0xff]
        %v4485 = vld [vmem:[#allocation5 + $0x80] sm:$0xff]
        %v4486 = vld [vmem:[#allocation5 + $0x88] sm:$0xff]
        %v4487 = vld [vmem:[#allocation5 + $0x90] sm:$0xff]
        %v4488 = vld [vmem:[#allocation5 + $0x98] sm:$0xff]
        %v4489 = vld [vmem:[#allocation5 + $0xa0] sm:$0xff]
        %v4490 = vld [vmem:[#allocation5 + $0xa8] sm:$0xff]
        %v4491 = vld [vmem:[#allocation5 + $0xb0] sm:$0xff]
        %v4492 = vld [vmem:[#allocation5 + $0xb8] sm:$0xff]
        %v4493 = vld [vmem:[#allocation5 + $0xc0] sm:$0xff]
        %v4494 = vld [vmem:[#allocation5 + $0xc8] sm:$0xff]
        %v4495 = vld [vmem:[#allocation5 + $0xd0] sm:$0xff]
        %v4496 = vld [vmem:[#allocation5 + $0xd8] sm:$0xff]
        %v4497 = vld [vmem:[#allocation5 + $0xe0] sm:$0xff]
        %v4498 = vld [vmem:[#allocation5 + $0xe8] sm:$0xff]
        %v4499 = vld [vmem:[#allocation5 + $0xf0] sm:$0xff]
        %v4500 = vld [vmem:[#allocation5 + $0xf8] sm:$0xff]
        %v4501 = vld [vmem:[#allocation2] sm:$0xfe]
        %v4502 = vld [vmem:[#allocation2 + $0x8] sm:$0xfe]
        %v4503 = vld [vmem:[#allocation2 + $0x20] sm:$0x1]
        %v4504 = vld [vmem:[#allocation2 + $0x28] sm:$0x1]
        %v4505 = vpack.c.bf16 %v4465, %v4501
        %v4506 = vpack.c.bf16 %v4466, %v4502
        %v4507 = vpack.c.bf16 %v4503, %v4503
        %v4508 = vpack.c.bf16 %v4504, %v4504
        %v4509 = vld [vmem:[%s2883] sm:$0xff]
        %v4510 = vld [vmem:[%s2883 + $0x8] sm:$0xff]
        %v4511 = vld [vmem:[%s2883 + $0x10] sm:$0xff]
        %v4512 = vld [vmem:[%s2883 + $0x18] sm:$0xff]
        %v4513 = vld [vmem:[%s2883 + $0x20] sm:$0xff]
        %v4514 = vld [vmem:[%s2883 + $0x28] sm:$0xff]
        %v4515 = vld [vmem:[%s2883 + $0x30] sm:$0xff]
        %v4516 = vld [vmem:[%s2883 + $0x38] sm:$0xff]
        %v4517 = vld [vmem:[%s2883 + $0x40] sm:$0xff]
        %v4518 = vld [vmem:[%s2883 + $0x48] sm:$0xff]
        %v4519 = vld [vmem:[%s2883 + $0x50] sm:$0xff]
        %v4520 = vld [vmem:[%s2883 + $0x58] sm:$0xff]
        %v4521 = vld [vmem:[%s2883 + $0x60] sm:$0xff]
        %v4522 = vld [vmem:[%s2883 + $0x68] sm:$0xff]
        %v4523 = vld [vmem:[%s2883 + $0x70] sm:$0xff]
        %v4524 = vld [vmem:[%s2883 + $0x78] sm:$0xff]
        %v4525 = vld [vmem:[%s2883 + $0x80] sm:$0xff]
        %v4526 = vld [vmem:[%s2883 + $0x88] sm:$0xff]
        %v4527 = vld [vmem:[%s2883 + $0x90] sm:$0xff]
        %v4528 = vld [vmem:[%s2883 + $0x98] sm:$0xff]
        %v4529 = vld [vmem:[%s2883 + $0xa0] sm:$0xff]
        %v4530 = vld [vmem:[%s2883 + $0xa8] sm:$0xff]
        %v4531 = vld [vmem:[%s2883 + $0xb0] sm:$0xff]
        %v4532 = vld [vmem:[%s2883 + $0xb8] sm:$0xff]
        %v4533 = vld [vmem:[%s2883 + $0xc0] sm:$0xff]
        %v4534 = vld [vmem:[%s2883 + $0xc8] sm:$0xff]
        %v4535 = vld [vmem:[%s2883 + $0xd0] sm:$0xff]
        %v4536 = vld [vmem:[%s2883 + $0xd8] sm:$0xff]
        %v4537 = vld [vmem:[%s2883 + $0xe0] sm:$0xff]
        %v4538 = vld [vmem:[%s2883 + $0xe8] sm:$0xff]
        %v4539 = vld [vmem:[%s2883 + $0xf0] sm:$0xff]
        %v4540 = vld [vmem:[%s2883 + $0xf8] sm:$0xff]
        %v4542 = vshrl.u32 %v4505, 16
        %v4544 = vshll.u32 %v4505, 16
        %v4546 = vrot.slane %v4544, 1
        %v4547 = vor.u32 %v4542, %v4546
        %v4549 = vshll.u32 %v4507, 16
        %v4551 = vrot.slane %v4549, 1
        %v4552 = vsel %vm489, %v4547, %v4551
        %v4554 = vshrl.u32 %v4506, 16
        %v4556 = vshll.u32 %v4506, 16
        %v4558 = vrot.slane %v4556, 1
        %v4559 = vor.u32 %v4554, %v4558
        %v4561 = vshll.u32 %v4508, 16
        %v4563 = vrot.slane %v4561, 1
        %v4564 = vsel %vm489, %v4559, %v4563
        %v4599 = vunpack.c.l.b16 %v4509
        %v4600 = vunpack.c.h.b16 %v4509
        %v4601 = vunpack.c.l.b16 %v4510
        %v4602 = vunpack.c.h.b16 %v4510
        %v4603 = vunpack.c.l.b16 %v4511
        %v4604 = vunpack.c.h.b16 %v4511
        %v4605 = vunpack.c.l.b16 %v4512
        %v4606 = vunpack.c.h.b16 %v4512
        %v4607 = vunpack.c.l.b16 %v4513
        %v4608 = vunpack.c.h.b16 %v4513
        %v4609 = vunpack.c.l.b16 %v4514
        %v4610 = vunpack.c.h.b16 %v4514
        %v4611 = vunpack.c.l.b16 %v4515
        %v4612 = vunpack.c.h.b16 %v4515
        %v4613 = vunpack.c.l.b16 %v4516
        %v4614 = vunpack.c.h.b16 %v4516
        %v4615 = vunpack.c.l.b16 %v4517
        %v4616 = vunpack.c.h.b16 %v4517
        %v4617 = vunpack.c.l.b16 %v4518
        %v4618 = vunpack.c.h.b16 %v4518
        %v4619 = vunpack.c.l.b16 %v4519
        %v4620 = vunpack.c.h.b16 %v4519
        %v4621 = vunpack.c.l.b16 %v4520
        %v4622 = vunpack.c.h.b16 %v4520
        %v4623 = vunpack.c.l.b16 %v4521
        %v4624 = vunpack.c.h.b16 %v4521
        %v4625 = vunpack.c.l.b16 %v4522
        %v4626 = vunpack.c.h.b16 %v4522
        %v4627 = vunpack.c.l.b16 %v4523
        %v4628 = vunpack.c.h.b16 %v4523
        %v4629 = vunpack.c.l.b16 %v4524
        %v4630 = vunpack.c.h.b16 %v4524
        %v4631 = vunpack.c.l.b16 %v4525
        %v4632 = vunpack.c.h.b16 %v4525
        %v4633 = vunpack.c.l.b16 %v4526
        %v4634 = vunpack.c.h.b16 %v4526
        %v4635 = vunpack.c.l.b16 %v4527
        %v4636 = vunpack.c.h.b16 %v4527
        %v4637 = vunpack.c.l.b16 %v4528
        %v4638 = vunpack.c.h.b16 %v4528
        %v4639 = vunpack.c.l.b16 %v4529
        %v4640 = vunpack.c.h.b16 %v4529
        %v4641 = vunpack.c.l.b16 %v4530
        %v4642 = vunpack.c.h.b16 %v4530
        %v4643 = vunpack.c.l.b16 %v4531
        %v4644 = vunpack.c.h.b16 %v4531
        %v4645 = vunpack.c.l.b16 %v4532
        %v4646 = vunpack.c.h.b16 %v4532
        %v4647 = vunpack.c.l.b16 %v4533
        %v4648 = vunpack.c.h.b16 %v4533
        %v4649 = vunpack.c.l.b16 %v4534
        %v4650 = vunpack.c.h.b16 %v4534
        %v4651 = vunpack.c.l.b16 %v4535
        %v4652 = vunpack.c.h.b16 %v4535
        %v4653 = vunpack.c.l.b16 %v4536
        %v4654 = vunpack.c.h.b16 %v4536
        %v4655 = vunpack.c.l.b16 %v4537
        %v4656 = vunpack.c.h.b16 %v4537
        %v4657 = vunpack.c.l.b16 %v4538
        %v4658 = vunpack.c.h.b16 %v4538
        %v4659 = vunpack.c.l.b16 %v4539
        %v4660 = vunpack.c.h.b16 %v4539
        %v4661 = vunpack.c.l.b16 %v4540
        %v4662 = vunpack.c.h.b16 %v4540
        %v4663 = vpack.c.b16 %v4601, %v4599
        %v4664 = vpack.c.b16 %v4602, %v4600
        %v4665 = vpack.c.b16 %v4605, %v4603
        %v4666 = vpack.c.b16 %v4606, %v4604
        %v4667 = vpack.c.b16 %v4609, %v4607
        %v4668 = vpack.c.b16 %v4610, %v4608
        %v4669 = vpack.c.b16 %v4613, %v4611
        %v4670 = vpack.c.b16 %v4614, %v4612
        %v4671 = vpack.c.b16 %v4617, %v4615
        %v4672 = vpack.c.b16 %v4618, %v4616
        %v4673 = vpack.c.b16 %v4621, %v4619
        %v4674 = vpack.c.b16 %v4622, %v4620
        %v4675 = vpack.c.b16 %v4625, %v4623
        %v4676 = vpack.c.b16 %v4626, %v4624
        %v4677 = vpack.c.b16 %v4629, %v4627
        %v4678 = vpack.c.b16 %v4630, %v4628
        %v4679 = vpack.c.b16 %v4633, %v4631
        %v4680 = vpack.c.b16 %v4634, %v4632
        %v4681 = vpack.c.b16 %v4637, %v4635
        %v4682 = vpack.c.b16 %v4638, %v4636
        %v4683 = vpack.c.b16 %v4641, %v4639
        %v4684 = vpack.c.b16 %v4642, %v4640
        %v4685 = vpack.c.b16 %v4645, %v4643
        %v4686 = vpack.c.b16 %v4646, %v4644
        %v4687 = vpack.c.b16 %v4649, %v4647
        %v4688 = vpack.c.b16 %v4650, %v4648
        %v4689 = vpack.c.b16 %v4653, %v4651
        %v4690 = vpack.c.b16 %v4654, %v4652
        %v4691 = vpack.c.b16 %v4657, %v4655
        %v4692 = vpack.c.b16 %v4658, %v4656
        %v4693 = vpack.c.b16 %v4661, %v4659
        %v4694 = vpack.c.b16 %v4662, %v4660
        %4727 = vmatprep.subr.bf16.mxu0 %v4664
        %4728 = vmatpush1.bf16.msra.mxu0 %v4663
        %4729 = vmatprep.subr.bf16.mxu0 %v4666
        %4730 = vmatpush1.bf16.msra.mxu0 %v4665
        %4731 = vmatprep.subr.bf16.mxu0 %v4668
        %4732 = vmatpush1.bf16.msra.mxu0 %v4667
        %4733 = vmatprep.subr.bf16.mxu0 %v4670
        %4734 = vmatpush1.bf16.msra.mxu0 %v4669
        %4735 = vmatprep.subr.bf16.mxu0 %v4672
        %4736 = vmatpush1.bf16.msra.mxu0 %v4671
        %4737 = vmatprep.subr.bf16.mxu0 %v4674
        %4738 = vmatpush1.bf16.msra.mxu0 %v4673
        %4739 = vmatprep.subr.bf16.mxu0 %v4676
        %4740 = vmatpush1.bf16.msra.mxu0 %v4675
        %4741 = vmatprep.subr.bf16.mxu0 %v4678
        %4742 = vmatpush1.bf16.msra.mxu0 %v4677
        %4743 = vmatprep.subr.bf16.mxu0 %v4680
        %4744 = vmatpush1.bf16.msra.mxu0 %v4679
        %4745 = vmatprep.subr.bf16.mxu0 %v4682
        %4746 = vmatpush1.bf16.msra.mxu0 %v4681
        %4747 = vmatprep.subr.bf16.mxu0 %v4684
        %4748 = vmatpush1.bf16.msra.mxu0 %v4683
        %4749 = vmatprep.subr.bf16.mxu0 %v4686
        %4750 = vmatpush1.bf16.msra.mxu0 %v4685
        %4751 = vmatprep.subr.bf16.mxu0 %v4688
        %4752 = vmatpush1.bf16.msra.mxu0 %v4687
        %4753 = vmatprep.subr.bf16.mxu0 %v4690
        %4754 = vmatpush1.bf16.msra.mxu0 %v4689
        %4755 = vmatprep.subr.bf16.mxu0 %v4692
        %4756 = vmatpush1.bf16.msra.mxu0 %v4691
        %4757 = vmatprep.subr.bf16.mxu0 %v4694
        %4758 = vmatpush1.bf16.msra.mxu0 %v4693
        %4759 = vmatprep.mubr.bf16.mxu0 %v4564
        %4760 = vmatmul.mubr.bf16.gmra.mrb[0].mxu0 %v4552
        %v4761 = vpop.f32.mrb[0].mxu0
        %v4762 = vadd.f32 0.0, %v4761
        %v4763 = vpop.f32.mrb[0].mxu0
        %v4764 = vadd.f32 0.0, %v4763
        %v4765 = vpop.f32.mrb[0].mxu0
        %v4766 = vadd.f32 0.0, %v4765
        %v4767 = vpop.f32.mrb[0].mxu0
        %v4768 = vadd.f32 0.0, %v4767
        %4769 = vdwg.mxu0
        %v4802 = vunpack.c.l.b16 %v4469
        %v4803 = vunpack.c.h.b16 %v4469
        %v4804 = vunpack.c.l.b16 %v4470
        %v4805 = vunpack.c.h.b16 %v4470
        %v4806 = vunpack.c.l.b16 %v4471
        %v4807 = vunpack.c.h.b16 %v4471
        %v4808 = vunpack.c.l.b16 %v4472
        %v4809 = vunpack.c.h.b16 %v4472
        %v4810 = vunpack.c.l.b16 %v4473
        %v4811 = vunpack.c.h.b16 %v4473
        %v4812 = vunpack.c.l.b16 %v4474
        %v4813 = vunpack.c.h.b16 %v4474
        %v4814 = vunpack.c.l.b16 %v4475
        %v4815 = vunpack.c.h.b16 %v4475
        %v4816 = vunpack.c.l.b16 %v4476
        %v4817 = vunpack.c.h.b16 %v4476
        %v4818 = vunpack.c.l.b16 %v4477
        %v4819 = vunpack.c.h.b16 %v4477
        %v4820 = vunpack.c.l.b16 %v4478
        %v4821 = vunpack.c.h.b16 %v4478
        %v4822 = vunpack.c.l.b16 %v4479
        %v4823 = vunpack.c.h.b16 %v4479
        %v4824 = vunpack.c.l.b16 %v4480
        %v4825 = vunpack.c.h.b16 %v4480
        %v4826 = vunpack.c.l.b16 %v4481
        %v4827 = vunpack.c.h.b16 %v4481
        %v4828 = vunpack.c.l.b16 %v4482
        %v4829 = vunpack.c.h.b16 %v4482
        %v4830 = vunpack.c.l.b16 %v4483
        %v4831 = vunpack.c.h.b16 %v4483
        %v4832 = vunpack.c.l.b16 %v4484
        %v4833 = vunpack.c.h.b16 %v4484
        %v4834 = vunpack.c.l.b16 %v4485
        %v4835 = vunpack.c.h.b16 %v4485
        %v4836 = vunpack.c.l.b16 %v4486
        %v4837 = vunpack.c.h.b16 %v4486
        %v4838 = vunpack.c.l.b16 %v4487
        %v4839 = vunpack.c.h.b16 %v4487
        %v4840 = vunpack.c.l.b16 %v4488
        %v4841 = vunpack.c.h.b16 %v4488
        %v4842 = vunpack.c.l.b16 %v4489
        %v4843 = vunpack.c.h.b16 %v4489
        %v4844 = vunpack.c.l.b16 %v4490
        %v4845 = vunpack.c.h.b16 %v4490
        %v4846 = vunpack.c.l.b16 %v4491
        %v4847 = vunpack.c.h.b16 %v4491
        %v4848 = vunpack.c.l.b16 %v4492
        %v4849 = vunpack.c.h.b16 %v4492
        %v4850 = vunpack.c.l.b16 %v4493
        %v4851 = vunpack.c.h.b16 %v4493
        %v4852 = vunpack.c.l.b16 %v4494
        %v4853 = vunpack.c.h.b16 %v4494
        %v4854 = vunpack.c.l.b16 %v4495
        %v4855 = vunpack.c.h.b16 %v4495
        %v4856 = vunpack.c.l.b16 %v4496
        %v4857 = vunpack.c.h.b16 %v4496
        %v4858 = vunpack.c.l.b16 %v4497
        %v4859 = vunpack.c.h.b16 %v4497
        %v4860 = vunpack.c.l.b16 %v4498
        %v4861 = vunpack.c.h.b16 %v4498
        %v4862 = vunpack.c.l.b16 %v4499
        %v4863 = vunpack.c.h.b16 %v4499
        %v4864 = vunpack.c.l.b16 %v4500
        %v4865 = vunpack.c.h.b16 %v4500
        %v4866 = vpack.c.b16 %v4804, %v4802
        %v4867 = vpack.c.b16 %v4805, %v4803
        %v4868 = vpack.c.b16 %v4808, %v4806
        %v4869 = vpack.c.b16 %v4809, %v4807
        %v4870 = vpack.c.b16 %v4812, %v4810
        %v4871 = vpack.c.b16 %v4813, %v4811
        %v4872 = vpack.c.b16 %v4816, %v4814
        %v4873 = vpack.c.b16 %v4817, %v4815
        %v4874 = vpack.c.b16 %v4820, %v4818
        %v4875 = vpack.c.b16 %v4821, %v4819
        %v4876 = vpack.c.b16 %v4824, %v4822
        %v4877 = vpack.c.b16 %v4825, %v4823
        %v4878 = vpack.c.b16 %v4828, %v4826
        %v4879 = vpack.c.b16 %v4829, %v4827
        %v4880 = vpack.c.b16 %v4832, %v4830
        %v4881 = vpack.c.b16 %v4833, %v4831
        %v4882 = vpack.c.b16 %v4836, %v4834
        %v4883 = vpack.c.b16 %v4837, %v4835
        %v4884 = vpack.c.b16 %v4840, %v4838
        %v4885 = vpack.c.b16 %v4841, %v4839
        %v4886 = vpack.c.b16 %v4844, %v4842
        %v4887 = vpack.c.b16 %v4845, %v4843
        %v4888 = vpack.c.b16 %v4848, %v4846
        %v4889 = vpack.c.b16 %v4849, %v4847
        %v4890 = vpack.c.b16 %v4852, %v4850
        %v4891 = vpack.c.b16 %v4853, %v4851
        %v4892 = vpack.c.b16 %v4856, %v4854
        %v4893 = vpack.c.b16 %v4857, %v4855
        %v4894 = vpack.c.b16 %v4860, %v4858
        %v4895 = vpack.c.b16 %v4861, %v4859
        %v4896 = vpack.c.b16 %v4864, %v4862
        %v4897 = vpack.c.b16 %v4865, %v4863
        %4930 = vmatprep.subr.bf16.mxu0 %v4867
        %4931 = vmatpush1.bf16.msra.mxu0 %v4866
        %4932 = vmatprep.subr.bf16.mxu0 %v4869
        %4933 = vmatpush1.bf16.msra.mxu0 %v4868
        %4934 = vmatprep.subr.bf16.mxu0 %v4871
        %4935 = vmatpush1.bf16.msra.mxu0 %v4870
        %4936 = vmatprep.subr.bf16.mxu0 %v4873
        %4937 = vmatpush1.bf16.msra.mxu0 %v4872
        %4938 = vmatprep.subr.bf16.mxu0 %v4875
        %4939 = vmatpush1.bf16.msra.mxu0 %v4874
        %4940 = vmatprep.subr.bf16.mxu0 %v4877
        %4941 = vmatpush1.bf16.msra.mxu0 %v4876
        %4942 = vmatprep.subr.bf16.mxu0 %v4879
        %4943 = vmatpush1.bf16.msra.mxu0 %v4878
        %4944 = vmatprep.subr.bf16.mxu0 %v4881
        %4945 = vmatpush1.bf16.msra.mxu0 %v4880
        %4946 = vmatprep.subr.bf16.mxu0 %v4883
        %4947 = vmatpush1.bf16.msra.mxu0 %v4882
        %4948 = vmatprep.subr.bf16.mxu0 %v4885
        %4949 = vmatpush1.bf16.msra.mxu0 %v4884
        %4950 = vmatprep.subr.bf16.mxu0 %v4887
        %4951 = vmatpush1.bf16.msra.mxu0 %v4886
        %4952 = vmatprep.subr.bf16.mxu0 %v4889
        %4953 = vmatpush1.bf16.msra.mxu0 %v4888
        %4954 = vmatprep.subr.bf16.mxu0 %v4891
        %4955 = vmatpush1.bf16.msra.mxu0 %v4890
        %4956 = vmatprep.subr.bf16.mxu0 %v4893
        %4957 = vmatpush1.bf16.msra.mxu0 %v4892
        %4958 = vmatprep.subr.bf16.mxu0 %v4895
        %4959 = vmatpush1.bf16.msra.mxu0 %v4894
        %4960 = vmatprep.subr.bf16.mxu0 %v4897
        %4961 = vmatpush1.bf16.msra.mxu0 %v4896
        %4962 = vmatprep.mubr.bf16.mxu0 %v4468
        %4963 = vmatmul.mubr.bf16.gmra.mrb[0].mxu0 %v4467
        %v4964 = vpop.f32.mrb[0].mxu0
        %v4965 = vadd.f32 %v4762, %v4964
        %v4966 = vpop.f32.mrb[0].mxu0
        %v4967 = vadd.f32 %v4764, %v4966
        %v4968 = vpop.f32.mrb[0].mxu0
        %v4969 = vadd.f32 %v4766, %v4968
        %v4970 = vpop.f32.mrb[0].mxu0
        %v4971 = vadd.f32 %v4768, %v4970
        %4972 = vdwg.mxu0
        %v4973 = vld [vmem:[#allocation2] sm:$0xfc]
        %v4974 = vld [vmem:[#allocation2 + $0x8] sm:$0xfc]
        %v4975 = vld [vmem:[#allocation2 + $0x20] sm:$0x3]
        %v4976 = vld [vmem:[#allocation2 + $0x28] sm:$0x3]
        %v4977 = vpack.c.bf16 %v4465, %v4973
        %v4978 = vpack.c.bf16 %v4466, %v4974
        %v4979 = vpack.c.bf16 %v4975, %v4975
        %v4980 = vpack.c.bf16 %v4976, %v4976
        %v4981 = vld [vmem:[%s3356] sm:$0xff]
        %v4982 = vld [vmem:[%s3356 + $0x8] sm:$0xff]
        %v4983 = vld [vmem:[%s3356 + $0x10] sm:$0xff]
        %v4984 = vld [vmem:[%s3356 + $0x18] sm:$0xff]
        %v4985 = vld [vmem:[%s3356 + $0x20] sm:$0xff]
        %v4986 = vld [vmem:[%s3356 + $0x28] sm:$0xff]
        %v4987 = vld [vmem:[%s3356 + $0x30] sm:$0xff]
        %v4988 = vld [vmem:[%s3356 + $0x38] sm:$0xff]
        %v4989 = vld [vmem:[%s3356 + $0x40] sm:$0xff]
        %v4990 = vld [vmem:[%s3356 + $0x48] sm:$0xff]
        %v4991 = vld [vmem:[%s3356 + $0x50] sm:$0xff]
        %v4992 = vld [vmem:[%s3356 + $0x58] sm:$0xff]
        %v4993 = vld [vmem:[%s3356 + $0x60] sm:$0xff]
        %v4994 = vld [vmem:[%s3356 + $0x68] sm:$0xff]
        %v4995 = vld [vmem:[%s3356 + $0x70] sm:$0xff]
        %v4996 = vld [vmem:[%s3356 + $0x78] sm:$0xff]
        %v4997 = vld [vmem:[%s3356 + $0x80] sm:$0xff]
        %v4998 = vld [vmem:[%s3356 + $0x88] sm:$0xff]
        %v4999 = vld [vmem:[%s3356 + $0x90] sm:$0xff]
        %v5000 = vld [vmem:[%s3356 + $0x98] sm:$0xff]
        %v5001 = vld [vmem:[%s3356 + $0xa0] sm:$0xff]
        %v5002 = vld [vmem:[%s3356 + $0xa8] sm:$0xff]
        %v5003 = vld [vmem:[%s3356 + $0xb0] sm:$0xff]
        %v5004 = vld [vmem:[%s3356 + $0xb8] sm:$0xff]
        %v5005 = vld [vmem:[%s3356 + $0xc0] sm:$0xff]
        %v5006 = vld [vmem:[%s3356 + $0xc8] sm:$0xff]
        %v5007 = vld [vmem:[%s3356 + $0xd0] sm:$0xff]
        %v5008 = vld [vmem:[%s3356 + $0xd8] sm:$0xff]
        %v5009 = vld [vmem:[%s3356 + $0xe0] sm:$0xff]
        %v5010 = vld [vmem:[%s3356 + $0xe8] sm:$0xff]
        %v5011 = vld [vmem:[%s3356 + $0xf0] sm:$0xff]
        %v5012 = vld [vmem:[%s3356 + $0xf8] sm:$0xff]
        %v5017 = vrot.slane %v4977, 1
        %v5018 = vrot.slane %v4979, 1
        %v5019 = vsel %vm967, %v5017, %v5018
        %v5020 = vrot.slane %v4978, 1
        %v5021 = vrot.slane %v4980, 1
        %v5022 = vsel %vm967, %v5020, %v5021
        %v5057 = vunpack.c.l.b16 %v4981
        %v5058 = vunpack.c.h.b16 %v4981
        %v5059 = vunpack.c.l.b16 %v4982
        %v5060 = vunpack.c.h.b16 %v4982
        %v5061 = vunpack.c.l.b16 %v4983
        %v5062 = vunpack.c.h.b16 %v4983
        %v5063 = vunpack.c.l.b16 %v4984
        %v5064 = vunpack.c.h.b16 %v4984
        %v5065 = vunpack.c.l.b16 %v4985
        %v5066 = vunpack.c.h.b16 %v4985
        %v5067 = vunpack.c.l.b16 %v4986
        %v5068 = vunpack.c.h.b16 %v4986
        %v5069 = vunpack.c.l.b16 %v4987
        %v5070 = vunpack.c.h.b16 %v4987
        %v5071 = vunpack.c.l.b16 %v4988
        %v5072 = vunpack.c.h.b16 %v4988
        %v5073 = vunpack.c.l.b16 %v4989
        %v5074 = vunpack.c.h.b16 %v4989
        %v5075 = vunpack.c.l.b16 %v4990
        %v5076 = vunpack.c.h.b16 %v4990
        %v5077 = vunpack.c.l.b16 %v4991
        %v5078 = vunpack.c.h.b16 %v4991
        %v5079 = vunpack.c.l.b16 %v4992
        %v5080 = vunpack.c.h.b16 %v4992
        %v5081 = vunpack.c.l.b16 %v4993
        %v5082 = vunpack.c.h.b16 %v4993
        %v5083 = vunpack.c.l.b16 %v4994
        %v5084 = vunpack.c.h.b16 %v4994
        %v5085 = vunpack.c.l.b16 %v4995
        %v5086 = vunpack.c.h.b16 %v4995
        %v5087 = vunpack.c.l.b16 %v4996
        %v5088 = vunpack.c.h.b16 %v4996
        %v5089 = vunpack.c.l.b16 %v4997
        %v5090 = vunpack.c.h.b16 %v4997
        %v5091 = vunpack.c.l.b16 %v4998
        %v5092 = vunpack.c.h.b16 %v4998
        %v5093 = vunpack.c.l.b16 %v4999
        %v5094 = vunpack.c.h.b16 %v4999
        %v5095 = vunpack.c.l.b16 %v5000
        %v5096 = vunpack.c.h.b16 %v5000
        %v5097 = vunpack.c.l.b16 %v5001
        %v5098 = vunpack.c.h.b16 %v5001
        %v5099 = vunpack.c.l.b16 %v5002
        %v5100 = vunpack.c.h.b16 %v5002
        %v5101 = vunpack.c.l.b16 %v5003
        %v5102 = vunpack.c.h.b16 %v5003
        %v5103 = vunpack.c.l.b16 %v5004
        %v5104 = vunpack.c.h.b16 %v5004
        %v5105 = vunpack.c.l.b16 %v5005
        %v5106 = vunpack.c.h.b16 %v5005
        %v5107 = vunpack.c.l.b16 %v5006
        %v5108 = vunpack.c.h.b16 %v5006
        %v5109 = vunpack.c.l.b16 %v5007
        %v5110 = vunpack.c.h.b16 %v5007
        %v5111 = vunpack.c.l.b16 %v5008
        %v5112 = vunpack.c.h.b16 %v5008
        %v5113 = vunpack.c.l.b16 %v5009
        %v5114 = vunpack.c.h.b16 %v5009
        %v5115 = vunpack.c.l.b16 %v5010
        %v5116 = vunpack.c.h.b16 %v5010
        %v5117 = vunpack.c.l.b16 %v5011
        %v5118 = vunpack.c.h.b16 %v5011
        %v5119 = vunpack.c.l.b16 %v5012
        %v5120 = vunpack.c.h.b16 %v5012
        %v5121 = vpack.c.b16 %v5059, %v5057
        %v5122 = vpack.c.b16 %v5060, %v5058
        %v5123 = vpack.c.b16 %v5063, %v5061
        %v5124 = vpack.c.b16 %v5064, %v5062
        %v5125 = vpack.c.b16 %v5067, %v5065
        %v5126 = vpack.c.b16 %v5068, %v5066
        %v5127 = vpack.c.b16 %v5071, %v5069
        %v5128 = vpack.c.b16 %v5072, %v5070
        %v5129 = vpack.c.b16 %v5075, %v5073
        %v5130 = vpack.c.b16 %v5076, %v5074
        %v5131 = vpack.c.b16 %v5079, %v5077
        %v5132 = vpack.c.b16 %v5080, %v5078
        %v5133 = vpack.c.b16 %v5083, %v5081
        %v5134 = vpack.c.b16 %v5084, %v5082
        %v5135 = vpack.c.b16 %v5087, %v5085
        %v5136 = vpack.c.b16 %v5088, %v5086
        %v5137 = vpack.c.b16 %v5091, %v5089
        %v5138 = vpack.c.b16 %v5092, %v5090
        %v5139 = vpack.c.b16 %v5095, %v5093
        %v5140 = vpack.c.b16 %v5096, %v5094
        %v5141 = vpack.c.b16 %v5099, %v5097
        %v5142 = vpack.c.b16 %v5100, %v5098
        %v5143 = vpack.c.b16 %v5103, %v5101
        %v5144 = vpack.c.b16 %v5104, %v5102
        %v5145 = vpack.c.b16 %v5107, %v5105
        %v5146 = vpack.c.b16 %v5108, %v5106
        %v5147 = vpack.c.b16 %v5111, %v5109
        %v5148 = vpack.c.b16 %v5112, %v5110
        %v5149 = vpack.c.b16 %v5115, %v5113
        %v5150 = vpack.c.b16 %v5116, %v5114
        %v5151 = vpack.c.b16 %v5119, %v5117
        %v5152 = vpack.c.b16 %v5120, %v5118
        %5185 = vmatprep.subr.bf16.mxu0 %v5122
        %5186 = vmatpush1.bf16.msra.mxu0 %v5121
        %5187 = vmatprep.subr.bf16.mxu0 %v5124
        %5188 = vmatpush1.bf16.msra.mxu0 %v5123
        %5189 = vmatprep.subr.bf16.mxu0 %v5126
        %5190 = vmatpush1.bf16.msra.mxu0 %v5125
        %5191 = vmatprep.subr.bf16.mxu0 %v5128
        %5192 = vmatpush1.bf16.msra.mxu0 %v5127
        %5193 = vmatprep.subr.bf16.mxu0 %v5130
        %5194 = vmatpush1.bf16.msra.mxu0 %v5129
        %5195 = vmatprep.subr.bf16.mxu0 %v5132
        %5196 = vmatpush1.bf16.msra.mxu0 %v5131
        %5197 = vmatprep.subr.bf16.mxu0 %v5134
        %5198 = vmatpush1.bf16.msra.mxu0 %v5133
        %5199 = vmatprep.subr.bf16.mxu0 %v5136
        %5200 = vmatpush1.bf16.msra.mxu0 %v5135
        %5201 = vmatprep.subr.bf16.mxu0 %v5138
        %5202 = vmatpush1.bf16.msra.mxu0 %v5137
        %5203 = vmatprep.subr.bf16.mxu0 %v5140
        %5204 = vmatpush1.bf16.msra.mxu0 %v5139
        %5205 = vmatprep.subr.bf16.mxu0 %v5142
        %5206 = vmatpush1.bf16.msra.mxu0 %v5141
        %5207 = vmatprep.subr.bf16.mxu0 %v5144
        %5208 = vmatpush1.bf16.msra.mxu0 %v5143
        %5209 = vmatprep.subr.bf16.mxu0 %v5146
        %5210 = vmatpush1.bf16.msra.mxu0 %v5145
        %5211 = vmatprep.subr.bf16.mxu0 %v5148
        %5212 = vmatpush1.bf16.msra.mxu0 %v5147
        %5213 = vmatprep.subr.bf16.mxu0 %v5150
        %5214 = vmatpush1.bf16.msra.mxu0 %v5149
        %5215 = vmatprep.subr.bf16.mxu0 %v5152
        %5216 = vmatpush1.bf16.msra.mxu0 %v5151
        %5217 = vmatprep.mubr.bf16.mxu0 %v5022
        %5218 = vmatmul.mubr.bf16.gmra.mrb[0].mxu0 %v5019
        %v5219 = vpop.f32.mrb[0].mxu0
        %v5220 = vadd.f32 0.0, %v5219
        %v5221 = vpop.f32.mrb[0].mxu0
        %v5222 = vadd.f32 0.0, %v5221
        %v5223 = vpop.f32.mrb[0].mxu0
        %v5224 = vadd.f32 0.0, %v5223
        %v5225 = vpop.f32.mrb[0].mxu0
        %v5226 = vadd.f32 0.0, %v5225
        %5227 = vdwg.mxu0
        %v5228 = vadd.f32 %v4965, %v5220
        %v5229 = vadd.f32 %v4967, %v5222
        %v5230 = vadd.f32 %v4969, %v5224
        %v5231 = vadd.f32 %v4971, %v5226
        %v5232 = vadd.f32 %v5228, %v3621
        %v5233 = vadd.f32 %v5229, %v3625
        %v5234 = vadd.f32 %v5230, %v3621
        %v5235 = vadd.f32 %v5231, %v3625
        %v5236 = vmax.f32 %v5232, 0.0
        %v5237 = vmax.f32 %v5233, 0.0
        %v5238 = vmax.f32 %v5234, 0.0
        %v5239 = vmax.f32 %v5235, 0.0
        %5240 = vst [vmem:[%s254] sm:$0xff] %v5236
        %5241 = vst [vmem:[%s254 + $0x8] sm:$0xff] %v5237
        %5242 = vst [vmem:[%s254 + $0x10] sm:$0xff] %v5238
        %5243 = vst [vmem:[%s254 + $0x18] sm:$0xff] %v5239
        %p5244 = scmp.lt.s32.totalorder %s18, 1
        %s5245 = scalar_select %p5244, %s18, 1
        %s5246 = smul.addr %s5245, 4
        %s5247 = smul.addr %s5246, 8
        %s5248 = scalar_lea.vmem %s5, %s5247
        // Predicated region
        $region49: #{recurrent_block_forward.1} parent=39 // pred_check
          %p5249 = pneg %p146
        $region50: #{recurrent_block_forward.1} parent=39 // pred_check_branch
          %5251 = sbr.rel (%p5249) target = $region52
        $region51: #{recurrent_block_forward.1} parent=39 // pred_region
          _
        $region52: #{recurrent_block_forward.1} parent=39 // pred_fallthru
          _
      $region40: #{recurrent_block_forward.1} parent=5 // pred_fallthru
        _
      %p5252 = scmp.le.s32.totalorder 2, %s13
      // Predicated region
      $region53: #{recurrent_block_forward.1} parent=5 // pred_check
        %p5253 = pneg %p5252
      $region54: #{recurrent_block_forward.1} parent=5 // pred_check_branch
        %5255 = sbr.rel (%p5253) target = $region56
      $region55: #{recurrent_block_forward.1} parent=5 // pred_region
        %s5256 = ssub.s32 %s13, 2
        // Predicated region
        $region57: #{recurrent_block_forward.1} parent=55 // pred_check
          %p5257 = pneg %p152
        $region58: #{recurrent_block_forward.1} parent=55 // pred_check_branch
          %5259 = sbr.rel (%p5257) target = $region60
        $region59: #{recurrent_block_forward.1} parent=55 // pred_region
          %p5260 = scmp.lt.s32.totalorder %s19, 1
          %s5261 = scalar_select %p5260, %s19, 1
          %s5262 = smul.addr %s5261, 4
          %s5263 = smul.addr %s5262, 8
          %s5264 = scalar_lea.vmem %s5, %s5263
        $region60: #{recurrent_block_forward.1} parent=55 // pred_fallthru
          _
      $region56: #{recurrent_block_forward.1} parent=5 // pred_fallthru
        _
    $region6: #{recurrent_block_forward.1} parent=1 // loop_footer
      %s17 = sadd.s32 1, %s13
    $region7: #{recurrent_block_forward.1} parent=1 // loop_footer_branch
      %12 = sbr.rel target = $region3
    $region8: #{recurrent_block_forward.1} parent=1 // loop_exit
      _
    %5265 = vsyncpa [#allocation4], 1
    %s5266 = scalar_lea.sflag [#allocation4], 1
    %5267 = vsyncpa %s5266, 1
    %5268 = vsyncpa [#allocation6], 1

</llo_original>
